<compile_context>
chip_gen: v5e
topology: v5e:2x2
jax: 0.10.0
libtpu: 0.0.40
codegen_flags: <defaults>
</compile_context>

<pallas_src>
import functools

import jax
import jax.numpy as jnp
from jax.experimental import pallas as pl
from jax.experimental.pallas import tpu as pltpu

LANE = 128  # TPU lane width; all matmul N / K dims are padded to multiples of this.


def _round_up(n, m):
    return (n + m - 1) // m * m


# ---------------------------------------------------------------------------
# Fused conv (im2col matmul) + bias + ReLU + 2x2 maxpool, one batch element/block
# ---------------------------------------------------------------------------
def _conv_relu_pool_kernel(p_ref, w_ref, b_ref, o_ref, *, mp):
    """p_ref : (4*mp, Kp) patches; rows ordered (dh, dw, ph, pw) so each contiguous
               mp-row chunk holds one of the four 2x2 pooling candidates.
       w_ref : (Kp, 128) weight (K and output channels zero-padded).
       b_ref : (1, 128)  bias (zero-padded).
       o_ref : (mp, 128) pooled output; rows = (ph, pw), lanes = channels."""
    w = w_ref[...]
    bias = b_ref[...]
    acc = None
    for g in range(4):  # static unroll over the 4 pool candidates
        part = jnp.dot(p_ref[g * mp:(g + 1) * mp, :], w,
                       preferred_element_type=jnp.float32)
        part = jnp.maximum(part + bias, 0.0)          # bias + ReLU
        acc = part if acc is None else jnp.maximum(acc, part)   # 2x2 maxpool
    o_ref[...] = acc.astype(o_ref.dtype)


def conv_relu_pool(x, wk, bk, *, in_channels, ksize=5, pad=2):
    """x: (B, H, W, C>=in_channels) NHWC.  Returns (B, H//2, W//2, 128) NHWC,
    lanes beyond the real output-channel count are exactly zero."""
    B, H, W, _ = x.shape
    Kp = wk.shape[0]
    K = in_channels * ksize * ksize

    # ZeroPad2d(2) equivalent (channels sliced to the real count first).
    xp = jnp.pad(x[..., :in_channels], ((0, 0), (pad, pad), (pad, pad), (0, 0)))
    OH = H + 2 * pad - ksize + 1
    OW = W + 2 * pad - ksize + 1
    PH, PW = OH // 2, OW // 2
    mp = PH * PW

    # im2col glue: K ordered (c, kh, kw) to match w.reshape(OC, C*k*k);
    # rows ordered (b, dh, dw, ph, pw) so pooling is 4 aligned row chunks in-kernel.
    cols = [xp[:, kh:kh + OH, kw:kw + OW, :]
            for kh in range(ksize) for kw in range(ksize)]
    p = jnp.stack(cols, axis=-1)                              # (B, OH, OW, C, k*k)
    p = p.reshape(B, PH, 2, PW, 2, in_channels, ksize * ksize)
    p = p.transpose(0, 2, 4, 1, 3, 5, 6)                      # (B, 2, 2, PH, PW, C, k*k)
    p = p.reshape(B * 4 * mp, K)
    if Kp > K:
        p = jnp.pad(p, ((0, 0), (0, Kp - K)))                 # lane-align contraction dim

    out = pl.pallas_call(
        functools.partial(_conv_relu_pool_kernel, mp=mp),
        out_shape=jax.ShapeDtypeStruct((B * mp, LANE), x.dtype),
        grid=(B,),
        in_specs=[
            pl.BlockSpec((4 * mp, Kp), lambda b: (b, 0)),
            pl.BlockSpec((Kp, LANE), lambda b: (0, 0)),
            pl.BlockSpec((1, LANE), lambda b: (0, 0)),
        ],
        out_specs=pl.BlockSpec((mp, LANE), lambda b: (b, 0)),
        compiler_params=pltpu.CompilerParams(dimension_semantics=("parallel",)),
    )(p, wk, bk)
    return out.reshape(B, PH, PW, LANE)


# ---------------------------------------------------------------------------
# Fused FC stack: fc1 + ReLU + fc2 + ReLU + fc3 in one kernel (all 128-lane padded)
# ---------------------------------------------------------------------------
def _fc_stack_kernel(x_ref, w1_ref, b1_ref, w2_ref, b2_ref, w3_ref, b3_ref, o_ref):
    h = jnp.dot(x_ref[...], w1_ref[...], preferred_element_type=jnp.float32) + b1_ref[...]
    h = jnp.maximum(h, 0.0)
    h = jnp.dot(h, w2_ref[...], preferred_element_type=jnp.float32) + b2_ref[...]
    h = jnp.maximum(h, 0.0)
    o = jnp.dot(h, w3_ref[...], preferred_element_type=jnp.float32) + b3_ref[...]
    o_ref[...] = o.astype(o_ref.dtype)


def fc_stack(x, w1, b1, w2, b2, w3, b3):
    B = x.shape[0]
    return pl.pallas_call(
        _fc_stack_kernel,
        out_shape=jax.ShapeDtypeStruct((B, LANE), x.dtype),
        in_specs=[pl.BlockSpec(memory_space=pltpu.MemorySpace.VMEM)] * 7,
        out_specs=pl.BlockSpec(memory_space=pltpu.MemorySpace.VMEM),
    )(x, w1, b1, w2, b2, w3, b3)


# ---------------------------------------------------------------------------
# Full forward pass (matches PyTorch ConvNet.forward semantics)
# ---------------------------------------------------------------------------
def convnet_forward(x_nchw, p):
    """x_nchw: (B, 3, 32, 32) float32 -> (B, 10) logits."""
    x = jnp.transpose(x_nchw, (0, 2, 3, 1))                   # NCHW -> NHWC, once
    x = conv_relu_pool(x, p["w1"], p["b1"], in_channels=3)    # (B, 16, 16, 128)
    x = conv_relu_pool(x, p["w2"], p["b2"], in_channels=6)    # (B, 8, 8, 128)
    x = conv_relu_pool(x, p["w3"], p["b3"], in_channels=12)   # (B, 4, 4, 128)
    B = x.shape[0]
    x = x.reshape(B, 4 * 4 * LANE)   # NHWC-padded flatten; NCHW .view order folded into fc1 weight
    out = fc_stack(x, p["fw1"], p["fb1"], p["fw2"], p["fb2"], p["fw3"], p["fb3"])
    return out[:, :10]


# ---------------------------------------------------------------------------
# Parameters: PyTorch-layout init + one-time re-layout into kernel-ready tensors
# ---------------------------------------------------------------------------
def init_params(key):
    ks = jax.random.split(key, 12)
    f32 = jnp.float32

    def rnd(k, shape, scale=0.05):
        return (scale * jax.random.normal(k, shape)).astype(f32)

    return {
        "w1": rnd(ks[0], (6, 3, 5, 5)),   "b1": rnd(ks[1], (6,)),
        "w2": rnd(ks[2], (12, 6, 5, 5)),  "b2": rnd(ks[3], (12,)),
        "w3": rnd(ks[4], (18, 12, 5, 5)), "b3": rnd(ks[5], (18,)),
        "fw1": rnd(ks[6], (120, 288)),    "fb1": rnd(ks[7], (120,)),
        "fw2": rnd(ks[8], (84, 120)),     "fb2": rnd(ks[9], (84,)),
        "fw3": rnd(ks[10], (10, 84)),     "fb3": rnd(ks[11], (10,)),
    }


def prepare_params(params):
    """One-time (hoisted) re-layout: transpose, lane-pad to 128, K-pad to x128,
    and fold the PyTorch NCHW .view(-1, 18*4*4) permutation into the fc1 weight."""

    def prep_conv(w, b):
        OC, C, k, _ = w.shape
        K = C * k * k
        Kp = _round_up(K, LANE)
        wk = jnp.pad(w.reshape(OC, K).T, ((0, Kp - K), (0, LANE - OC)))  # (Kp, 128)
        bk = jnp.pad(b, (0, LANE - OC)).reshape(1, LANE)
        return wk, bk

    def prep_fc(w, b):  # (out, in) with in, out <= 128
        N, K = w.shape
        wk = jnp.pad(w.T, ((0, LANE - K), (0, LANE - N)))                # (128, 128)
        bk = jnp.pad(b, (0, LANE - N)).reshape(1, LANE)
        return wk, bk

    w1, b1 = prep_conv(params["w1"], params["b1"])
    w2, b2 = prep_conv(params["w2"], params["b2"])
    w3, b3 = prep_conv(params["w3"], params["b3"])

    # fc1: PyTorch column j = c*16 + h*4 + w  ->  our row j' = (h*4 + w)*128 + c.
    fw1 = params["fw1"]                                   # (120, 288)
    N1 = fw1.shape[0]
    wv = fw1.T.reshape(18, 4, 4, N1).transpose(1, 2, 0, 3)  # (h, w, c, n)
    wv = jnp.pad(wv, ((0, 0), (0, 0), (0, LANE - 18), (0, LANE - N1)))
    fcw1 = wv.reshape(4 * 4 * LANE, LANE)                  # (2048, 128)
    fcb1 = jnp.pad(params["fb1"], (0, LANE - N1)).reshape(1, LANE)

    fcw2, fcb2 = prep_fc(params["fw2"], params["fb2"])
    fcw3, fcb3 = prep_fc(params["fw3"], params["fb3"])

    return {"w1": w1, "b1": b1, "w2": w2, "b2": b2, "w3": w3, "b3": b3,
            "fw1": fcw1, "fb1": fcb1, "fw2": fcw2, "fb2": fcb2,
            "fw3": fcw3, "fb3": fcb3}


if __name__ == "__main__":
    key = jax.random.PRNGKey(0)
    kx, kp = jax.random.split(key)
    # CIFAR-10 shape is forced by fc1 (18*4*4): 3 channels, 32x32 spatial; batch=2.
    x = jax.random.normal(kx, (2, 3, 32, 32), dtype=jnp.float32)
    params = init_params(kp)
    prepared = prepare_params(params)   # weight re-layout done once, outside the hot path

    fwd = jax.jit(convnet_forward)
    out = jax.block_until_ready(fwd(x, prepared))
    assert out.shape == (2, 10), out.shape
    assert out.dtype == jnp.float32
    print("KERNEL_OK")
</pallas_src>

<mosaic_0001>
module attributes {stable_mosaic.version = 11 : i64} {
  func.func @_conv_relu_pool_kernel(%arg0: i32, %arg1: memref<1024x128xf32, #tpu.memory_space<vmem>>, %arg2: memref<128x128xf32, #tpu.memory_space<vmem>>, %arg3: memref<1x128xf32, #tpu.memory_space<vmem>>, %arg4: memref<256x128xf32, #tpu.memory_space<vmem>>) attributes {dimension_semantics = [#tpu.dimension_semantics<parallel>], iteration_bounds = array<i64: 2>, scalar_prefetch = 0 : i64, scratch_operands = 0 : i64, tpu.core_type = #tpu.core_type<tc>, window_params = [{transform_indices = @transform_0, window_bounds = array<i64: 1024, 128>}, {pipeline_mode = #tpu.pipeline_mode<synchronous>, transform_indices = @transform_1, window_bounds = array<i64: 128, 128>}, {pipeline_mode = #tpu.pipeline_mode<synchronous>, transform_indices = @transform_2, window_bounds = array<i64: 1, 128>}, {transform_indices = @transform_3, window_bounds = array<i64: 256, 128>}]} {
    %c0 = arith.constant 0 : index
    %c0_0 = arith.constant 0 : index
    %0 = vector.load %arg2[%c0, %c0_0] : memref<128x128xf32, #tpu.memory_space<vmem>>, vector<128x128xf32>
    %c0_1 = arith.constant 0 : index
    %c0_2 = arith.constant 0 : index
    %1 = vector.load %arg3[%c0_1, %c0_2] : memref<1x128xf32, #tpu.memory_space<vmem>>, vector<1x128xf32>
    %c0_3 = arith.constant 0 : index
    %c0_4 = arith.constant 0 : index
    %2 = vector.load %arg1[%c0_3, %c0_4] : memref<1024x128xf32, #tpu.memory_space<vmem>>, vector<256x128xf32>
    %cst = arith.constant dense<0.000000e+00> : vector<256x128xf32>
    %3 = tpu.matmul %2, %0, %cst {dimension_numbers = #tpu.dot_dimension_numbers<[1], [0], [0], [1], [0, 0, 1, 1], [], []>} : vector<256x128xf32>, vector<128x128xf32>, vector<256x128xf32> -> vector<256x128xf32>
    %4 = vector.broadcast %1 : vector<1x128xf32> to vector<256x128xf32>
    %5 = arith.addf %3, %4 : vector<256x128xf32>
    %cst_5 = arith.constant 0.000000e+00 : f32
    %6 = vector.broadcast %cst_5 : f32 to vector<256x128xf32>
    %7 = arith.maximumf %5, %6 : vector<256x128xf32>
    %c256 = arith.constant 256 : index
    %c0_6 = arith.constant 0 : index
    %8 = vector.load %arg1[%c256, %c0_6] : memref<1024x128xf32, #tpu.memory_space<vmem>>, vector<256x128xf32>
    %cst_7 = arith.constant dense<0.000000e+00> : vector<256x128xf32>
    %9 = tpu.matmul %8, %0, %cst_7 {dimension_numbers = #tpu.dot_dimension_numbers<[1], [0], [0], [1], [0, 0, 1, 1], [], []>} : vector<256x128xf32>, vector<128x128xf32>, vector<256x128xf32> -> vector<256x128xf32>
    %10 = vector.broadcast %1 : vector<1x128xf32> to vector<256x128xf32>
    %11 = arith.addf %9, %10 : vector<256x128xf32>
    %cst_8 = arith.constant 0.000000e+00 : f32
    %12 = vector.broadcast %cst_8 : f32 to vector<256x128xf32>
    %13 = arith.maximumf %11, %12 : vector<256x128xf32>
    %14 = arith.maximumf %7, %13 : vector<256x128xf32>
    %c512 = arith.constant 512 : index
    %c0_9 = arith.constant 0 : index
    %15 = vector.load %arg1[%c512, %c0_9] : memref<1024x128xf32, #tpu.memory_space<vmem>>, vector<256x128xf32>
    %cst_10 = arith.constant dense<0.000000e+00> : vector<256x128xf32>
    %16 = tpu.matmul %15, %0, %cst_10 {dimension_numbers = #tpu.dot_dimension_numbers<[1], [0], [0], [1], [0, 0, 1, 1], [], []>} : vector<256x128xf32>, vector<128x128xf32>, vector<256x128xf32> -> vector<256x128xf32>
    %17 = vector.broadcast %1 : vector<1x128xf32> to vector<256x128xf32>
    %18 = arith.addf %16, %17 : vector<256x128xf32>
    %cst_11 = arith.constant 0.000000e+00 : f32
    %19 = vector.broadcast %cst_11 : f32 to vector<256x128xf32>
    %20 = arith.maximumf %18, %19 : vector<256x128xf32>
    %21 = arith.maximumf %14, %20 : vector<256x128xf32>
    %c768 = arith.constant 768 : index
    %c0_12 = arith.constant 0 : index
    %22 = vector.load %arg1[%c768, %c0_12] : memref<1024x128xf32, #tpu.memory_space<vmem>>, vector<256x128xf32>
    %cst_13 = arith.constant dense<0.000000e+00> : vector<256x128xf32>
    %23 = tpu.matmul %22, %0, %cst_13 {dimension_numbers = #tpu.dot_dimension_numbers<[1], [0], [0], [1], [0, 0, 1, 1], [], []>} : vector<256x128xf32>, vector<128x128xf32>, vector<256x128xf32> -> vector<256x128xf32>
    %24 = vector.broadcast %1 : vector<1x128xf32> to vector<256x128xf32>
    %25 = arith.addf %23, %24 : vector<256x128xf32>
    %cst_14 = arith.constant 0.000000e+00 : f32
    %26 = vector.broadcast %cst_14 : f32 to vector<256x128xf32>
    %27 = arith.maximumf %25, %26 : vector<256x128xf32>
    %28 = arith.maximumf %21, %27 : vector<256x128xf32>
    %c0_15 = arith.constant 0 : index
    %c0_16 = arith.constant 0 : index
    %29 = vector.load %arg4[%c0_15, %c0_16] : memref<256x128xf32, #tpu.memory_space<vmem>>, vector<256x128xf32>
    tpu.vector_store %arg4[%c0_15, %c0_16], %28 {strides = array<i32>} : memref<256x128xf32, #tpu.memory_space<vmem>>, vector<256x128xf32>,
    return
  }
  func.func @transform_0(%arg0: i32) -> (i32, i32) {
    %c0_i32 = arith.constant 0 : i32
    %c0_i32_0 = arith.constant 0 : i32
    return %arg0, %c0_i32 : i32, i32
  }
  func.func @transform_1(%arg0: i32) -> (i32, i32) {
    %c0_i32 = arith.constant 0 : i32
    %c0_i32_0 = arith.constant 0 : i32
    %c0_i32_1 = arith.constant 0 : i32
    return %c0_i32, %c0_i32_0 : i32, i32
  }
  func.func @transform_2(%arg0: i32) -> (i32, i32) {
    %c0_i32 = arith.constant 0 : i32
    %c0_i32_0 = arith.constant 0 : i32
    %c0_i32_1 = arith.constant 0 : i32
    return %c0_i32, %c0_i32_0 : i32, i32
  }
  func.func @transform_3(%arg0: i32) -> (i32, i32) {
    %c0_i32 = arith.constant 0 : i32
    %c0_i32_0 = arith.constant 0 : i32
    return %arg0, %c0_i32 : i32, i32
  }
}

module attributes {stable_mosaic.version = 11 : i64} {
  func.func @_conv_relu_pool_kernel(%arg0: i32, %arg1: memref<256x256xf32, #tpu.memory_space<vmem>>, %arg2: memref<256x128xf32, #tpu.memory_space<vmem>>, %arg3: memref<1x128xf32, #tpu.memory_space<vmem>>, %arg4: memref<64x128xf32, #tpu.memory_space<vmem>>) attributes {dimension_semantics = [#tpu.dimension_semantics<parallel>], iteration_bounds = array<i64: 2>, scalar_prefetch = 0 : i64, scratch_operands = 0 : i64, tpu.core_type = #tpu.core_type<tc>, window_params = [{transform_indices = @transform_0, window_bounds = array<i64: 256, 256>}, {pipeline_mode = #tpu.pipeline_mode<synchronous>, transform_indices = @transform_1, window_bounds = array<i64: 256, 128>}, {pipeline_mode = #tpu.pipeline_mode<synchronous>, transform_indices = @transform_2, window_bounds = array<i64: 1, 128>}, {transform_indices = @transform_3, window_bounds = array<i64: 64, 128>}]} {
    %c0 = arith.constant 0 : index
    %c0_0 = arith.constant 0 : index
    %0 = vector.load %arg2[%c0, %c0_0] : memref<256x128xf32, #tpu.memory_space<vmem>>, vector<256x128xf32>
    %c0_1 = arith.constant 0 : index
    %c0_2 = arith.constant 0 : index
    %1 = vector.load %arg3[%c0_1, %c0_2] : memref<1x128xf32, #tpu.memory_space<vmem>>, vector<1x128xf32>
    %c0_3 = arith.constant 0 : index
    %c0_4 = arith.constant 0 : index
    %2 = vector.load %arg1[%c0_3, %c0_4] : memref<256x256xf32, #tpu.memory_space<vmem>>, vector<64x256xf32>
    %cst = arith.constant dense<0.000000e+00> : vector<64x128xf32>
    %3 = tpu.matmul %2, %0, %cst {dimension_numbers = #tpu.dot_dimension_numbers<[1], [0], [0], [1], [0, 0, 1, 1], [], []>} : vector<64x256xf32>, vector<256x128xf32>, vector<64x128xf32> -> vector<64x128xf32>
    %4 = vector.broadcast %1 : vector<1x128xf32> to vector<64x128xf32>
    %5 = arith.addf %3, %4 : vector<64x128xf32>
    %cst_5 = arith.constant 0.000000e+00 : f32
    %6 = vector.broadcast %cst_5 : f32 to vector<64x128xf32>
    %7 = arith.maximumf %5, %6 : vector<64x128xf32>
    %c64 = arith.constant 64 : index
    %c0_6 = arith.constant 0 : index
    %8 = vector.load %arg1[%c64, %c0_6] : memref<256x256xf32, #tpu.memory_space<vmem>>, vector<64x256xf32>
    %cst_7 = arith.constant dense<0.000000e+00> : vector<64x128xf32>
    %9 = tpu.matmul %8, %0, %cst_7 {dimension_numbers = #tpu.dot_dimension_numbers<[1], [0], [0], [1], [0, 0, 1, 1], [], []>} : vector<64x256xf32>, vector<256x128xf32>, vector<64x128xf32> -> vector<64x128xf32>
    %10 = vector.broadcast %1 : vector<1x128xf32> to vector<64x128xf32>
    %11 = arith.addf %9, %10 : vector<64x128xf32>
    %cst_8 = arith.constant 0.000000e+00 : f32
    %12 = vector.broadcast %cst_8 : f32 to vector<64x128xf32>
    %13 = arith.maximumf %11, %12 : vector<64x128xf32>
    %14 = arith.maximumf %7, %13 : vector<64x128xf32>
    %c128 = arith.constant 128 : index
    %c0_9 = arith.constant 0 : index
    %15 = vector.load %arg1[%c128, %c0_9] : memref<256x256xf32, #tpu.memory_space<vmem>>, vector<64x256xf32>
    %cst_10 = arith.constant dense<0.000000e+00> : vector<64x128xf32>
    %16 = tpu.matmul %15, %0, %cst_10 {dimension_numbers = #tpu.dot_dimension_numbers<[1], [0], [0], [1], [0, 0, 1, 1], [], []>} : vector<64x256xf32>, vector<256x128xf32>, vector<64x128xf32> -> vector<64x128xf32>
    %17 = vector.broadcast %1 : vector<1x128xf32> to vector<64x128xf32>
    %18 = arith.addf %16, %17 : vector<64x128xf32>
    %cst_11 = arith.constant 0.000000e+00 : f32
    %19 = vector.broadcast %cst_11 : f32 to vector<64x128xf32>
    %20 = arith.maximumf %18, %19 : vector<64x128xf32>
    %21 = arith.maximumf %14, %20 : vector<64x128xf32>
    %c192 = arith.constant 192 : index
    %c0_12 = arith.constant 0 : index
    %22 = vector.load %arg1[%c192, %c0_12] : memref<256x256xf32, #tpu.memory_space<vmem>>, vector<64x256xf32>
    %cst_13 = arith.constant dense<0.000000e+00> : vector<64x128xf32>
    %23 = tpu.matmul %22, %0, %cst_13 {dimension_numbers = #tpu.dot_dimension_numbers<[1], [0], [0], [1], [0, 0, 1, 1], [], []>} : vector<64x256xf32>, vector<256x128xf32>, vector<64x128xf32> -> vector<64x128xf32>
    %24 = vector.broadcast %1 : vector<1x128xf32> to vector<64x128xf32>
    %25 = arith.addf %23, %24 : vector<64x128xf32>
    %cst_14 = arith.constant 0.000000e+00 : f32
    %26 = vector.broadcast %cst_14 : f32 to vector<64x128xf32>
    %27 = arith.maximumf %25, %26 : vector<64x128xf32>
    %28 = arith.maximumf %21, %27 : vector<64x128xf32>
    %c0_15 = arith.constant 0 : index
    %c0_16 = arith.constant 0 : index
    %29 = vector.load %arg4[%c0_15, %c0_16] : memref<64x128xf32, #tpu.memory_space<vmem>>, vector<64x128xf32>
    tpu.vector_store %arg4[%c0_15, %c0_16], %28 {strides = array<i32>} : memref<64x128xf32, #tpu.memory_space<vmem>>, vector<64x128xf32>,
    return
  }
  func.func @transform_0(%arg0: i32) -> (i32, i32) {
    %c0_i32 = arith.constant 0 : i32
    %c0_i32_0 = arith.constant 0 : i32
    return %arg0, %c0_i32 : i32, i32
  }
  func.func @transform_1(%arg0: i32) -> (i32, i32) {
    %c0_i32 = arith.constant 0 : i32
    %c0_i32_0 = arith.constant 0 : i32
    %c0_i32_1 = arith.constant 0 : i32
    return %c0_i32, %c0_i32_0 : i32, i32
  }
  func.func @transform_2(%arg0: i32) -> (i32, i32) {
    %c0_i32 = arith.constant 0 : i32
    %c0_i32_0 = arith.constant 0 : i32
    %c0_i32_1 = arith.constant 0 : i32
    return %c0_i32, %c0_i32_0 : i32, i32
  }
  func.func @transform_3(%arg0: i32) -> (i32, i32) {
    %c0_i32 = arith.constant 0 : i32
    %c0_i32_0 = arith.constant 0 : i32
    return %arg0, %c0_i32 : i32, i32
  }
}

module attributes {stable_mosaic.version = 11 : i64} {
  func.func @_conv_relu_pool_kernel(%arg0: i32, %arg1: memref<64x384xf32, #tpu.memory_space<vmem>>, %arg2: memref<384x128xf32, #tpu.memory_space<vmem>>, %arg3: memref<1x128xf32, #tpu.memory_space<vmem>>, %arg4: memref<16x128xf32, #tpu.memory_space<vmem>>) attributes {dimension_semantics = [#tpu.dimension_semantics<parallel>], iteration_bounds = array<i64: 2>, scalar_prefetch = 0 : i64, scratch_operands = 0 : i64, tpu.core_type = #tpu.core_type<tc>, window_params = [{transform_indices = @transform_0, window_bounds = array<i64: 64, 384>}, {pipeline_mode = #tpu.pipeline_mode<synchronous>, transform_indices = @transform_1, window_bounds = array<i64: 384, 128>}, {pipeline_mode = #tpu.pipeline_mode<synchronous>, transform_indices = @transform_2, window_bounds = array<i64: 1, 128>}, {transform_indices = @transform_3, window_bounds = array<i64: 16, 128>}]} {
    %c0 = arith.constant 0 : index
    %c0_0 = arith.constant 0 : index
    %0 = vector.load %arg2[%c0, %c0_0] : memref<384x128xf32, #tpu.memory_space<vmem>>, vector<384x128xf32>
    %c0_1 = arith.constant 0 : index
    %c0_2 = arith.constant 0 : index
    %1 = vector.load %arg3[%c0_1, %c0_2] : memref<1x128xf32, #tpu.memory_space<vmem>>, vector<1x128xf32>
    %c0_3 = arith.constant 0 : index
    %c0_4 = arith.constant 0 : index
    %2 = vector.load %arg1[%c0_3, %c0_4] : memref<64x384xf32, #tpu.memory_space<vmem>>, vector<16x384xf32>
    %cst = arith.constant dense<0.000000e+00> : vector<16x128xf32>
    %3 = tpu.matmul %2, %0, %cst {dimension_numbers = #tpu.dot_dimension_numbers<[1], [0], [0], [1], [0, 0, 1, 1], [], []>} : vector<16x384xf32>, vector<384x128xf32>, vector<16x128xf32> -> vector<16x128xf32>
    %4 = vector.broadcast %1 : vector<1x128xf32> to vector<16x128xf32>
    %5 = arith.addf %3, %4 : vector<16x128xf32>
    %cst_5 = arith.constant 0.000000e+00 : f32
    %6 = vector.broadcast %cst_5 : f32 to vector<16x128xf32>
    %7 = arith.maximumf %5, %6 : vector<16x128xf32>
    %c16 = arith.constant 16 : index
    %c0_6 = arith.constant 0 : index
    %8 = vector.load %arg1[%c16, %c0_6] : memref<64x384xf32, #tpu.memory_space<vmem>>, vector<16x384xf32>
    %cst_7 = arith.constant dense<0.000000e+00> : vector<16x128xf32>
    %9 = tpu.matmul %8, %0, %cst_7 {dimension_numbers = #tpu.dot_dimension_numbers<[1], [0], [0], [1], [0, 0, 1, 1], [], []>} : vector<16x384xf32>, vector<384x128xf32>, vector<16x128xf32> -> vector<16x128xf32>
    %10 = vector.broadcast %1 : vector<1x128xf32> to vector<16x128xf32>
    %11 = arith.addf %9, %10 : vector<16x128xf32>
    %cst_8 = arith.constant 0.000000e+00 : f32
    %12 = vector.broadcast %cst_8 : f32 to vector<16x128xf32>
    %13 = arith.maximumf %11, %12 : vector<16x128xf32>
    %14 = arith.maximumf %7, %13 : vector<16x128xf32>
    %c32 = arith.constant 32 : index
    %c0_9 = arith.constant 0 : index
    %15 = vector.load %arg1[%c32, %c0_9] : memref<64x384xf32, #tpu.memory_space<vmem>>, vector<16x384xf32>
    %cst_10 = arith.constant dense<0.000000e+00> : vector<16x128xf32>
    %16 = tpu.matmul %15, %0, %cst_10 {dimension_numbers = #tpu.dot_dimension_numbers<[1], [0], [0], [1], [0, 0, 1, 1], [], []>} : vector<16x384xf32>, vector<384x128xf32>, vector<16x128xf32> -> vector<16x128xf32>
    %17 = vector.broadcast %1 : vector<1x128xf32> to vector<16x128xf32>
    %18 = arith.addf %16, %17 : vector<16x128xf32>
    %cst_11 = arith.constant 0.000000e+00 : f32
    %19 = vector.broadcast %cst_11 : f32 to vector<16x128xf32>
    %20 = arith.maximumf %18, %19 : vector<16x128xf32>
    %21 = arith.maximumf %14, %20 : vector<16x128xf32>
    %c48 = arith.constant 48 : index
    %c0_12 = arith.constant 0 : index
    %22 = vector.load %arg1[%c48, %c0_12] : memref<64x384xf32, #tpu.memory_space<vmem>>, vector<16x384xf32>
    %cst_13 = arith.constant dense<0.000000e+00> : vector<16x128xf32>
    %23 = tpu.matmul %22, %0, %cst_13 {dimension_numbers = #tpu.dot_dimension_numbers<[1], [0], [0], [1], [0, 0, 1, 1], [], []>} : vector<16x384xf32>, vector<384x128xf32>, vector<16x128xf32> -> vector<16x128xf32>
    %24 = vector.broadcast %1 : vector<1x128xf32> to vector<16x128xf32>
    %25 = arith.addf %23, %24 : vector<16x128xf32>
    %cst_14 = arith.constant 0.000000e+00 : f32
    %26 = vector.broadcast %cst_14 : f32 to vector<16x128xf32>
    %27 = arith.maximumf %25, %26 : vector<16x128xf32>
    %28 = arith.maximumf %21, %27 : vector<16x128xf32>
    %c0_15 = arith.constant 0 : index
    %c0_16 = arith.constant 0 : index
    %29 = vector.load %arg4[%c0_15, %c0_16] : memref<16x128xf32, #tpu.memory_space<vmem>>, vector<16x128xf32>
    tpu.vector_store %arg4[%c0_15, %c0_16], %28 {strides = array<i32>} : memref<16x128xf32, #tpu.memory_space<vmem>>, vector<16x128xf32>,
    return
  }
  func.func @transform_0(%arg0: i32) -> (i32, i32) {
    %c0_i32 = arith.constant 0 : i32
    %c0_i32_0 = arith.constant 0 : i32
    return %arg0, %c0_i32 : i32, i32
  }
  func.func @transform_1(%arg0: i32) -> (i32, i32) {
    %c0_i32 = arith.constant 0 : i32
    %c0_i32_0 = arith.constant 0 : i32
    %c0_i32_1 = arith.constant 0 : i32
    return %c0_i32, %c0_i32_0 : i32, i32
  }
  func.func @transform_2(%arg0: i32) -> (i32, i32) {
    %c0_i32 = arith.constant 0 : i32
    %c0_i32_0 = arith.constant 0 : i32
    %c0_i32_1 = arith.constant 0 : i32
    return %c0_i32, %c0_i32_0 : i32, i32
  }
  func.func @transform_3(%arg0: i32) -> (i32, i32) {
    %c0_i32 = arith.constant 0 : i32
    %c0_i32_0 = arith.constant 0 : i32
    return %arg0, %c0_i32 : i32, i32
  }
}

module attributes {stable_mosaic.version = 11 : i64} {
  func.func @_fc_stack_kernel(%arg0: memref<2x2048xf32, #tpu.memory_space<vmem>>, %arg1: memref<2048x128xf32, #tpu.memory_space<vmem>>, %arg2: memref<1x128xf32, #tpu.memory_space<vmem>>, %arg3: memref<128x128xf32, #tpu.memory_space<vmem>>, %arg4: memref<1x128xf32, #tpu.memory_space<vmem>>, %arg5: memref<128x128xf32, #tpu.memory_space<vmem>>, %arg6: memref<1x128xf32, #tpu.memory_space<vmem>>, %arg7: memref<2x128xf32, #tpu.memory_space<vmem>>) attributes {dimension_semantics = [], scalar_prefetch = 0 : i64, scratch_operands = 0 : i64, tpu.core_type = #tpu.core_type<tc>} {
    %c0 = arith.constant 0 : index
    %c0_0 = arith.constant 0 : index
    %0 = vector.load %arg0[%c0, %c0_0] : memref<2x2048xf32, #tpu.memory_space<vmem>>, vector<2x2048xf32>
    %c0_1 = arith.constant 0 : index
    %c0_2 = arith.constant 0 : index
    %1 = vector.load %arg1[%c0_1, %c0_2] : memref<2048x128xf32, #tpu.memory_space<vmem>>, vector<2048x128xf32>
    %cst = arith.constant dense<0.000000e+00> : vector<2x128xf32>
    %2 = tpu.matmul %0, %1, %cst {dimension_numbers = #tpu.dot_dimension_numbers<[1], [0], [0], [1], [0, 0, 1, 1], [], []>} : vector<2x2048xf32>, vector<2048x128xf32>, vector<2x128xf32> -> vector<2x128xf32>
    %c0_3 = arith.constant 0 : index
    %c0_4 = arith.constant 0 : index
    %3 = vector.load %arg2[%c0_3, %c0_4] : memref<1x128xf32, #tpu.memory_space<vmem>>, vector<1x128xf32>
    %4 = vector.broadcast %3 : vector<1x128xf32> to vector<2x128xf32>
    %5 = arith.addf %2, %4 : vector<2x128xf32>
    %cst_5 = arith.constant 0.000000e+00 : f32
    %6 = vector.broadcast %cst_5 : f32 to vector<2x128xf32>
    %7 = arith.maximumf %5, %6 : vector<2x128xf32>
    %c0_6 = arith.constant 0 : index
    %c0_7 = arith.constant 0 : index
    %8 = vector.load %arg3[%c0_6, %c0_7] : memref<128x128xf32, #tpu.memory_space<vmem>>, vector<128x128xf32>
    %cst_8 = arith.constant dense<0.000000e+00> : vector<2x128xf32>
    %9 = tpu.matmul %7, %8, %cst_8 {dimension_numbers = #tpu.dot_dimension_numbers<[1], [0], [0], [1], [0, 0, 1, 1], [], []>} : vector<2x128xf32>, vector<128x128xf32>, vector<2x128xf32> -> vector<2x128xf32>
    %c0_9 = arith.constant 0 : index
    %c0_10 = arith.constant 0 : index
    %10 = vector.load %arg4[%c0_9, %c0_10] : memref<1x128xf32, #tpu.memory_space<vmem>>, vector<1x128xf32>
    %11 = vector.broadcast %10 : vector<1x128xf32> to vector<2x128xf32>
    %12 = arith.addf %9, %11 : vector<2x128xf32>
    %cst_11 = arith.constant 0.000000e+00 : f32
    %13 = vector.broadcast %cst_11 : f32 to vector<2x128xf32>
    %14 = arith.maximumf %12, %13 : vector<2x128xf32>
    %c0_12 = arith.constant 0 : index
    %c0_13 = arith.constant 0 : index
    %15 = vector.load %arg5[%c0_12, %c0_13] : memref<128x128xf32, #tpu.memory_space<vmem>>, vector<128x128xf32>
    %cst_14 = arith.constant dense<0.000000e+00> : vector<2x128xf32>
    %16 = tpu.matmul %14, %15, %cst_14 {dimension_numbers = #tpu.dot_dimension_numbers<[1], [0], [0], [1], [0, 0, 1, 1], [], []>} : vector<2x128xf32>, vector<128x128xf32>, vector<2x128xf32> -> vector<2x128xf32>
    %c0_15 = arith.constant 0 : index
    %c0_16 = arith.constant 0 : index
    %17 = vector.load %arg6[%c0_15, %c0_16] : memref<1x128xf32, #tpu.memory_space<vmem>>, vector<1x128xf32>
    %18 = vector.broadcast %17 : vector<1x128xf32> to vector<2x128xf32>
    %19 = arith.addf %16, %18 : vector<2x128xf32>
    %c0_17 = arith.constant 0 : index
    %c0_18 = arith.constant 0 : index
    %20 = vector.load %arg7[%c0_17, %c0_18] : memref<2x128xf32, #tpu.memory_space<vmem>>, vector<2x128xf32>
    tpu.vector_store %arg7[%c0_17, %c0_18], %19 {strides = array<i32>} : memref<2x128xf32, #tpu.memory_space<vmem>>, vector<2x128xf32>,
    return
  }
}

</mosaic_0001>

<llo_original>
// kernel: convnet_forward.4
$region0: #{convnet_forward.4}
  #allocation0 [shape = 'u32[]', space=smem, size = 0x4, offset = 0x4, fixed_abs, tag = 'smem constant byte address 0x4 - core index']
  #allocation1 [shape = 'u32[72,128]{1,0:T(1,128)}', space=vmem, size = 0x9000, scoped, tag = 'internal scratch']
  %s0 = inlined_call_operand.vmem [shape: f32[2048,128], index: 0, kind: input, shape index: {}]
  %s1 = inlined_call_operand.vmem [shape: f32[128,128], index: 1, kind: input, shape index: {}]
  %s2 = inlined_call_operand.vmem [shape: f32[1,128], index: 2, kind: input, shape index: {}]
  %s3 = inlined_call_operand.vmem [shape: f32[512,128], index: 3, kind: output, shape index: {}]
  %s4 = sld [smem:[#allocation0]]
  $region45: #{convnet_forward.4} parent=0
    _
  %s6 = ssub.s32 1, %s4
  %s7 = scalar_select 0, %s6, %s4
  loop: start=0, step=1, limit=4
  $region2: #{convnet_forward.4} parent=0 // loop_pre_header
    _
  $region3: #{convnet_forward.4} parent=0 // loop_header
    %s9 = sphi 0, %s13
    %p10 = scmp.ge.s32.totalorder %s9, 4
    %s19 = sphi 0, %s21
    %s22 = sphi 0, %s19
    %s23 = sphi 0, %s22
    %s39 = sphi 0, %s23
    %s43 = sphi 0, %s43
    %s45 = sphi 0, %s43
    %s46 = sphi 0, %s45
    %s60 = sphi 0, %s46
    %s64 = sphi 0, %s64
    %s66 = sphi 0, %s64
    %s67 = sphi 0, %s66
    %s81 = sphi 0, %s67
    %s87 = sphi 0, %s89
    %s90 = sphi 0, %s87
    %s91 = sphi 0, %s90
    %s107 = sphi 0, %s91
  $region4: #{convnet_forward.4} parent=0 // loop_header_branch
    %12 = sbr.rel (%p10) target = $region8
  $region5: #{convnet_forward.4} parent=0 // loop_body
    %s14 = ssub.s32 %s9, 1
    %s15 = ssub.s32 %s9, 2
    %s16 = sadd.s32 %s9, 1
    %s17 = ssub.s32 %s9, %s16
    %p18 = scmp.eq.s32.totalorder %s17, 0
    %s20 = sadd.s32 %s19, 1
    %s21 = scalar_select %p18, %s19, %s20
    %p24 = pneg %p18
    %p25 = scmp.eq.s32.totalorder %s9, 1
    %p26 = por %p24, %p25
    %p27 = scmp.ne.s32.totalorder %s19, %s22
    %p28 = scmp.eq.s32.totalorder %s9, 0
    %p29 = por %p27, %p28
    %p30 = scmp.ne.s32.totalorder %s19, %s22
    %p31 = scmp.eq.s32.totalorder %s14, 1
    %p32 = por %p30, %p31
    %p33 = scmp.ne.s32.totalorder %s22, %s23
    %p34 = scmp.eq.s32.totalorder %s14, 0
    %p35 = por %p33, %p34
    %p36 = scmp.ne.s32.totalorder %s22, %s23
    %p37 = scmp.eq.s32.totalorder %s15, 1
    %p38 = por %p36, %p37
    %p40 = scmp.ne.s32.totalorder %s23, %s39
    %p41 = scmp.eq.s32.totalorder %s15, 0
    %p42 = por %p40, %p41
    %s44 = sadd.s32 %s43, 1
    %p47 = scmp.eq.s32.totalorder %s9, 1
    %p48 = scmp.ne.s32.totalorder %s43, %s45
    %p49 = scmp.eq.s32.totalorder %s9, 0
    %p50 = por %p48, %p49
    %p51 = scmp.ne.s32.totalorder %s43, %s45
    %p52 = scmp.eq.s32.totalorder %s14, 1
    %p53 = por %p51, %p52
    %p54 = scmp.ne.s32.totalorder %s45, %s46
    %p55 = scmp.eq.s32.totalorder %s14, 0
    %p56 = por %p54, %p55
    %p57 = scmp.ne.s32.totalorder %s45, %s46
    %p58 = scmp.eq.s32.totalorder %s15, 1
    %p59 = por %p57, %p58
    %p61 = scmp.ne.s32.totalorder %s46, %s60
    %p62 = scmp.eq.s32.totalorder %s15, 0
    %p63 = por %p61, %p62
    %s65 = sadd.s32 %s64, 1
    %p68 = scmp.eq.s32.totalorder %s9, 1
    %p69 = scmp.ne.s32.totalorder %s64, %s66
    %p70 = scmp.eq.s32.totalorder %s9, 0
    %p71 = por %p69, %p70
    %p72 = scmp.ne.s32.totalorder %s64, %s66
    %p73 = scmp.eq.s32.totalorder %s14, 1
    %p74 = por %p72, %p73
    %p75 = scmp.ne.s32.totalorder %s66, %s67
    %p76 = scmp.eq.s32.totalorder %s14, 0
    %p77 = por %p75, %p76
    %p78 = scmp.ne.s32.totalorder %s66, %s67
    %p79 = scmp.eq.s32.totalorder %s15, 1
    %p80 = por %p78, %p79
    %p82 = scmp.ne.s32.totalorder %s67, %s81
    %p83 = scmp.eq.s32.totalorder %s15, 0
    %p84 = por %p82, %p83
    %s85 = ssub.s32 %s9, %s16
    %p86 = scmp.eq.s32.totalorder %s85, 0
    %s88 = sadd.s32 %s87, 1
    %s89 = scalar_select %p86, %s87, %s88
    %p92 = pneg %p86
    %p93 = scmp.eq.s32.totalorder %s9, 1
    %p94 = por %p92, %p93
    %p95 = scmp.ne.s32.totalorder %s87, %s90
    %p96 = scmp.eq.s32.totalorder %s9, 0
    %p97 = por %p95, %p96
    %p98 = scmp.ne.s32.totalorder %s87, %s90
    %p99 = scmp.eq.s32.totalorder %s14, 1
    %p100 = por %p98, %p99
    %p101 = scmp.ne.s32.totalorder %s90, %s91
    %p102 = scmp.eq.s32.totalorder %s14, 0
    %p103 = por %p101, %p102
    %p104 = scmp.ne.s32.totalorder %s90, %s91
    %p105 = scmp.eq.s32.totalorder %s15, 1
    %p106 = por %p104, %p105
    %p108 = scmp.ne.s32.totalorder %s91, %s107
    %p109 = scmp.eq.s32.totalorder %s15, 0
    %p110 = por %p108, %p109
    %p111 = scmp.le.s32.totalorder 1, %s9
    %p112 = scmp.lt.s32.totalorder %s9, 3
    %p113 = pnand %p111, %p112
    %p114 = pneg %p113
    // Predicated region
    $region9: #{convnet_forward.4} parent=5 // pred_check
      _
    $region10: #{convnet_forward.4} parent=5 // pred_check_branch
      %116 = sbr.rel (%p113) target = $region12
    $region11: #{convnet_forward.4} parent=5 // pred_region
      %s117 = ssub.s32 %s9, 1
      // Predicated region
      $region13: #{convnet_forward.4} parent=11 // pred_check
        %p118 = pneg %p56
      $region14: #{convnet_forward.4} parent=11 // pred_check_branch
        %120 = sbr.rel (%p118) target = $region16
      $region15: #{convnet_forward.4} parent=11 // pred_region
        _
      $region16: #{convnet_forward.4} parent=11 // pred_fallthru
        _
      // Predicated region
      $region17: #{convnet_forward.4} parent=11 // pred_check
        %p121 = pneg %p77
      $region18: #{convnet_forward.4} parent=11 // pred_check_branch
        %123 = sbr.rel (%p121) target = $region20
      $region19: #{convnet_forward.4} parent=11 // pred_region
        _
      $region20: #{convnet_forward.4} parent=11 // pred_fallthru
        _
    $region12: #{convnet_forward.4} parent=5 // pred_fallthru
      _
    %p124 = scmp.lt.s32.totalorder %s9, 2
    // Predicated region
    $region21: #{convnet_forward.4} parent=5 // pred_check
      %p125 = pneg %p124
    $region22: #{convnet_forward.4} parent=5 // pred_check_branch
      %127 = sbr.rel (%p125) target = $region24
    $region23: #{convnet_forward.4} parent=5 // pred_region
      // Predicated region
      $region25: #{convnet_forward.4} parent=23 // pred_check
        %p128 = pneg %p29
      $region26: #{convnet_forward.4} parent=23 // pred_check_branch
        %130 = sbr.rel (%p128) target = $region28
      $region27: #{convnet_forward.4} parent=23 // pred_region
        %s131 = smul.u32 128, %s9
        %p132 = scmp.lt.s32.totalorder %s131, 255
        %s133 = scalar_select %p132, %s131, 255
        %s134 = smul.addr %s133, 8
        %s135 = scalar_lea.vmem %s0, %s134
        %s136 = smul.u32 128, %s9
      $region28: #{convnet_forward.4} parent=23 // pred_fallthru
        _
    $region24: #{convnet_forward.4} parent=5 // pred_fallthru
      _
    %p137 = scmp.le.s32.totalorder 1, %s9
    %p138 = scmp.lt.s32.totalorder %s9, 3
    %p139 = pnand %p137, %p138
    %p140 = pneg %p139
    // Predicated region
    $region29: #{convnet_forward.4} parent=5 // pred_check
      _
    $region30: #{convnet_forward.4} parent=5 // pred_check_branch
      %142 = sbr.rel (%p139) target = $region32
    $region31: #{convnet_forward.4} parent=5 // pred_region
      %s143 = ssub.s32 %s9, 1
      %s144 = smul.u32 128, %s14
      %p145 = scmp.lt.s32.totalorder %s144, 255
      %s146 = scalar_select %p145, %s144, 255
      %s147 = smul.addr %s146, 8
      %s148 = scalar_lea.vmem %s0, %s147
      %p149 = pneg %p35
      %p150 = pneg %p32
      %p151 = pneg %p56
      %p152 = pneg %p53
      %p153 = pneg %p77
      %p154 = pneg %p74
      %p155 = pneg %p103
      %p156 = pneg %p100
      %s157 = smul.u32 32, %s14
      %p158 = scmp.lt.s32.totalorder %s157, 63
      %s159 = scalar_select %p158, %s157, 63
      %s160 = smul.addr %s159, 8
      %s161 = scalar_lea.vmem %s3, %s160
      %s162 = smul.u32 128, %s14
      %p163 = scmp.lt.s32.totalorder %s162, 255
      %s164 = scalar_select %p163, %s162, 255
      %s165 = smul.addr %s164, 8
      %s166 = scalar_lea.vmem %s0, %s165
      %s167 = smul.u32 128, %s14
      %s168 = smul.u32 32, %s14
      %p169 = scmp.lt.s32.totalorder %s168, 63
      %s170 = scalar_select %p169, %s168, 63
      %s171 = smul.addr %s170, 8
      %s172 = scalar_lea.vmem %s3, %s171
      %s173 = smul.u32 32, %s14
      %v174 = vld [vmem:[%s1] sm:$0xff]
      %v175 = vld [vmem:[%s1 + $0x8] sm:$0xff]
      %v176 = vld [vmem:[%s1 + $0x10] sm:$0xff]
      %v177 = vld [vmem:[%s1 + $0x18] sm:$0xff]
      %v178 = vld [vmem:[%s1 + $0x20] sm:$0xff]
      %v179 = vld [vmem:[%s1 + $0x28] sm:$0xff]
      %v180 = vld [vmem:[%s1 + $0x30] sm:$0xff]
      %v181 = vld [vmem:[%s1 + $0x38] sm:$0xff]
      %v182 = vld [vmem:[%s1 + $0x40] sm:$0xff]
      %v183 = vld [vmem:[%s1 + $0x48] sm:$0xff]
      %v184 = vld [vmem:[%s1 + $0x50] sm:$0xff]
      %v185 = vld [vmem:[%s1 + $0x58] sm:$0xff]
      %v186 = vld [vmem:[%s1 + $0x60] sm:$0xff]
      %v187 = vld [vmem:[%s1 + $0x68] sm:$0xff]
      %v188 = vld [vmem:[%s1 + $0x70] sm:$0xff]
      %v189 = vld [vmem:[%s1 + $0x78] sm:$0xff]
      %v190 = vld [vmem:[%s2] sm:$0x1]
      %v191 = vld [vmem:[%s166] sm:$0xff]
      %v192 = vld [vmem:[%s166 + $0x8] sm:$0xff]
      %v193 = vld [vmem:[%s166 + $0x10] sm:$0xff]
      %v194 = vld [vmem:[%s166 + $0x18] sm:$0xff]
      %v195 = vld [vmem:[%s166 + $0x20] sm:$0xff]
      %v196 = vld [vmem:[%s166 + $0x28] sm:$0xff]
      %v197 = vld [vmem:[%s166 + $0x30] sm:$0xff]
      %v198 = vld [vmem:[%s166 + $0x38] sm:$0xff]
      %v199 = vld [vmem:[%s166 + $0x40] sm:$0xff]
      %v200 = vld [vmem:[%s166 + $0x48] sm:$0xff]
      %v201 = vld [vmem:[%s166 + $0x50] sm:$0xff]
      %v202 = vld [vmem:[%s166 + $0x58] sm:$0xff]
      %v203 = vld [vmem:[%s166 + $0x60] sm:$0xff]
      %v204 = vld [vmem:[%s166 + $0x68] sm:$0xff]
      %v205 = vld [vmem:[%s166 + $0x70] sm:$0xff]
      %v206 = vld [vmem:[%s166 + $0x78] sm:$0xff]
      %v207 = vld [vmem:[%s166 + $0x80] sm:$0xff]
      %v208 = vld [vmem:[%s166 + $0x88] sm:$0xff]
      %v209 = vld [vmem:[%s166 + $0x90] sm:$0xff]
      %v210 = vld [vmem:[%s166 + $0x98] sm:$0xff]
      %v211 = vld [vmem:[%s166 + $0xa0] sm:$0xff]
      %v212 = vld [vmem:[%s166 + $0xa8] sm:$0xff]
      %v213 = vld [vmem:[%s166 + $0xb0] sm:$0xff]
      %v214 = vld [vmem:[%s166 + $0xb8] sm:$0xff]
      %v215 = vld [vmem:[%s166 + $0xc0] sm:$0xff]
      %v216 = vld [vmem:[%s166 + $0xc8] sm:$0xff]
      %v217 = vld [vmem:[%s166 + $0xd0] sm:$0xff]
      %v218 = vld [vmem:[%s166 + $0xd8] sm:$0xff]
      %v219 = vld [vmem:[%s166 + $0xe0] sm:$0xff]
      %v220 = vld [vmem:[%s166 + $0xe8] sm:$0xff]
      %v221 = vld [vmem:[%s166 + $0xf0] sm:$0xff]
      %v222 = vld [vmem:[%s166 + $0xf8] sm:$0xff]
      %v224 = vperm.slane %v190, 0
      %226 = vmatpush.msra.mxu0 %v189
      %227 = vmatpush.msra.mxu0 %v188
      %228 = vmatpush.msra.mxu0 %v187
      %229 = vmatpush.msra.mxu0 %v186
      %230 = vmatpush.msra.mxu0 %v185
      %231 = vmatpush.msra.mxu0 %v184
      %232 = vmatpush.msra.mxu0 %v183
      %233 = vmatpush.msra.mxu0 %v182
      %234 = vmatpush.msra.mxu0 %v181
      %235 = vmatpush.msra.mxu0 %v180
      %236 = vmatpush.msra.mxu0 %v179
      %237 = vmatpush.msra.mxu0 %v178
      %238 = vmatpush.msra.mxu0 %v177
      %239 = vmatpush.msra.mxu0 %v176
      %240 = vmatpush.msra.mxu0 %v175
      %241 = vmatpush.msra.mxu0 %v174
      %242 = vmatmul.f32.gmra.mxu0 %v191
      %v243 = vpop.f32.mrf.mxu0
      %v244 = vadd.f32 %v224, %v243
      %245 = vmatmul.f32.gmra.mxu0 %v192
      %v246 = vpop.f32.mrf.mxu0
      %v247 = vadd.f32 %v224, %v246
      %248 = vmatmul.f32.gmra.mxu0 %v193
      %v249 = vpop.f32.mrf.mxu0
      %v250 = vadd.f32 %v224, %v249
      %251 = vmatmul.f32.gmra.mxu0 %v194
      %v252 = vpop.f32.mrf.mxu0
      %v253 = vadd.f32 %v224, %v252
      %254 = vmatmul.f32.gmra.mxu0 %v195
      %v255 = vpop.f32.mrf.mxu0
      %v256 = vadd.f32 %v224, %v255
      %257 = vmatmul.f32.gmra.mxu0 %v196
      %v258 = vpop.f32.mrf.mxu0
      %v259 = vadd.f32 %v224, %v258
      %260 = vmatmul.f32.gmra.mxu0 %v197
      %v261 = vpop.f32.mrf.mxu0
      %v262 = vadd.f32 %v224, %v261
      %263 = vmatmul.f32.gmra.mxu0 %v198
      %v264 = vpop.f32.mrf.mxu0
      %v265 = vadd.f32 %v224, %v264
      %266 = vmatmul.f32.gmra.mxu0 %v199
      %v267 = vpop.f32.mrf.mxu0
      %v268 = vadd.f32 %v224, %v267
      %269 = vmatmul.f32.gmra.mxu0 %v200
      %v270 = vpop.f32.mrf.mxu0
      %v271 = vadd.f32 %v224, %v270
      %272 = vmatmul.f32.gmra.mxu0 %v201
      %v273 = vpop.f32.mrf.mxu0
      %v274 = vadd.f32 %v224, %v273
      %275 = vmatmul.f32.gmra.mxu0 %v202
      %v276 = vpop.f32.mrf.mxu0
      %v277 = vadd.f32 %v224, %v276
      %278 = vmatmul.f32.gmra.mxu0 %v203
      %v279 = vpop.f32.mrf.mxu0
      %v280 = vadd.f32 %v224, %v279
      %281 = vmatmul.f32.gmra.mxu0 %v204
      %v282 = vpop.f32.mrf.mxu0
      %v283 = vadd.f32 %v224, %v282
      %284 = vmatmul.f32.gmra.mxu0 %v205
      %v285 = vpop.f32.mrf.mxu0
      %v286 = vadd.f32 %v224, %v285
      %287 = vmatmul.f32.gmra.mxu0 %v206
      %v288 = vpop.f32.mrf.mxu0
      %v289 = vadd.f32 %v224, %v288
      %290 = vmatmul.f32.gmra.mxu0 %v207
      %v291 = vpop.f32.mrf.mxu0
      %v292 = vadd.f32 %v224, %v291
      %293 = vmatmul.f32.gmra.mxu0 %v208
      %v294 = vpop.f32.mrf.mxu0
      %v295 = vadd.f32 %v224, %v294
      %296 = vmatmul.f32.gmra.mxu0 %v209
      %v297 = vpop.f32.mrf.mxu0
      %v298 = vadd.f32 %v224, %v297
      %299 = vmatmul.f32.gmra.mxu0 %v210
      %v300 = vpop.f32.mrf.mxu0
      %v301 = vadd.f32 %v224, %v300
      %302 = vmatmul.f32.gmra.mxu0 %v211
      %v303 = vpop.f32.mrf.mxu0
      %v304 = vadd.f32 %v224, %v303
      %305 = vmatmul.f32.gmra.mxu0 %v212
      %v306 = vpop.f32.mrf.mxu0
      %v307 = vadd.f32 %v224, %v306
      %308 = vmatmul.f32.gmra.mxu0 %v213
      %v309 = vpop.f32.mrf.mxu0
      %v310 = vadd.f32 %v224, %v309
      %311 = vmatmul.f32.gmra.mxu0 %v214
      %v312 = vpop.f32.mrf.mxu0
      %v313 = vadd.f32 %v224, %v312
      %314 = vmatmul.f32.gmra.mxu0 %v215
      %v315 = vpop.f32.mrf.mxu0
      %v316 = vadd.f32 %v224, %v315
      %317 = vmatmul.f32.gmra.mxu0 %v216
      %v318 = vpop.f32.mrf.mxu0
      %v319 = vadd.f32 %v224, %v318
      %320 = vmatmul.f32.gmra.mxu0 %v217
      %v321 = vpop.f32.mrf.mxu0
      %v322 = vadd.f32 %v224, %v321
      %323 = vmatmul.f32.gmra.mxu0 %v218
      %v324 = vpop.f32.mrf.mxu0
      %v325 = vadd.f32 %v224, %v324
      %326 = vmatmul.f32.gmra.mxu0 %v219
      %v327 = vpop.f32.mrf.mxu0
      %v328 = vadd.f32 %v224, %v327
      %329 = vmatmul.f32.gmra.mxu0 %v220
      %v330 = vpop.f32.mrf.mxu0
      %v331 = vadd.f32 %v224, %v330
      %332 = vmatmul.f32.gmra.mxu0 %v221
      %v333 = vpop.f32.mrf.mxu0
      %v334 = vadd.f32 %v224, %v333
      %335 = vmatmul.f32.gmra.mxu0 %v222
      %v336 = vpop.f32.mrf.mxu0
      %v337 = vadd.f32 %v224, %v336
      %338 = vdwg.mxu0
      %v339 = vmax.f32 %v244, 0.0
      %v340 = vmax.f32 %v247, 0.0
      %v341 = vmax.f32 %v250, 0.0
      %v342 = vmax.f32 %v253, 0.0
      %v343 = vmax.f32 %v256, 0.0
      %v344 = vmax.f32 %v259, 0.0
      %v345 = vmax.f32 %v262, 0.0
      %v346 = vmax.f32 %v265, 0.0
      %v347 = vmax.f32 %v268, 0.0
      %v348 = vmax.f32 %v271, 0.0
      %v349 = vmax.f32 %v274, 0.0
      %v350 = vmax.f32 %v277, 0.0
      %v351 = vmax.f32 %v280, 0.0
      %v352 = vmax.f32 %v283, 0.0
      %v353 = vmax.f32 %v286, 0.0
      %v354 = vmax.f32 %v289, 0.0
      %v355 = vmax.f32 %v292, 0.0
      %v356 = vmax.f32 %v295, 0.0
      %v357 = vmax.f32 %v298, 0.0
      %v358 = vmax.f32 %v301, 0.0
      %v359 = vmax.f32 %v304, 0.0
      %v360 = vmax.f32 %v307, 0.0
      %v361 = vmax.f32 %v310, 0.0
      %v362 = vmax.f32 %v313, 0.0
      %v363 = vmax.f32 %v316, 0.0
      %v364 = vmax.f32 %v319, 0.0
      %v365 = vmax.f32 %v322, 0.0
      %v366 = vmax.f32 %v325, 0.0
      %v367 = vmax.f32 %v328, 0.0
      %v368 = vmax.f32 %v331, 0.0
      %v369 = vmax.f32 %v334, 0.0
      %v370 = vmax.f32 %v337, 0.0
      %v371 = vld [vmem:[%s166 + $0x100] sm:$0xff]
      %v372 = vld [vmem:[%s166 + $0x108] sm:$0xff]
      %v373 = vld [vmem:[%s166 + $0x110] sm:$0xff]
      %v374 = vld [vmem:[%s166 + $0x118] sm:$0xff]
      %v375 = vld [vmem:[%s166 + $0x120] sm:$0xff]
      %v376 = vld [vmem:[%s166 + $0x128] sm:$0xff]
      %v377 = vld [vmem:[%s166 + $0x130] sm:$0xff]
      %v378 = vld [vmem:[%s166 + $0x138] sm:$0xff]
      %v379 = vld [vmem:[%s166 + $0x140] sm:$0xff]
      %v380 = vld [vmem:[%s166 + $0x148] sm:$0xff]
      %v381 = vld [vmem:[%s166 + $0x150] sm:$0xff]
      %v382 = vld [vmem:[%s166 + $0x158] sm:$0xff]
      %v383 = vld [vmem:[%s166 + $0x160] sm:$0xff]
      %v384 = vld [vmem:[%s166 + $0x168] sm:$0xff]
      %v385 = vld [vmem:[%s166 + $0x170] sm:$0xff]
      %v386 = vld [vmem:[%s166 + $0x178] sm:$0xff]
      %v387 = vld [vmem:[%s166 + $0x180] sm:$0xff]
      %v388 = vld [vmem:[%s166 + $0x188] sm:$0xff]
      %v389 = vld [vmem:[%s166 + $0x190] sm:$0xff]
      %v390 = vld [vmem:[%s166 + $0x198] sm:$0xff]
      %v391 = vld [vmem:[%s166 + $0x1a0] sm:$0xff]
      %v392 = vld [vmem:[%s166 + $0x1a8] sm:$0xff]
      %v393 = vld [vmem:[%s166 + $0x1b0] sm:$0xff]
      %v394 = vld [vmem:[%s166 + $0x1b8] sm:$0xff]
      %v395 = vld [vmem:[%s166 + $0x1c0] sm:$0xff]
      %v396 = vld [vmem:[%s166 + $0x1c8] sm:$0xff]
      %v397 = vld [vmem:[%s166 + $0x1d0] sm:$0xff]
      %v398 = vld [vmem:[%s166 + $0x1d8] sm:$0xff]
      %v399 = vld [vmem:[%s166 + $0x1e0] sm:$0xff]
      %v400 = vld [vmem:[%s166 + $0x1e8] sm:$0xff]
      %v401 = vld [vmem:[%s166 + $0x1f0] sm:$0xff]
      %v402 = vld [vmem:[%s166 + $0x1f8] sm:$0xff]
      %403 = vmatpush.msra.mxu0 %v189
      %404 = vmatpush.msra.mxu0 %v188
      %405 = vmatpush.msra.mxu0 %v187
      %406 = vmatpush.msra.mxu0 %v186
      %407 = vmatpush.msra.mxu0 %v185
      %408 = vmatpush.msra.mxu0 %v184
      %409 = vmatpush.msra.mxu0 %v183
      %410 = vmatpush.msra.mxu0 %v182
      %411 = vmatpush.msra.mxu0 %v181
      %412 = vmatpush.msra.mxu0 %v180
      %413 = vmatpush.msra.mxu0 %v179
      %414 = vmatpush.msra.mxu0 %v178
      %415 = vmatpush.msra.mxu0 %v177
      %416 = vmatpush.msra.mxu0 %v176
      %417 = vmatpush.msra.mxu0 %v175
      %418 = vmatpush.msra.mxu0 %v174
      %419 = vmatmul.f32.gmra.mxu0 %v371
      %v420 = vpop.f32.mrf.mxu0
      %v421 = vadd.f32 %v224, %v420
      %422 = vmatmul.f32.gmra.mxu0 %v372
      %v423 = vpop.f32.mrf.mxu0
      %v424 = vadd.f32 %v224, %v423
      %425 = vmatmul.f32.gmra.mxu0 %v373
      %v426 = vpop.f32.mrf.mxu0
      %v427 = vadd.f32 %v224, %v426
      %428 = vmatmul.f32.gmra.mxu0 %v374
      %v429 = vpop.f32.mrf.mxu0
      %v430 = vadd.f32 %v224, %v429
      %431 = vmatmul.f32.gmra.mxu0 %v375
      %v432 = vpop.f32.mrf.mxu0
      %v433 = vadd.f32 %v224, %v432
      %434 = vmatmul.f32.gmra.mxu0 %v376
      %v435 = vpop.f32.mrf.mxu0
      %v436 = vadd.f32 %v224, %v435
      %437 = vmatmul.f32.gmra.mxu0 %v377
      %v438 = vpop.f32.mrf.mxu0
      %v439 = vadd.f32 %v224, %v438
      %440 = vmatmul.f32.gmra.mxu0 %v378
      %v441 = vpop.f32.mrf.mxu0
      %v442 = vadd.f32 %v224, %v441
      %443 = vmatmul.f32.gmra.mxu0 %v379
      %v444 = vpop.f32.mrf.mxu0
      %v445 = vadd.f32 %v224, %v444
      %446 = vmatmul.f32.gmra.mxu0 %v380
      %v447 = vpop.f32.mrf.mxu0
      %v448 = vadd.f32 %v224, %v447
      %449 = vmatmul.f32.gmra.mxu0 %v381
      %v450 = vpop.f32.mrf.mxu0
      %v451 = vadd.f32 %v224, %v450
      %452 = vmatmul.f32.gmra.mxu0 %v382
      %v453 = vpop.f32.mrf.mxu0
      %v454 = vadd.f32 %v224, %v453
      %455 = vmatmul.f32.gmra.mxu0 %v383
      %v456 = vpop.f32.mrf.mxu0
      %v457 = vadd.f32 %v224, %v456
      %458 = vmatmul.f32.gmra.mxu0 %v384
      %v459 = vpop.f32.mrf.mxu0
      %v460 = vadd.f32 %v224, %v459
      %461 = vmatmul.f32.gmra.mxu0 %v385
      %v462 = vpop.f32.mrf.mxu0
      %v463 = vadd.f32 %v224, %v462
      %464 = vmatmul.f32.gmra.mxu0 %v386
      %v465 = vpop.f32.mrf.mxu0
      %v466 = vadd.f32 %v224, %v465
      %467 = vmatmul.f32.gmra.mxu0 %v387
      %v468 = vpop.f32.mrf.mxu0
      %v469 = vadd.f32 %v224, %v468
      %470 = vmatmul.f32.gmra.mxu0 %v388
      %v471 = vpop.f32.mrf.mxu0
      %v472 = vadd.f32 %v224, %v471
      %473 = vmatmul.f32.gmra.mxu0 %v389
      %v474 = vpop.f32.mrf.mxu0
      %v475 = vadd.f32 %v224, %v474
      %476 = vmatmul.f32.gmra.mxu0 %v390
      %v477 = vpop.f32.mrf.mxu0
      %v478 = vadd.f32 %v224, %v477
      %479 = vmatmul.f32.gmra.mxu0 %v391
      %v480 = vpop.f32.mrf.mxu0
      %v481 = vadd.f32 %v224, %v480
      %482 = vmatmul.f32.gmra.mxu0 %v392
      %v483 = vpop.f32.mrf.mxu0
      %v484 = vadd.f32 %v224, %v483
      %485 = vmatmul.f32.gmra.mxu0 %v393
      %v486 = vpop.f32.mrf.mxu0
      %v487 = vadd.f32 %v224, %v486
      %488 = vmatmul.f32.gmra.mxu0 %v394
      %v489 = vpop.f32.mrf.mxu0
      %v490 = vadd.f32 %v224, %v489
      %491 = vmatmul.f32.gmra.mxu0 %v395
      %v492 = vpop.f32.mrf.mxu0
      %v493 = vadd.f32 %v224, %v492
      %494 = vmatmul.f32.gmra.mxu0 %v396
      %v495 = vpop.f32.mrf.mxu0
      %v496 = vadd.f32 %v224, %v495
      %497 = vmatmul.f32.gmra.mxu0 %v397
      %v498 = vpop.f32.mrf.mxu0
      %v499 = vadd.f32 %v224, %v498
      %500 = vmatmul.f32.gmra.mxu0 %v398
      %v501 = vpop.f32.mrf.mxu0
      %v502 = vadd.f32 %v224, %v501
      %503 = vmatmul.f32.gmra.mxu0 %v399
      %v504 = vpop.f32.mrf.mxu0
      %v505 = vadd.f32 %v224, %v504
      %506 = vmatmul.f32.gmra.mxu0 %v400
      %v507 = vpop.f32.mrf.mxu0
      %v508 = vadd.f32 %v224, %v507
      %509 = vmatmul.f32.gmra.mxu0 %v401
      %v510 = vpop.f32.mrf.mxu0
      %v511 = vadd.f32 %v224, %v510
      %512 = vmatmul.f32.gmra.mxu0 %v402
      %v513 = vpop.f32.mrf.mxu0
      %v514 = vadd.f32 %v224, %v513
      %515 = vdwg.mxu0
      %v516 = vmax.f32 %v421, 0.0
      %v517 = vmax.f32 %v424, 0.0
      %v518 = vmax.f32 %v427, 0.0
      %v519 = vmax.f32 %v430, 0.0
      %v520 = vmax.f32 %v433, 0.0
      %v521 = vmax.f32 %v436, 0.0
      %v522 = vmax.f32 %v439, 0.0
      %v523 = vmax.f32 %v442, 0.0
      %v524 = vmax.f32 %v445, 0.0
      %v525 = vmax.f32 %v448, 0.0
      %v526 = vmax.f32 %v451, 0.0
      %v527 = vmax.f32 %v454, 0.0
      %v528 = vmax.f32 %v457, 0.0
      %v529 = vmax.f32 %v460, 0.0
      %v530 = vmax.f32 %v463, 0.0
      %v531 = vmax.f32 %v466, 0.0
      %v532 = vmax.f32 %v469, 0.0
      %v533 = vmax.f32 %v472, 0.0
      %v534 = vmax.f32 %v475, 0.0
      %v535 = vmax.f32 %v478, 0.0
      %v536 = vmax.f32 %v481, 0.0
      %v537 = vmax.f32 %v484, 0.0
      %v538 = vmax.f32 %v487, 0.0
      %v539 = vmax.f32 %v490, 0.0
      %v540 = vmax.f32 %v493, 0.0
      %v541 = vmax.f32 %v496, 0.0
      %v542 = vmax.f32 %v499, 0.0
      %v543 = vmax.f32 %v502, 0.0
      %v544 = vmax.f32 %v505, 0.0
      %v545 = vmax.f32 %v508, 0.0
      %v546 = vmax.f32 %v511, 0.0
      %v547 = vmax.f32 %v514, 0.0
      %v548 = vmax.f32 %v339, %v516
      %v549 = vmax.f32 %v340, %v517
      %v550 = vmax.f32 %v341, %v518
      %v551 = vmax.f32 %v342, %v519
      %v552 = vmax.f32 %v343, %v520
      %v553 = vmax.f32 %v344, %v521
      %v554 = vmax.f32 %v345, %v522
      %v555 = vmax.f32 %v346, %v523
      %v556 = vmax.f32 %v347, %v524
      %v557 = vmax.f32 %v348, %v525
      %v558 = vmax.f32 %v349, %v526
      %v559 = vmax.f32 %v350, %v527
      %v560 = vmax.f32 %v351, %v528
      %v561 = vmax.f32 %v352, %v529
      %v562 = vmax.f32 %v353, %v530
      %v563 = vmax.f32 %v354, %v531
      %v564 = vmax.f32 %v355, %v532
      %v565 = vmax.f32 %v356, %v533
      %v566 = vmax.f32 %v357, %v534
      %v567 = vmax.f32 %v358, %v535
      %v568 = vmax.f32 %v359, %v536
      %v569 = vmax.f32 %v360, %v537
      %v570 = vmax.f32 %v361, %v538
      %v571 = vmax.f32 %v362, %v539
      %v572 = vmax.f32 %v363, %v540
      %v573 = vmax.f32 %v364, %v541
      %v574 = vmax.f32 %v365, %v542
      %v575 = vmax.f32 %v366, %v543
      %v576 = vmax.f32 %v367, %v544
      %v577 = vmax.f32 %v368, %v545
      %v578 = vmax.f32 %v369, %v546
      %v579 = vmax.f32 %v370, %v547
      %v580 = vld [vmem:[%s166 + $0x200] sm:$0xff]
      %v581 = vld [vmem:[%s166 + $0x208] sm:$0xff]
      %v582 = vld [vmem:[%s166 + $0x210] sm:$0xff]
      %v583 = vld [vmem:[%s166 + $0x218] sm:$0xff]
      %v584 = vld [vmem:[%s166 + $0x220] sm:$0xff]
      %v585 = vld [vmem:[%s166 + $0x228] sm:$0xff]
      %v586 = vld [vmem:[%s166 + $0x230] sm:$0xff]
      %v587 = vld [vmem:[%s166 + $0x238] sm:$0xff]
      %v588 = vld [vmem:[%s166 + $0x240] sm:$0xff]
      %v589 = vld [vmem:[%s166 + $0x248] sm:$0xff]
      %v590 = vld [vmem:[%s166 + $0x250] sm:$0xff]
      %v591 = vld [vmem:[%s166 + $0x258] sm:$0xff]
      %v592 = vld [vmem:[%s166 + $0x260] sm:$0xff]
      %v593 = vld [vmem:[%s166 + $0x268] sm:$0xff]
      %v594 = vld [vmem:[%s166 + $0x270] sm:$0xff]
      %v595 = vld [vmem:[%s166 + $0x278] sm:$0xff]
      %v596 = vld [vmem:[%s166 + $0x280] sm:$0xff]
      %v597 = vld [vmem:[%s166 + $0x288] sm:$0xff]
      %v598 = vld [vmem:[%s166 + $0x290] sm:$0xff]
      %v599 = vld [vmem:[%s166 + $0x298] sm:$0xff]
      %v600 = vld [vmem:[%s166 + $0x2a0] sm:$0xff]
      %v601 = vld [vmem:[%s166 + $0x2a8] sm:$0xff]
      %v602 = vld [vmem:[%s166 + $0x2b0] sm:$0xff]
      %v603 = vld [vmem:[%s166 + $0x2b8] sm:$0xff]
      %v604 = vld [vmem:[%s166 + $0x2c0] sm:$0xff]
      %v605 = vld [vmem:[%s166 + $0x2c8] sm:$0xff]
      %v606 = vld [vmem:[%s166 + $0x2d0] sm:$0xff]
      %v607 = vld [vmem:[%s166 + $0x2d8] sm:$0xff]
      %v608 = vld [vmem:[%s166 + $0x2e0] sm:$0xff]
      %v609 = vld [vmem:[%s166 + $0x2e8] sm:$0xff]
      %v610 = vld [vmem:[%s166 + $0x2f0] sm:$0xff]
      %v611 = vld [vmem:[%s166 + $0x2f8] sm:$0xff]
      %612 = vmatpush.msra.mxu0 %v189
      %613 = vmatpush.msra.mxu0 %v188
      %614 = vmatpush.msra.mxu0 %v187
      %615 = vmatpush.msra.mxu0 %v186
      %616 = vmatpush.msra.mxu0 %v185
      %617 = vmatpush.msra.mxu0 %v184
      %618 = vmatpush.msra.mxu0 %v183
      %619 = vmatpush.msra.mxu0 %v182
      %620 = vmatpush.msra.mxu0 %v181
      %621 = vmatpush.msra.mxu0 %v180
      %622 = vmatpush.msra.mxu0 %v179
      %623 = vmatpush.msra.mxu0 %v178
      %624 = vmatpush.msra.mxu0 %v177
      %625 = vmatpush.msra.mxu0 %v176
      %626 = vmatpush.msra.mxu0 %v175
      %627 = vmatpush.msra.mxu0 %v174
      %628 = vmatmul.f32.gmra.mxu0 %v580
      %v629 = vpop.f32.mrf.mxu0
      %v630 = vadd.f32 %v224, %v629
      %631 = vmatmul.f32.gmra.mxu0 %v581
      %v632 = vpop.f32.mrf.mxu0
      %v633 = vadd.f32 %v224, %v632
      %634 = vmatmul.f32.gmra.mxu0 %v582
      %v635 = vpop.f32.mrf.mxu0
      %v636 = vadd.f32 %v224, %v635
      %637 = vmatmul.f32.gmra.mxu0 %v583
      %v638 = vpop.f32.mrf.mxu0
      %v639 = vadd.f32 %v224, %v638
      %640 = vmatmul.f32.gmra.mxu0 %v584
      %v641 = vpop.f32.mrf.mxu0
      %v642 = vadd.f32 %v224, %v641
      %643 = vmatmul.f32.gmra.mxu0 %v585
      %v644 = vpop.f32.mrf.mxu0
      %v645 = vadd.f32 %v224, %v644
      %646 = vmatmul.f32.gmra.mxu0 %v586
      %v647 = vpop.f32.mrf.mxu0
      %v648 = vadd.f32 %v224, %v647
      %649 = vmatmul.f32.gmra.mxu0 %v587
      %v650 = vpop.f32.mrf.mxu0
      %v651 = vadd.f32 %v224, %v650
      %652 = vmatmul.f32.gmra.mxu0 %v588
      %v653 = vpop.f32.mrf.mxu0
      %v654 = vadd.f32 %v224, %v653
      %655 = vmatmul.f32.gmra.mxu0 %v589
      %v656 = vpop.f32.mrf.mxu0
      %v657 = vadd.f32 %v224, %v656
      %658 = vmatmul.f32.gmra.mxu0 %v590
      %v659 = vpop.f32.mrf.mxu0
      %v660 = vadd.f32 %v224, %v659
      %661 = vmatmul.f32.gmra.mxu0 %v591
      %v662 = vpop.f32.mrf.mxu0
      %v663 = vadd.f32 %v224, %v662
      %664 = vmatmul.f32.gmra.mxu0 %v592
      %v665 = vpop.f32.mrf.mxu0
      %v666 = vadd.f32 %v224, %v665
      %667 = vmatmul.f32.gmra.mxu0 %v593
      %v668 = vpop.f32.mrf.mxu0
      %v669 = vadd.f32 %v224, %v668
      %670 = vmatmul.f32.gmra.mxu0 %v594
      %v671 = vpop.f32.mrf.mxu0
      %v672 = vadd.f32 %v224, %v671
      %673 = vmatmul.f32.gmra.mxu0 %v595
      %v674 = vpop.f32.mrf.mxu0
      %v675 = vadd.f32 %v224, %v674
      %676 = vmatmul.f32.gmra.mxu0 %v596
      %v677 = vpop.f32.mrf.mxu0
      %v678 = vadd.f32 %v224, %v677
      %679 = vmatmul.f32.gmra.mxu0 %v597
      %v680 = vpop.f32.mrf.mxu0
      %v681 = vadd.f32 %v224, %v680
      %682 = vmatmul.f32.gmra.mxu0 %v598
      %v683 = vpop.f32.mrf.mxu0
      %v684 = vadd.f32 %v224, %v683
      %685 = vmatmul.f32.gmra.mxu0 %v599
      %v686 = vpop.f32.mrf.mxu0
      %v687 = vadd.f32 %v224, %v686
      %688 = vmatmul.f32.gmra.mxu0 %v600
      %v689 = vpop.f32.mrf.mxu0
      %v690 = vadd.f32 %v224, %v689
      %691 = vmatmul.f32.gmra.mxu0 %v601
      %v692 = vpop.f32.mrf.mxu0
      %v693 = vadd.f32 %v224, %v692
      %694 = vmatmul.f32.gmra.mxu0 %v602
      %v695 = vpop.f32.mrf.mxu0
      %v696 = vadd.f32 %v224, %v695
      %697 = vmatmul.f32.gmra.mxu0 %v603
      %v698 = vpop.f32.mrf.mxu0
      %v699 = vadd.f32 %v224, %v698
      %700 = vmatmul.f32.gmra.mxu0 %v604
      %v701 = vpop.f32.mrf.mxu0
      %v702 = vadd.f32 %v224, %v701
      %703 = vmatmul.f32.gmra.mxu0 %v605
      %v704 = vpop.f32.mrf.mxu0
      %v705 = vadd.f32 %v224, %v704
      %706 = vmatmul.f32.gmra.mxu0 %v606
      %v707 = vpop.f32.mrf.mxu0
      %v708 = vadd.f32 %v224, %v707
      %709 = vmatmul.f32.gmra.mxu0 %v607
      %v710 = vpop.f32.mrf.mxu0
      %v711 = vadd.f32 %v224, %v710
      %712 = vmatmul.f32.gmra.mxu0 %v608
      %v713 = vpop.f32.mrf.mxu0
      %v714 = vadd.f32 %v224, %v713
      %715 = vmatmul.f32.gmra.mxu0 %v609
      %v716 = vpop.f32.mrf.mxu0
      %v717 = vadd.f32 %v224, %v716
      %718 = vmatmul.f32.gmra.mxu0 %v610
      %v719 = vpop.f32.mrf.mxu0
      %v720 = vadd.f32 %v224, %v719
      %721 = vmatmul.f32.gmra.mxu0 %v611
      %v722 = vpop.f32.mrf.mxu0
      %v723 = vadd.f32 %v224, %v722
      %724 = vdwg.mxu0
      %v725 = vmax.f32 %v630, 0.0
      %v726 = vmax.f32 %v633, 0.0
      %v727 = vmax.f32 %v636, 0.0
      %v728 = vmax.f32 %v639, 0.0
      %v729 = vmax.f32 %v642, 0.0
      %v730 = vmax.f32 %v645, 0.0
      %v731 = vmax.f32 %v648, 0.0
      %v732 = vmax.f32 %v651, 0.0
      %v733 = vmax.f32 %v654, 0.0
      %v734 = vmax.f32 %v657, 0.0
      %v735 = vmax.f32 %v660, 0.0
      %v736 = vmax.f32 %v663, 0.0
      %v737 = vmax.f32 %v666, 0.0
      %v738 = vmax.f32 %v669, 0.0
      %v739 = vmax.f32 %v672, 0.0
      %v740 = vmax.f32 %v675, 0.0
      %v741 = vmax.f32 %v678, 0.0
      %v742 = vmax.f32 %v681, 0.0
      %v743 = vmax.f32 %v684, 0.0
      %v744 = vmax.f32 %v687, 0.0
      %v745 = vmax.f32 %v690, 0.0
      %v746 = vmax.f32 %v693, 0.0
      %v747 = vmax.f32 %v696, 0.0
      %v748 = vmax.f32 %v699, 0.0
      %v749 = vmax.f32 %v702, 0.0
      %v750 = vmax.f32 %v705, 0.0
      %v751 = vmax.f32 %v708, 0.0
      %v752 = vmax.f32 %v711, 0.0
      %v753 = vmax.f32 %v714, 0.0
      %v754 = vmax.f32 %v717, 0.0
      %v755 = vmax.f32 %v720, 0.0
      %v756 = vmax.f32 %v723, 0.0
      %v757 = vmax.f32 %v548, %v725
      %v758 = vmax.f32 %v549, %v726
      %v759 = vmax.f32 %v550, %v727
      %v760 = vmax.f32 %v551, %v728
      %v761 = vmax.f32 %v552, %v729
      %v762 = vmax.f32 %v553, %v730
      %v763 = vmax.f32 %v554, %v731
      %v764 = vmax.f32 %v555, %v732
      %v765 = vmax.f32 %v556, %v733
      %v766 = vmax.f32 %v557, %v734
      %v767 = vmax.f32 %v558, %v735
      %v768 = vmax.f32 %v559, %v736
      %v769 = vmax.f32 %v560, %v737
      %v770 = vmax.f32 %v561, %v738
      %v771 = vmax.f32 %v562, %v739
      %v772 = vmax.f32 %v563, %v740
      %v773 = vmax.f32 %v564, %v741
      %v774 = vmax.f32 %v565, %v742
      %v775 = vmax.f32 %v566, %v743
      %v776 = vmax.f32 %v567, %v744
      %v777 = vmax.f32 %v568, %v745
      %v778 = vmax.f32 %v569, %v746
      %v779 = vmax.f32 %v570, %v747
      %v780 = vmax.f32 %v571, %v748
      %v781 = vmax.f32 %v572, %v749
      %v782 = vmax.f32 %v573, %v750
      %v783 = vmax.f32 %v574, %v751
      %v784 = vmax.f32 %v575, %v752
      %v785 = vmax.f32 %v576, %v753
      %v786 = vmax.f32 %v577, %v754
      %v787 = vmax.f32 %v578, %v755
      %v788 = vmax.f32 %v579, %v756
      %v789 = vld [vmem:[%s166 + $0x300] sm:$0xff]
      %v790 = vld [vmem:[%s166 + $0x308] sm:$0xff]
      %v791 = vld [vmem:[%s166 + $0x310] sm:$0xff]
      %v792 = vld [vmem:[%s166 + $0x318] sm:$0xff]
      %v793 = vld [vmem:[%s166 + $0x320] sm:$0xff]
      %v794 = vld [vmem:[%s166 + $0x328] sm:$0xff]
      %v795 = vld [vmem:[%s166 + $0x330] sm:$0xff]
      %v796 = vld [vmem:[%s166 + $0x338] sm:$0xff]
      %v797 = vld [vmem:[%s166 + $0x340] sm:$0xff]
      %v798 = vld [vmem:[%s166 + $0x348] sm:$0xff]
      %v799 = vld [vmem:[%s166 + $0x350] sm:$0xff]
      %v800 = vld [vmem:[%s166 + $0x358] sm:$0xff]
      %v801 = vld [vmem:[%s166 + $0x360] sm:$0xff]
      %v802 = vld [vmem:[%s166 + $0x368] sm:$0xff]
      %v803 = vld [vmem:[%s166 + $0x370] sm:$0xff]
      %v804 = vld [vmem:[%s166 + $0x378] sm:$0xff]
      %v805 = vld [vmem:[%s166 + $0x380] sm:$0xff]
      %v806 = vld [vmem:[%s166 + $0x388] sm:$0xff]
      %v807 = vld [vmem:[%s166 + $0x390] sm:$0xff]
      %v808 = vld [vmem:[%s166 + $0x398] sm:$0xff]
      %v809 = vld [vmem:[%s166 + $0x3a0] sm:$0xff]
      %v810 = vld [vmem:[%s166 + $0x3a8] sm:$0xff]
      %v811 = vld [vmem:[%s166 + $0x3b0] sm:$0xff]
      %v812 = vld [vmem:[%s166 + $0x3b8] sm:$0xff]
      %v813 = vld [vmem:[%s166 + $0x3c0] sm:$0xff]
      %v814 = vld [vmem:[%s166 + $0x3c8] sm:$0xff]
      %v815 = vld [vmem:[%s166 + $0x3d0] sm:$0xff]
      %v816 = vld [vmem:[%s166 + $0x3d8] sm:$0xff]
      %v817 = vld [vmem:[%s166 + $0x3e0] sm:$0xff]
      %v818 = vld [vmem:[%s166 + $0x3e8] sm:$0xff]
      %v819 = vld [vmem:[%s166 + $0x3f0] sm:$0xff]
      %v820 = vld [vmem:[%s166 + $0x3f8] sm:$0xff]
      %821 = vmatpush.msra.mxu0 %v189
      %822 = vmatpush.msra.mxu0 %v188
      %823 = vmatpush.msra.mxu0 %v187
      %824 = vmatpush.msra.mxu0 %v186
      %825 = vmatpush.msra.mxu0 %v185
      %826 = vmatpush.msra.mxu0 %v184
      %827 = vmatpush.msra.mxu0 %v183
      %828 = vmatpush.msra.mxu0 %v182
      %829 = vmatpush.msra.mxu0 %v181
      %830 = vmatpush.msra.mxu0 %v180
      %831 = vmatpush.msra.mxu0 %v179
      %832 = vmatpush.msra.mxu0 %v178
      %833 = vmatpush.msra.mxu0 %v177
      %834 = vmatpush.msra.mxu0 %v176
      %835 = vmatpush.msra.mxu0 %v175
      %836 = vmatpush.msra.mxu0 %v174
      %837 = vmatmul.f32.gmra.mxu0 %v789
      %v838 = vpop.f32.mrf.mxu0
      %v839 = vadd.f32 %v224, %v838
      %840 = vmatmul.f32.gmra.mxu0 %v790
      %v841 = vpop.f32.mrf.mxu0
      %v842 = vadd.f32 %v224, %v841
      %843 = vmatmul.f32.gmra.mxu0 %v791
      %v844 = vpop.f32.mrf.mxu0
      %v845 = vadd.f32 %v224, %v844
      %846 = vmatmul.f32.gmra.mxu0 %v792
      %v847 = vpop.f32.mrf.mxu0
      %v848 = vadd.f32 %v224, %v847
      %849 = vmatmul.f32.gmra.mxu0 %v793
      %v850 = vpop.f32.mrf.mxu0
      %v851 = vadd.f32 %v224, %v850
      %852 = vmatmul.f32.gmra.mxu0 %v794
      %v853 = vpop.f32.mrf.mxu0
      %v854 = vadd.f32 %v224, %v853
      %855 = vmatmul.f32.gmra.mxu0 %v795
      %v856 = vpop.f32.mrf.mxu0
      %v857 = vadd.f32 %v224, %v856
      %858 = vmatmul.f32.gmra.mxu0 %v796
      %v859 = vpop.f32.mrf.mxu0
      %v860 = vadd.f32 %v224, %v859
      %861 = vmatmul.f32.gmra.mxu0 %v797
      %v862 = vpop.f32.mrf.mxu0
      %v863 = vadd.f32 %v224, %v862
      %864 = vmatmul.f32.gmra.mxu0 %v798
      %v865 = vpop.f32.mrf.mxu0
      %v866 = vadd.f32 %v224, %v865
      %867 = vmatmul.f32.gmra.mxu0 %v799
      %v868 = vpop.f32.mrf.mxu0
      %v869 = vadd.f32 %v224, %v868
      %870 = vmatmul.f32.gmra.mxu0 %v800
      %v871 = vpop.f32.mrf.mxu0
      %v872 = vadd.f32 %v224, %v871
      %873 = vmatmul.f32.gmra.mxu0 %v801
      %v874 = vpop.f32.mrf.mxu0
      %v875 = vadd.f32 %v224, %v874
      %876 = vmatmul.f32.gmra.mxu0 %v802
      %v877 = vpop.f32.mrf.mxu0
      %v878 = vadd.f32 %v224, %v877
      %879 = vmatmul.f32.gmra.mxu0 %v803
      %v880 = vpop.f32.mrf.mxu0
      %v881 = vadd.f32 %v224, %v880
      %882 = vmatmul.f32.gmra.mxu0 %v804
      %v883 = vpop.f32.mrf.mxu0
      %v884 = vadd.f32 %v224, %v883
      %885 = vmatmul.f32.gmra.mxu0 %v805
      %v886 = vpop.f32.mrf.mxu0
      %v887 = vadd.f32 %v224, %v886
      %888 = vmatmul.f32.gmra.mxu0 %v806
      %v889 = vpop.f32.mrf.mxu0
      %v890 = vadd.f32 %v224, %v889
      %891 = vmatmul.f32.gmra.mxu0 %v807
      %v892 = vpop.f32.mrf.mxu0
      %v893 = vadd.f32 %v224, %v892
      %894 = vmatmul.f32.gmra.mxu0 %v808
      %v895 = vpop.f32.mrf.mxu0
      %v896 = vadd.f32 %v224, %v895
      %897 = vmatmul.f32.gmra.mxu0 %v809
      %v898 = vpop.f32.mrf.mxu0
      %v899 = vadd.f32 %v224, %v898
      %900 = vmatmul.f32.gmra.mxu0 %v810
      %v901 = vpop.f32.mrf.mxu0
      %v902 = vadd.f32 %v224, %v901
      %903 = vmatmul.f32.gmra.mxu0 %v811
      %v904 = vpop.f32.mrf.mxu0
      %v905 = vadd.f32 %v224, %v904
      %906 = vmatmul.f32.gmra.mxu0 %v812
      %v907 = vpop.f32.mrf.mxu0
      %v908 = vadd.f32 %v224, %v907
      %909 = vmatmul.f32.gmra.mxu0 %v813
      %v910 = vpop.f32.mrf.mxu0
      %v911 = vadd.f32 %v224, %v910
      %912 = vmatmul.f32.gmra.mxu0 %v814
      %v913 = vpop.f32.mrf.mxu0
      %v914 = vadd.f32 %v224, %v913
      %915 = vmatmul.f32.gmra.mxu0 %v815
      %v916 = vpop.f32.mrf.mxu0
      %v917 = vadd.f32 %v224, %v916
      %918 = vmatmul.f32.gmra.mxu0 %v816
      %v919 = vpop.f32.mrf.mxu0
      %v920 = vadd.f32 %v224, %v919
      %921 = vmatmul.f32.gmra.mxu0 %v817
      %v922 = vpop.f32.mrf.mxu0
      %v923 = vadd.f32 %v224, %v922
      %924 = vmatmul.f32.gmra.mxu0 %v818
      %v925 = vpop.f32.mrf.mxu0
      %v926 = vadd.f32 %v224, %v925
      %927 = vmatmul.f32.gmra.mxu0 %v819
      %v928 = vpop.f32.mrf.mxu0
      %v929 = vadd.f32 %v224, %v928
      %930 = vmatmul.f32.gmra.mxu0 %v820
      %v931 = vpop.f32.mrf.mxu0
      %v932 = vadd.f32 %v224, %v931
      %933 = vdwg.mxu0
      %v934 = vmax.f32 %v839, 0.0
      %v935 = vmax.f32 %v842, 0.0
      %v936 = vmax.f32 %v845, 0.0
      %v937 = vmax.f32 %v848, 0.0
      %v938 = vmax.f32 %v851, 0.0
      %v939 = vmax.f32 %v854, 0.0
      %v940 = vmax.f32 %v857, 0.0
      %v941 = vmax.f32 %v860, 0.0
      %v942 = vmax.f32 %v863, 0.0
      %v943 = vmax.f32 %v866, 0.0
      %v944 = vmax.f32 %v869, 0.0
      %v945 = vmax.f32 %v872, 0.0
      %v946 = vmax.f32 %v875, 0.0
      %v947 = vmax.f32 %v878, 0.0
      %v948 = vmax.f32 %v881, 0.0
      %v949 = vmax.f32 %v884, 0.0
      %v950 = vmax.f32 %v887, 0.0
      %v951 = vmax.f32 %v890, 0.0
      %v952 = vmax.f32 %v893, 0.0
      %v953 = vmax.f32 %v896, 0.0
      %v954 = vmax.f32 %v899, 0.0
      %v955 = vmax.f32 %v902, 0.0
      %v956 = vmax.f32 %v905, 0.0
      %v957 = vmax.f32 %v908, 0.0
      %v958 = vmax.f32 %v911, 0.0
      %v959 = vmax.f32 %v914, 0.0
      %v960 = vmax.f32 %v917, 0.0
      %v961 = vmax.f32 %v920, 0.0
      %v962 = vmax.f32 %v923, 0.0
      %v963 = vmax.f32 %v926, 0.0
      %v964 = vmax.f32 %v929, 0.0
      %v965 = vmax.f32 %v932, 0.0
      %v966 = vmax.f32 %v757, %v934
      %v967 = vmax.f32 %v758, %v935
      %v968 = vmax.f32 %v759, %v936
      %v969 = vmax.f32 %v760, %v937
      %v970 = vmax.f32 %v761, %v938
      %v971 = vmax.f32 %v762, %v939
      %v972 = vmax.f32 %v763, %v940
      %v973 = vmax.f32 %v764, %v941
      %v974 = vmax.f32 %v765, %v942
      %v975 = vmax.f32 %v766, %v943
      %v976 = vmax.f32 %v767, %v944
      %v977 = vmax.f32 %v768, %v945
      %v978 = vmax.f32 %v769, %v946
      %v979 = vmax.f32 %v770, %v947
      %v980 = vmax.f32 %v771, %v948
      %v981 = vmax.f32 %v772, %v949
      %v982 = vmax.f32 %v773, %v950
      %v983 = vmax.f32 %v774, %v951
      %v984 = vmax.f32 %v775, %v952
      %v985 = vmax.f32 %v776, %v953
      %v986 = vmax.f32 %v777, %v954
      %v987 = vmax.f32 %v778, %v955
      %v988 = vmax.f32 %v779, %v956
      %v989 = vmax.f32 %v780, %v957
      %v990 = vmax.f32 %v781, %v958
      %v991 = vmax.f32 %v782, %v959
      %v992 = vmax.f32 %v783, %v960
      %v993 = vmax.f32 %v784, %v961
      %v994 = vmax.f32 %v785, %v962
      %v995 = vmax.f32 %v786, %v963
      %v996 = vmax.f32 %v787, %v964
      %v997 = vmax.f32 %v788, %v965
      %998 = vst [vmem:[%s172] sm:$0xff] %v966
      %999 = vst [vmem:[%s172 + $0x8] sm:$0xff] %v967
      %1000 = vst [vmem:[%s172 + $0x10] sm:$0xff] %v968
      %1001 = vst [vmem:[%s172 + $0x18] sm:$0xff] %v969
      %1002 = vst [vmem:[%s172 + $0x20] sm:$0xff] %v970
      %1003 = vst [vmem:[%s172 + $0x28] sm:$0xff] %v971
      %1004 = vst [vmem:[%s172 + $0x30] sm:$0xff] %v972
      %1005 = vst [vmem:[%s172 + $0x38] sm:$0xff] %v973
      %1006 = vst [vmem:[%s172 + $0x40] sm:$0xff] %v974
      %1007 = vst [vmem:[%s172 + $0x48] sm:$0xff] %v975
      %1008 = vst [vmem:[%s172 + $0x50] sm:$0xff] %v976
      %1009 = vst [vmem:[%s172 + $0x58] sm:$0xff] %v977
      %1010 = vst [vmem:[%s172 + $0x60] sm:$0xff] %v978
      %1011 = vst [vmem:[%s172 + $0x68] sm:$0xff] %v979
      %1012 = vst [vmem:[%s172 + $0x70] sm:$0xff] %v980
      %1013 = vst [vmem:[%s172 + $0x78] sm:$0xff] %v981
      %1014 = vst [vmem:[%s172 + $0x80] sm:$0xff] %v982
      %1015 = vst [vmem:[%s172 + $0x88] sm:$0xff] %v983
      %1016 = vst [vmem:[%s172 + $0x90] sm:$0xff] %v984
      %1017 = vst [vmem:[%s172 + $0x98] sm:$0xff] %v985
      %1018 = vst [vmem:[%s172 + $0xa0] sm:$0xff] %v986
      %1019 = vst [vmem:[%s172 + $0xa8] sm:$0xff] %v987
      %1020 = vst [vmem:[%s172 + $0xb0] sm:$0xff] %v988
      %1021 = vst [vmem:[%s172 + $0xb8] sm:$0xff] %v989
      %1022 = vst [vmem:[%s172 + $0xc0] sm:$0xff] %v990
      %1023 = vst [vmem:[%s172 + $0xc8] sm:$0xff] %v991
      %1024 = vst [vmem:[%s172 + $0xd0] sm:$0xff] %v992
      %1025 = vst [vmem:[%s172 + $0xd8] sm:$0xff] %v993
      %1026 = vst [vmem:[%s172 + $0xe0] sm:$0xff] %v994
      %1027 = vst [vmem:[%s172 + $0xe8] sm:$0xff] %v995
      %1028 = vst [vmem:[%s172 + $0xf0] sm:$0xff] %v996
      %1029 = vst [vmem:[%s172 + $0xf8] sm:$0xff] %v997
      %s1030 = smul.u32 32, %s14
      %p1031 = scmp.lt.s32.totalorder %s1030, 63
      %s1032 = scalar_select %p1031, %s1030, 63
      %s1033 = smul.addr %s1032, 8
      %s1034 = scalar_lea.vmem %s3, %s1033
      // Predicated region
      $region33: #{convnet_forward.4} parent=31 // pred_check
        %p1035 = pneg %p100
      $region34: #{convnet_forward.4} parent=31 // pred_check_branch
        %1037 = sbr.rel (%p1035) target = $region36
      $region35: #{convnet_forward.4} parent=31 // pred_region
        %s1038 = smul.u32 32, %s14
      $region36: #{convnet_forward.4} parent=31 // pred_fallthru
        _
    $region32: #{convnet_forward.4} parent=5 // pred_fallthru
      _
    %p1039 = scmp.le.s32.totalorder 2, %s9
    // Predicated region
    $region37: #{convnet_forward.4} parent=5 // pred_check
      %p1040 = pneg %p1039
    $region38: #{convnet_forward.4} parent=5 // pred_check_branch
      %1042 = sbr.rel (%p1040) target = $region40
    $region39: #{convnet_forward.4} parent=5 // pred_region
      %s1043 = ssub.s32 %s9, 2
      // Predicated region
      $region41: #{convnet_forward.4} parent=39 // pred_check
        %p1044 = pneg %p106
      $region42: #{convnet_forward.4} parent=39 // pred_check_branch
        %1046 = sbr.rel (%p1044) target = $region44
      $region43: #{convnet_forward.4} parent=39 // pred_region
        %s1047 = smul.u32 32, %s15
        %p1048 = scmp.lt.s32.totalorder %s1047, 63
        %s1049 = scalar_select %p1048, %s1047, 63
        %s1050 = smul.addr %s1049, 8
        %s1051 = scalar_lea.vmem %s3, %s1050
      $region44: #{convnet_forward.4} parent=39 // pred_fallthru
        _
    $region40: #{convnet_forward.4} parent=5 // pred_fallthru
      _
  $region6: #{convnet_forward.4} parent=0 // loop_footer
    %s13 = sadd.s32 1, %s9
  $region7: #{convnet_forward.4} parent=0 // loop_footer_branch
    %8 = sbr.rel target = $region3
  $region8: #{convnet_forward.4} parent=0 // loop_exit
    _

// kernel: convnet_forward.5
$region0: #{convnet_forward.5}
  #allocation0 [shape = 'u32[]', space=smem, size = 0x4, offset = 0x4, fixed_abs, tag = 'smem constant byte address 0x4 - core index']
  #allocation1 [shape = 'u32[72,128]{1,0:T(1,128)}', space=vmem, size = 0x9000, scoped, tag = 'internal scratch']
  %s0 = inlined_call_operand.vmem [shape: f32[512,256], index: 0, kind: input, shape index: {}]
  %s1 = inlined_call_operand.vmem [shape: f32[256,128], index: 1, kind: input, shape index: {}]
  %s2 = inlined_call_operand.vmem [shape: f32[1,128], index: 2, kind: input, shape index: {}]
  %s3 = inlined_call_operand.vmem [shape: f32[128,128], index: 3, kind: output, shape index: {}]
  %s4 = sld [smem:[#allocation0]]
  $region45: #{convnet_forward.5} parent=0
    _
  %s6 = ssub.s32 1, %s4
  %s7 = scalar_select 0, %s6, %s4
  loop: start=0, step=1, limit=4
  $region2: #{convnet_forward.5} parent=0 // loop_pre_header
    _
  $region3: #{convnet_forward.5} parent=0 // loop_header
    %s9 = sphi 0, %s13
    %p10 = scmp.ge.s32.totalorder %s9, 4
    %s19 = sphi 0, %s21
    %s22 = sphi 0, %s19
    %s23 = sphi 0, %s22
    %s39 = sphi 0, %s23
    %s43 = sphi 0, %s43
    %s45 = sphi 0, %s43
    %s46 = sphi 0, %s45
    %s60 = sphi 0, %s46
    %s64 = sphi 0, %s64
    %s66 = sphi 0, %s64
    %s67 = sphi 0, %s66
    %s81 = sphi 0, %s67
    %s87 = sphi 0, %s89
    %s90 = sphi 0, %s87
    %s91 = sphi 0, %s90
    %s107 = sphi 0, %s91
  $region4: #{convnet_forward.5} parent=0 // loop_header_branch
    %12 = sbr.rel (%p10) target = $region8
  $region5: #{convnet_forward.5} parent=0 // loop_body
    %s14 = ssub.s32 %s9, 1
    %s15 = ssub.s32 %s9, 2
    %s16 = sadd.s32 %s9, 1
    %s17 = ssub.s32 %s9, %s16
    %p18 = scmp.eq.s32.totalorder %s17, 0
    %s20 = sadd.s32 %s19, 1
    %s21 = scalar_select %p18, %s19, %s20
    %p24 = pneg %p18
    %p25 = scmp.eq.s32.totalorder %s9, 1
    %p26 = por %p24, %p25
    %p27 = scmp.ne.s32.totalorder %s19, %s22
    %p28 = scmp.eq.s32.totalorder %s9, 0
    %p29 = por %p27, %p28
    %p30 = scmp.ne.s32.totalorder %s19, %s22
    %p31 = scmp.eq.s32.totalorder %s14, 1
    %p32 = por %p30, %p31
    %p33 = scmp.ne.s32.totalorder %s22, %s23
    %p34 = scmp.eq.s32.totalorder %s14, 0
    %p35 = por %p33, %p34
    %p36 = scmp.ne.s32.totalorder %s22, %s23
    %p37 = scmp.eq.s32.totalorder %s15, 1
    %p38 = por %p36, %p37
    %p40 = scmp.ne.s32.totalorder %s23, %s39
    %p41 = scmp.eq.s32.totalorder %s15, 0
    %p42 = por %p40, %p41
    %s44 = sadd.s32 %s43, 1
    %p47 = scmp.eq.s32.totalorder %s9, 1
    %p48 = scmp.ne.s32.totalorder %s43, %s45
    %p49 = scmp.eq.s32.totalorder %s9, 0
    %p50 = por %p48, %p49
    %p51 = scmp.ne.s32.totalorder %s43, %s45
    %p52 = scmp.eq.s32.totalorder %s14, 1
    %p53 = por %p51, %p52
    %p54 = scmp.ne.s32.totalorder %s45, %s46
    %p55 = scmp.eq.s32.totalorder %s14, 0
    %p56 = por %p54, %p55
    %p57 = scmp.ne.s32.totalorder %s45, %s46
    %p58 = scmp.eq.s32.totalorder %s15, 1
    %p59 = por %p57, %p58
    %p61 = scmp.ne.s32.totalorder %s46, %s60
    %p62 = scmp.eq.s32.totalorder %s15, 0
    %p63 = por %p61, %p62
    %s65 = sadd.s32 %s64, 1
    %p68 = scmp.eq.s32.totalorder %s9, 1
    %p69 = scmp.ne.s32.totalorder %s64, %s66
    %p70 = scmp.eq.s32.totalorder %s9, 0
    %p71 = por %p69, %p70
    %p72 = scmp.ne.s32.totalorder %s64, %s66
    %p73 = scmp.eq.s32.totalorder %s14, 1
    %p74 = por %p72, %p73
    %p75 = scmp.ne.s32.totalorder %s66, %s67
    %p76 = scmp.eq.s32.totalorder %s14, 0
    %p77 = por %p75, %p76
    %p78 = scmp.ne.s32.totalorder %s66, %s67
    %p79 = scmp.eq.s32.totalorder %s15, 1
    %p80 = por %p78, %p79
    %p82 = scmp.ne.s32.totalorder %s67, %s81
    %p83 = scmp.eq.s32.totalorder %s15, 0
    %p84 = por %p82, %p83
    %s85 = ssub.s32 %s9, %s16
    %p86 = scmp.eq.s32.totalorder %s85, 0
    %s88 = sadd.s32 %s87, 1
    %s89 = scalar_select %p86, %s87, %s88
    %p92 = pneg %p86
    %p93 = scmp.eq.s32.totalorder %s9, 1
    %p94 = por %p92, %p93
    %p95 = scmp.ne.s32.totalorder %s87, %s90
    %p96 = scmp.eq.s32.totalorder %s9, 0
    %p97 = por %p95, %p96
    %p98 = scmp.ne.s32.totalorder %s87, %s90
    %p99 = scmp.eq.s32.totalorder %s14, 1
    %p100 = por %p98, %p99
    %p101 = scmp.ne.s32.totalorder %s90, %s91
    %p102 = scmp.eq.s32.totalorder %s14, 0
    %p103 = por %p101, %p102
    %p104 = scmp.ne.s32.totalorder %s90, %s91
    %p105 = scmp.eq.s32.totalorder %s15, 1
    %p106 = por %p104, %p105
    %p108 = scmp.ne.s32.totalorder %s91, %s107
    %p109 = scmp.eq.s32.totalorder %s15, 0
    %p110 = por %p108, %p109
    %p111 = scmp.le.s32.totalorder 1, %s9
    %p112 = scmp.lt.s32.totalorder %s9, 3
    %p113 = pnand %p111, %p112
    %p114 = pneg %p113
    // Predicated region
    $region9: #{convnet_forward.5} parent=5 // pred_check
      _
    $region10: #{convnet_forward.5} parent=5 // pred_check_branch
      %116 = sbr.rel (%p113) target = $region12
    $region11: #{convnet_forward.5} parent=5 // pred_region
      %s117 = ssub.s32 %s9, 1
      // Predicated region
      $region13: #{convnet_forward.5} parent=11 // pred_check
        %p118 = pneg %p56
      $region14: #{convnet_forward.5} parent=11 // pred_check_branch
        %120 = sbr.rel (%p118) target = $region16
      $region15: #{convnet_forward.5} parent=11 // pred_region
        _
      $region16: #{convnet_forward.5} parent=11 // pred_fallthru
        _
      // Predicated region
      $region17: #{convnet_forward.5} parent=11 // pred_check
        %p121 = pneg %p77
      $region18: #{convnet_forward.5} parent=11 // pred_check_branch
        %123 = sbr.rel (%p121) target = $region20
      $region19: #{convnet_forward.5} parent=11 // pred_region
        _
      $region20: #{convnet_forward.5} parent=11 // pred_fallthru
        _
    $region12: #{convnet_forward.5} parent=5 // pred_fallthru
      _
    %p124 = scmp.lt.s32.totalorder %s9, 2
    // Predicated region
    $region21: #{convnet_forward.5} parent=5 // pred_check
      %p125 = pneg %p124
    $region22: #{convnet_forward.5} parent=5 // pred_check_branch
      %127 = sbr.rel (%p125) target = $region24
    $region23: #{convnet_forward.5} parent=5 // pred_region
      // Predicated region
      $region25: #{convnet_forward.5} parent=23 // pred_check
        %p128 = pneg %p29
      $region26: #{convnet_forward.5} parent=23 // pred_check_branch
        %130 = sbr.rel (%p128) target = $region28
      $region27: #{convnet_forward.5} parent=23 // pred_region
        %s131 = smul.u32 32, %s9
        %p132 = scmp.lt.s32.totalorder %s131, 63
        %s133 = scalar_select %p132, %s131, 63
        %s134 = smul.addr %s133, 2
        %s135 = smul.addr %s134, 8
        %s136 = scalar_lea.vmem %s0, %s135
        %s137 = smul.u32 32, %s9
      $region28: #{convnet_forward.5} parent=23 // pred_fallthru
        _
    $region24: #{convnet_forward.5} parent=5 // pred_fallthru
      _
    %p138 = scmp.le.s32.totalorder 1, %s9
    %p139 = scmp.lt.s32.totalorder %s9, 3
    %p140 = pnand %p138, %p139
    %p141 = pneg %p140
    // Predicated region
    $region29: #{convnet_forward.5} parent=5 // pred_check
      _
    $region30: #{convnet_forward.5} parent=5 // pred_check_branch
      %143 = sbr.rel (%p140) target = $region32
    $region31: #{convnet_forward.5} parent=5 // pred_region
      %s144 = ssub.s32 %s9, 1
      %s145 = smul.u32 32, %s14
      %p146 = scmp.lt.s32.totalorder %s145, 63
      %s147 = scalar_select %p146, %s145, 63
      %s148 = smul.addr %s147, 2
      %s149 = smul.addr %s148, 8
      %s150 = scalar_lea.vmem %s0, %s149
      %p151 = pneg %p35
      %p152 = pneg %p32
      %p153 = pneg %p56
      %p154 = pneg %p53
      %p155 = pneg %p77
      %p156 = pneg %p74
      %p157 = pneg %p103
      %p158 = pneg %p100
      %s159 = smul.u32 8, %s14
      %p160 = scmp.lt.s32.totalorder %s159, 15
      %s161 = scalar_select %p160, %s159, 15
      %s162 = smul.addr %s161, 8
      %s163 = scalar_lea.vmem %s3, %s162
      %s164 = smul.u32 32, %s14
      %p165 = scmp.lt.s32.totalorder %s164, 63
      %s166 = scalar_select %p165, %s164, 63
      %s167 = smul.addr %s166, 2
      %s168 = smul.addr %s167, 8
      %s169 = scalar_lea.vmem %s0, %s168
      %s170 = smul.u32 32, %s14
      %s171 = smul.u32 8, %s14
      %p172 = scmp.lt.s32.totalorder %s171, 15
      %s173 = scalar_select %p172, %s171, 15
      %s174 = smul.addr %s173, 8
      %s175 = scalar_lea.vmem %s3, %s174
      %s176 = smul.u32 8, %s14
      %v177 = vld [vmem:[%s1] sm:$0xff]
      %v178 = vld [vmem:[%s1 + $0x8] sm:$0xff]
      %v179 = vld [vmem:[%s1 + $0x10] sm:$0xff]
      %v180 = vld [vmem:[%s1 + $0x18] sm:$0xff]
      %v181 = vld [vmem:[%s1 + $0x20] sm:$0xff]
      %v182 = vld [vmem:[%s1 + $0x28] sm:$0xff]
      %v183 = vld [vmem:[%s1 + $0x30] sm:$0xff]
      %v184 = vld [vmem:[%s1 + $0x38] sm:$0xff]
      %v185 = vld [vmem:[%s1 + $0x40] sm:$0xff]
      %v186 = vld [vmem:[%s1 + $0x48] sm:$0xff]
      %v187 = vld [vmem:[%s1 + $0x50] sm:$0xff]
      %v188 = vld [vmem:[%s1 + $0x58] sm:$0xff]
      %v189 = vld [vmem:[%s1 + $0x60] sm:$0xff]
      %v190 = vld [vmem:[%s1 + $0x68] sm:$0xff]
      %v191 = vld [vmem:[%s1 + $0x70] sm:$0xff]
      %v192 = vld [vmem:[%s1 + $0x78] sm:$0xff]
      %v193 = vld [vmem:[%s1 + $0x80] sm:$0xff]
      %v194 = vld [vmem:[%s1 + $0x88] sm:$0xff]
      %v195 = vld [vmem:[%s1 + $0x90] sm:$0xff]
      %v196 = vld [vmem:[%s1 + $0x98] sm:$0xff]
      %v197 = vld [vmem:[%s1 + $0xa0] sm:$0xff]
      %v198 = vld [vmem:[%s1 + $0xa8] sm:$0xff]
      %v199 = vld [vmem:[%s1 + $0xb0] sm:$0xff]
      %v200 = vld [vmem:[%s1 + $0xb8] sm:$0xff]
      %v201 = vld [vmem:[%s1 + $0xc0] sm:$0xff]
      %v202 = vld [vmem:[%s1 + $0xc8] sm:$0xff]
      %v203 = vld [vmem:[%s1 + $0xd0] sm:$0xff]
      %v204 = vld [vmem:[%s1 + $0xd8] sm:$0xff]
      %v205 = vld [vmem:[%s1 + $0xe0] sm:$0xff]
      %v206 = vld [vmem:[%s1 + $0xe8] sm:$0xff]
      %v207 = vld [vmem:[%s1 + $0xf0] sm:$0xff]
      %v208 = vld [vmem:[%s1 + $0xf8] sm:$0xff]
      %v209 = vld [vmem:[%s2] sm:$0x1]
      %v210 = vld [vmem:[%s169] sm:$0xff]
      %v211 = vld [vmem:[%s169 + $0x8] sm:$0xff]
      %v212 = vld [vmem:[%s169 + $0x10] sm:$0xff]
      %v213 = vld [vmem:[%s169 + $0x18] sm:$0xff]
      %v214 = vld [vmem:[%s169 + $0x20] sm:$0xff]
      %v215 = vld [vmem:[%s169 + $0x28] sm:$0xff]
      %v216 = vld [vmem:[%s169 + $0x30] sm:$0xff]
      %v217 = vld [vmem:[%s169 + $0x38] sm:$0xff]
      %v218 = vld [vmem:[%s169 + $0x40] sm:$0xff]
      %v219 = vld [vmem:[%s169 + $0x48] sm:$0xff]
      %v220 = vld [vmem:[%s169 + $0x50] sm:$0xff]
      %v221 = vld [vmem:[%s169 + $0x58] sm:$0xff]
      %v222 = vld [vmem:[%s169 + $0x60] sm:$0xff]
      %v223 = vld [vmem:[%s169 + $0x68] sm:$0xff]
      %v224 = vld [vmem:[%s169 + $0x70] sm:$0xff]
      %v225 = vld [vmem:[%s169 + $0x78] sm:$0xff]
      %v227 = vperm.slane %v209, 0
      %229 = vmatpush.msra.mxu0 %v192
      %230 = vmatpush.msra.mxu0 %v191
      %231 = vmatpush.msra.mxu0 %v190
      %232 = vmatpush.msra.mxu0 %v189
      %233 = vmatpush.msra.mxu0 %v188
      %234 = vmatpush.msra.mxu0 %v187
      %235 = vmatpush.msra.mxu0 %v186
      %236 = vmatpush.msra.mxu0 %v185
      %237 = vmatpush.msra.mxu0 %v184
      %238 = vmatpush.msra.mxu0 %v183
      %239 = vmatpush.msra.mxu0 %v182
      %240 = vmatpush.msra.mxu0 %v181
      %241 = vmatpush.msra.mxu0 %v180
      %242 = vmatpush.msra.mxu0 %v179
      %243 = vmatpush.msra.mxu0 %v178
      %244 = vmatpush.msra.mxu0 %v177
      %245 = vmatmul.f32.gmra.mxu0 %v210
      %v246 = vpop.f32.mrf.mxu0
      %v247 = vadd.f32 %v227, %v246
      %248 = vmatmul.f32.gmra.mxu0 %v212
      %v249 = vpop.f32.mrf.mxu0
      %v250 = vadd.f32 %v227, %v249
      %251 = vmatmul.f32.gmra.mxu0 %v214
      %v252 = vpop.f32.mrf.mxu0
      %v253 = vadd.f32 %v227, %v252
      %254 = vmatmul.f32.gmra.mxu0 %v216
      %v255 = vpop.f32.mrf.mxu0
      %v256 = vadd.f32 %v227, %v255
      %257 = vmatmul.f32.gmra.mxu0 %v218
      %v258 = vpop.f32.mrf.mxu0
      %v259 = vadd.f32 %v227, %v258
      %260 = vmatmul.f32.gmra.mxu0 %v220
      %v261 = vpop.f32.mrf.mxu0
      %v262 = vadd.f32 %v227, %v261
      %263 = vmatmul.f32.gmra.mxu0 %v222
      %v264 = vpop.f32.mrf.mxu0
      %v265 = vadd.f32 %v227, %v264
      %266 = vmatmul.f32.gmra.mxu0 %v224
      %v267 = vpop.f32.mrf.mxu0
      %v268 = vadd.f32 %v227, %v267
      %269 = vdwg.mxu0
      %270 = vmatpush.msra.mxu0 %v208
      %271 = vmatpush.msra.mxu0 %v207
      %272 = vmatpush.msra.mxu0 %v206
      %273 = vmatpush.msra.mxu0 %v205
      %274 = vmatpush.msra.mxu0 %v204
      %275 = vmatpush.msra.mxu0 %v203
      %276 = vmatpush.msra.mxu0 %v202
      %277 = vmatpush.msra.mxu0 %v201
      %278 = vmatpush.msra.mxu0 %v200
      %279 = vmatpush.msra.mxu0 %v199
      %280 = vmatpush.msra.mxu0 %v198
      %281 = vmatpush.msra.mxu0 %v197
      %282 = vmatpush.msra.mxu0 %v196
      %283 = vmatpush.msra.mxu0 %v195
      %284 = vmatpush.msra.mxu0 %v194
      %285 = vmatpush.msra.mxu0 %v193
      %286 = vmatmul.f32.gmra.mxu0 %v211
      %v287 = vpop.f32.mrf.mxu0
      %v288 = vadd.f32 %v247, %v287
      %289 = vmatmul.f32.gmra.mxu0 %v213
      %v290 = vpop.f32.mrf.mxu0
      %v291 = vadd.f32 %v250, %v290
      %292 = vmatmul.f32.gmra.mxu0 %v215
      %v293 = vpop.f32.mrf.mxu0
      %v294 = vadd.f32 %v253, %v293
      %295 = vmatmul.f32.gmra.mxu0 %v217
      %v296 = vpop.f32.mrf.mxu0
      %v297 = vadd.f32 %v256, %v296
      %298 = vmatmul.f32.gmra.mxu0 %v219
      %v299 = vpop.f32.mrf.mxu0
      %v300 = vadd.f32 %v259, %v299
      %301 = vmatmul.f32.gmra.mxu0 %v221
      %v302 = vpop.f32.mrf.mxu0
      %v303 = vadd.f32 %v262, %v302
      %304 = vmatmul.f32.gmra.mxu0 %v223
      %v305 = vpop.f32.mrf.mxu0
      %v306 = vadd.f32 %v265, %v305
      %307 = vmatmul.f32.gmra.mxu0 %v225
      %v308 = vpop.f32.mrf.mxu0
      %v309 = vadd.f32 %v268, %v308
      %310 = vdwg.mxu0
      %v311 = vmax.f32 %v288, 0.0
      %v312 = vmax.f32 %v291, 0.0
      %v313 = vmax.f32 %v294, 0.0
      %v314 = vmax.f32 %v297, 0.0
      %v315 = vmax.f32 %v300, 0.0
      %v316 = vmax.f32 %v303, 0.0
      %v317 = vmax.f32 %v306, 0.0
      %v318 = vmax.f32 %v309, 0.0
      %v319 = vld [vmem:[%s169 + $0x80] sm:$0xff]
      %v320 = vld [vmem:[%s169 + $0x88] sm:$0xff]
      %v321 = vld [vmem:[%s169 + $0x90] sm:$0xff]
      %v322 = vld [vmem:[%s169 + $0x98] sm:$0xff]
      %v323 = vld [vmem:[%s169 + $0xa0] sm:$0xff]
      %v324 = vld [vmem:[%s169 + $0xa8] sm:$0xff]
      %v325 = vld [vmem:[%s169 + $0xb0] sm:$0xff]
      %v326 = vld [vmem:[%s169 + $0xb8] sm:$0xff]
      %v327 = vld [vmem:[%s169 + $0xc0] sm:$0xff]
      %v328 = vld [vmem:[%s169 + $0xc8] sm:$0xff]
      %v329 = vld [vmem:[%s169 + $0xd0] sm:$0xff]
      %v330 = vld [vmem:[%s169 + $0xd8] sm:$0xff]
      %v331 = vld [vmem:[%s169 + $0xe0] sm:$0xff]
      %v332 = vld [vmem:[%s169 + $0xe8] sm:$0xff]
      %v333 = vld [vmem:[%s169 + $0xf0] sm:$0xff]
      %v334 = vld [vmem:[%s169 + $0xf8] sm:$0xff]
      %335 = vmatpush.msra.mxu0 %v192
      %336 = vmatpush.msra.mxu0 %v191
      %337 = vmatpush.msra.mxu0 %v190
      %338 = vmatpush.msra.mxu0 %v189
      %339 = vmatpush.msra.mxu0 %v188
      %340 = vmatpush.msra.mxu0 %v187
      %341 = vmatpush.msra.mxu0 %v186
      %342 = vmatpush.msra.mxu0 %v185
      %343 = vmatpush.msra.mxu0 %v184
      %344 = vmatpush.msra.mxu0 %v183
      %345 = vmatpush.msra.mxu0 %v182
      %346 = vmatpush.msra.mxu0 %v181
      %347 = vmatpush.msra.mxu0 %v180
      %348 = vmatpush.msra.mxu0 %v179
      %349 = vmatpush.msra.mxu0 %v178
      %350 = vmatpush.msra.mxu0 %v177
      %351 = vmatmul.f32.gmra.mxu0 %v319
      %v352 = vpop.f32.mrf.mxu0
      %v353 = vadd.f32 %v227, %v352
      %354 = vmatmul.f32.gmra.mxu0 %v321
      %v355 = vpop.f32.mrf.mxu0
      %v356 = vadd.f32 %v227, %v355
      %357 = vmatmul.f32.gmra.mxu0 %v323
      %v358 = vpop.f32.mrf.mxu0
      %v359 = vadd.f32 %v227, %v358
      %360 = vmatmul.f32.gmra.mxu0 %v325
      %v361 = vpop.f32.mrf.mxu0
      %v362 = vadd.f32 %v227, %v361
      %363 = vmatmul.f32.gmra.mxu0 %v327
      %v364 = vpop.f32.mrf.mxu0
      %v365 = vadd.f32 %v227, %v364
      %366 = vmatmul.f32.gmra.mxu0 %v329
      %v367 = vpop.f32.mrf.mxu0
      %v368 = vadd.f32 %v227, %v367
      %369 = vmatmul.f32.gmra.mxu0 %v331
      %v370 = vpop.f32.mrf.mxu0
      %v371 = vadd.f32 %v227, %v370
      %372 = vmatmul.f32.gmra.mxu0 %v333
      %v373 = vpop.f32.mrf.mxu0
      %v374 = vadd.f32 %v227, %v373
      %375 = vdwg.mxu0
      %376 = vmatpush.msra.mxu0 %v208
      %377 = vmatpush.msra.mxu0 %v207
      %378 = vmatpush.msra.mxu0 %v206
      %379 = vmatpush.msra.mxu0 %v205
      %380 = vmatpush.msra.mxu0 %v204
      %381 = vmatpush.msra.mxu0 %v203
      %382 = vmatpush.msra.mxu0 %v202
      %383 = vmatpush.msra.mxu0 %v201
      %384 = vmatpush.msra.mxu0 %v200
      %385 = vmatpush.msra.mxu0 %v199
      %386 = vmatpush.msra.mxu0 %v198
      %387 = vmatpush.msra.mxu0 %v197
      %388 = vmatpush.msra.mxu0 %v196
      %389 = vmatpush.msra.mxu0 %v195
      %390 = vmatpush.msra.mxu0 %v194
      %391 = vmatpush.msra.mxu0 %v193
      %392 = vmatmul.f32.gmra.mxu0 %v320
      %v393 = vpop.f32.mrf.mxu0
      %v394 = vadd.f32 %v353, %v393
      %395 = vmatmul.f32.gmra.mxu0 %v322
      %v396 = vpop.f32.mrf.mxu0
      %v397 = vadd.f32 %v356, %v396
      %398 = vmatmul.f32.gmra.mxu0 %v324
      %v399 = vpop.f32.mrf.mxu0
      %v400 = vadd.f32 %v359, %v399
      %401 = vmatmul.f32.gmra.mxu0 %v326
      %v402 = vpop.f32.mrf.mxu0
      %v403 = vadd.f32 %v362, %v402
      %404 = vmatmul.f32.gmra.mxu0 %v328
      %v405 = vpop.f32.mrf.mxu0
      %v406 = vadd.f32 %v365, %v405
      %407 = vmatmul.f32.gmra.mxu0 %v330
      %v408 = vpop.f32.mrf.mxu0
      %v409 = vadd.f32 %v368, %v408
      %410 = vmatmul.f32.gmra.mxu0 %v332
      %v411 = vpop.f32.mrf.mxu0
      %v412 = vadd.f32 %v371, %v411
      %413 = vmatmul.f32.gmra.mxu0 %v334
      %v414 = vpop.f32.mrf.mxu0
      %v415 = vadd.f32 %v374, %v414
      %416 = vdwg.mxu0
      %v417 = vmax.f32 %v394, 0.0
      %v418 = vmax.f32 %v397, 0.0
      %v419 = vmax.f32 %v400, 0.0
      %v420 = vmax.f32 %v403, 0.0
      %v421 = vmax.f32 %v406, 0.0
      %v422 = vmax.f32 %v409, 0.0
      %v423 = vmax.f32 %v412, 0.0
      %v424 = vmax.f32 %v415, 0.0
      %v425 = vmax.f32 %v311, %v417
      %v426 = vmax.f32 %v312, %v418
      %v427 = vmax.f32 %v313, %v419
      %v428 = vmax.f32 %v314, %v420
      %v429 = vmax.f32 %v315, %v421
      %v430 = vmax.f32 %v316, %v422
      %v431 = vmax.f32 %v317, %v423
      %v432 = vmax.f32 %v318, %v424
      %v433 = vld [vmem:[%s169 + $0x100] sm:$0xff]
      %v434 = vld [vmem:[%s169 + $0x108] sm:$0xff]
      %v435 = vld [vmem:[%s169 + $0x110] sm:$0xff]
      %v436 = vld [vmem:[%s169 + $0x118] sm:$0xff]
      %v437 = vld [vmem:[%s169 + $0x120] sm:$0xff]
      %v438 = vld [vmem:[%s169 + $0x128] sm:$0xff]
      %v439 = vld [vmem:[%s169 + $0x130] sm:$0xff]
      %v440 = vld [vmem:[%s169 + $0x138] sm:$0xff]
      %v441 = vld [vmem:[%s169 + $0x140] sm:$0xff]
      %v442 = vld [vmem:[%s169 + $0x148] sm:$0xff]
      %v443 = vld [vmem:[%s169 + $0x150] sm:$0xff]
      %v444 = vld [vmem:[%s169 + $0x158] sm:$0xff]
      %v445 = vld [vmem:[%s169 + $0x160] sm:$0xff]
      %v446 = vld [vmem:[%s169 + $0x168] sm:$0xff]
      %v447 = vld [vmem:[%s169 + $0x170] sm:$0xff]
      %v448 = vld [vmem:[%s169 + $0x178] sm:$0xff]
      %449 = vmatpush.msra.mxu0 %v192
      %450 = vmatpush.msra.mxu0 %v191
      %451 = vmatpush.msra.mxu0 %v190
      %452 = vmatpush.msra.mxu0 %v189
      %453 = vmatpush.msra.mxu0 %v188
      %454 = vmatpush.msra.mxu0 %v187
      %455 = vmatpush.msra.mxu0 %v186
      %456 = vmatpush.msra.mxu0 %v185
      %457 = vmatpush.msra.mxu0 %v184
      %458 = vmatpush.msra.mxu0 %v183
      %459 = vmatpush.msra.mxu0 %v182
      %460 = vmatpush.msra.mxu0 %v181
      %461 = vmatpush.msra.mxu0 %v180
      %462 = vmatpush.msra.mxu0 %v179
      %463 = vmatpush.msra.mxu0 %v178
      %464 = vmatpush.msra.mxu0 %v177
      %465 = vmatmul.f32.gmra.mxu0 %v433
      %v466 = vpop.f32.mrf.mxu0
      %v467 = vadd.f32 %v227, %v466
      %468 = vmatmul.f32.gmra.mxu0 %v435
      %v469 = vpop.f32.mrf.mxu0
      %v470 = vadd.f32 %v227, %v469
      %471 = vmatmul.f32.gmra.mxu0 %v437
      %v472 = vpop.f32.mrf.mxu0
      %v473 = vadd.f32 %v227, %v472
      %474 = vmatmul.f32.gmra.mxu0 %v439
      %v475 = vpop.f32.mrf.mxu0
      %v476 = vadd.f32 %v227, %v475
      %477 = vmatmul.f32.gmra.mxu0 %v441
      %v478 = vpop.f32.mrf.mxu0
      %v479 = vadd.f32 %v227, %v478
      %480 = vmatmul.f32.gmra.mxu0 %v443
      %v481 = vpop.f32.mrf.mxu0
      %v482 = vadd.f32 %v227, %v481
      %483 = vmatmul.f32.gmra.mxu0 %v445
      %v484 = vpop.f32.mrf.mxu0
      %v485 = vadd.f32 %v227, %v484
      %486 = vmatmul.f32.gmra.mxu0 %v447
      %v487 = vpop.f32.mrf.mxu0
      %v488 = vadd.f32 %v227, %v487
      %489 = vdwg.mxu0
      %490 = vmatpush.msra.mxu0 %v208
      %491 = vmatpush.msra.mxu0 %v207
      %492 = vmatpush.msra.mxu0 %v206
      %493 = vmatpush.msra.mxu0 %v205
      %494 = vmatpush.msra.mxu0 %v204
      %495 = vmatpush.msra.mxu0 %v203
      %496 = vmatpush.msra.mxu0 %v202
      %497 = vmatpush.msra.mxu0 %v201
      %498 = vmatpush.msra.mxu0 %v200
      %499 = vmatpush.msra.mxu0 %v199
      %500 = vmatpush.msra.mxu0 %v198
      %501 = vmatpush.msra.mxu0 %v197
      %502 = vmatpush.msra.mxu0 %v196
      %503 = vmatpush.msra.mxu0 %v195
      %504 = vmatpush.msra.mxu0 %v194
      %505 = vmatpush.msra.mxu0 %v193
      %506 = vmatmul.f32.gmra.mxu0 %v434
      %v507 = vpop.f32.mrf.mxu0
      %v508 = vadd.f32 %v467, %v507
      %509 = vmatmul.f32.gmra.mxu0 %v436
      %v510 = vpop.f32.mrf.mxu0
      %v511 = vadd.f32 %v470, %v510
      %512 = vmatmul.f32.gmra.mxu0 %v438
      %v513 = vpop.f32.mrf.mxu0
      %v514 = vadd.f32 %v473, %v513
      %515 = vmatmul.f32.gmra.mxu0 %v440
      %v516 = vpop.f32.mrf.mxu0
      %v517 = vadd.f32 %v476, %v516
      %518 = vmatmul.f32.gmra.mxu0 %v442
      %v519 = vpop.f32.mrf.mxu0
      %v520 = vadd.f32 %v479, %v519
      %521 = vmatmul.f32.gmra.mxu0 %v444
      %v522 = vpop.f32.mrf.mxu0
      %v523 = vadd.f32 %v482, %v522
      %524 = vmatmul.f32.gmra.mxu0 %v446
      %v525 = vpop.f32.mrf.mxu0
      %v526 = vadd.f32 %v485, %v525
      %527 = vmatmul.f32.gmra.mxu0 %v448
      %v528 = vpop.f32.mrf.mxu0
      %v529 = vadd.f32 %v488, %v528
      %530 = vdwg.mxu0
      %v531 = vmax.f32 %v508, 0.0
      %v532 = vmax.f32 %v511, 0.0
      %v533 = vmax.f32 %v514, 0.0
      %v534 = vmax.f32 %v517, 0.0
      %v535 = vmax.f32 %v520, 0.0
      %v536 = vmax.f32 %v523, 0.0
      %v537 = vmax.f32 %v526, 0.0
      %v538 = vmax.f32 %v529, 0.0
      %v539 = vmax.f32 %v425, %v531
      %v540 = vmax.f32 %v426, %v532
      %v541 = vmax.f32 %v427, %v533
      %v542 = vmax.f32 %v428, %v534
      %v543 = vmax.f32 %v429, %v535
      %v544 = vmax.f32 %v430, %v536
      %v545 = vmax.f32 %v431, %v537
      %v546 = vmax.f32 %v432, %v538
      %v547 = vld [vmem:[%s169 + $0x180] sm:$0xff]
      %v548 = vld [vmem:[%s169 + $0x188] sm:$0xff]
      %v549 = vld [vmem:[%s169 + $0x190] sm:$0xff]
      %v550 = vld [vmem:[%s169 + $0x198] sm:$0xff]
      %v551 = vld [vmem:[%s169 + $0x1a0] sm:$0xff]
      %v552 = vld [vmem:[%s169 + $0x1a8] sm:$0xff]
      %v553 = vld [vmem:[%s169 + $0x1b0] sm:$0xff]
      %v554 = vld [vmem:[%s169 + $0x1b8] sm:$0xff]
      %v555 = vld [vmem:[%s169 + $0x1c0] sm:$0xff]
      %v556 = vld [vmem:[%s169 + $0x1c8] sm:$0xff]
      %v557 = vld [vmem:[%s169 + $0x1d0] sm:$0xff]
      %v558 = vld [vmem:[%s169 + $0x1d8] sm:$0xff]
      %v559 = vld [vmem:[%s169 + $0x1e0] sm:$0xff]
      %v560 = vld [vmem:[%s169 + $0x1e8] sm:$0xff]
      %v561 = vld [vmem:[%s169 + $0x1f0] sm:$0xff]
      %v562 = vld [vmem:[%s169 + $0x1f8] sm:$0xff]
      %563 = vmatpush.msra.mxu0 %v192
      %564 = vmatpush.msra.mxu0 %v191
      %565 = vmatpush.msra.mxu0 %v190
      %566 = vmatpush.msra.mxu0 %v189
      %567 = vmatpush.msra.mxu0 %v188
      %568 = vmatpush.msra.mxu0 %v187
      %569 = vmatpush.msra.mxu0 %v186
      %570 = vmatpush.msra.mxu0 %v185
      %571 = vmatpush.msra.mxu0 %v184
      %572 = vmatpush.msra.mxu0 %v183
      %573 = vmatpush.msra.mxu0 %v182
      %574 = vmatpush.msra.mxu0 %v181
      %575 = vmatpush.msra.mxu0 %v180
      %576 = vmatpush.msra.mxu0 %v179
      %577 = vmatpush.msra.mxu0 %v178
      %578 = vmatpush.msra.mxu0 %v177
      %579 = vmatmul.f32.gmra.mxu0 %v547
      %v580 = vpop.f32.mrf.mxu0
      %v581 = vadd.f32 %v227, %v580
      %582 = vmatmul.f32.gmra.mxu0 %v549
      %v583 = vpop.f32.mrf.mxu0
      %v584 = vadd.f32 %v227, %v583
      %585 = vmatmul.f32.gmra.mxu0 %v551
      %v586 = vpop.f32.mrf.mxu0
      %v587 = vadd.f32 %v227, %v586
      %588 = vmatmul.f32.gmra.mxu0 %v553
      %v589 = vpop.f32.mrf.mxu0
      %v590 = vadd.f32 %v227, %v589
      %591 = vmatmul.f32.gmra.mxu0 %v555
      %v592 = vpop.f32.mrf.mxu0
      %v593 = vadd.f32 %v227, %v592
      %594 = vmatmul.f32.gmra.mxu0 %v557
      %v595 = vpop.f32.mrf.mxu0
      %v596 = vadd.f32 %v227, %v595
      %597 = vmatmul.f32.gmra.mxu0 %v559
      %v598 = vpop.f32.mrf.mxu0
      %v599 = vadd.f32 %v227, %v598
      %600 = vmatmul.f32.gmra.mxu0 %v561
      %v601 = vpop.f32.mrf.mxu0
      %v602 = vadd.f32 %v227, %v601
      %603 = vdwg.mxu0
      %604 = vmatpush.msra.mxu0 %v208
      %605 = vmatpush.msra.mxu0 %v207
      %606 = vmatpush.msra.mxu0 %v206
      %607 = vmatpush.msra.mxu0 %v205
      %608 = vmatpush.msra.mxu0 %v204
      %609 = vmatpush.msra.mxu0 %v203
      %610 = vmatpush.msra.mxu0 %v202
      %611 = vmatpush.msra.mxu0 %v201
      %612 = vmatpush.msra.mxu0 %v200
      %613 = vmatpush.msra.mxu0 %v199
      %614 = vmatpush.msra.mxu0 %v198
      %615 = vmatpush.msra.mxu0 %v197
      %616 = vmatpush.msra.mxu0 %v196
      %617 = vmatpush.msra.mxu0 %v195
      %618 = vmatpush.msra.mxu0 %v194
      %619 = vmatpush.msra.mxu0 %v193
      %620 = vmatmul.f32.gmra.mxu0 %v548
      %v621 = vpop.f32.mrf.mxu0
      %v622 = vadd.f32 %v581, %v621
      %623 = vmatmul.f32.gmra.mxu0 %v550
      %v624 = vpop.f32.mrf.mxu0
      %v625 = vadd.f32 %v584, %v624
      %626 = vmatmul.f32.gmra.mxu0 %v552
      %v627 = vpop.f32.mrf.mxu0
      %v628 = vadd.f32 %v587, %v627
      %629 = vmatmul.f32.gmra.mxu0 %v554
      %v630 = vpop.f32.mrf.mxu0
      %v631 = vadd.f32 %v590, %v630
      %632 = vmatmul.f32.gmra.mxu0 %v556
      %v633 = vpop.f32.mrf.mxu0
      %v634 = vadd.f32 %v593, %v633
      %635 = vmatmul.f32.gmra.mxu0 %v558
      %v636 = vpop.f32.mrf.mxu0
      %v637 = vadd.f32 %v596, %v636
      %638 = vmatmul.f32.gmra.mxu0 %v560
      %v639 = vpop.f32.mrf.mxu0
      %v640 = vadd.f32 %v599, %v639
      %641 = vmatmul.f32.gmra.mxu0 %v562
      %v642 = vpop.f32.mrf.mxu0
      %v643 = vadd.f32 %v602, %v642
      %644 = vdwg.mxu0
      %v645 = vmax.f32 %v622, 0.0
      %v646 = vmax.f32 %v625, 0.0
      %v647 = vmax.f32 %v628, 0.0
      %v648 = vmax.f32 %v631, 0.0
      %v649 = vmax.f32 %v634, 0.0
      %v650 = vmax.f32 %v637, 0.0
      %v651 = vmax.f32 %v640, 0.0
      %v652 = vmax.f32 %v643, 0.0
      %v653 = vmax.f32 %v539, %v645
      %v654 = vmax.f32 %v540, %v646
      %v655 = vmax.f32 %v541, %v647
      %v656 = vmax.f32 %v542, %v648
      %v657 = vmax.f32 %v543, %v649
      %v658 = vmax.f32 %v544, %v650
      %v659 = vmax.f32 %v545, %v651
      %v660 = vmax.f32 %v546, %v652
      %661 = vst [vmem:[%s175] sm:$0xff] %v653
      %662 = vst [vmem:[%s175 + $0x8] sm:$0xff] %v654
      %663 = vst [vmem:[%s175 + $0x10] sm:$0xff] %v655
      %664 = vst [vmem:[%s175 + $0x18] sm:$0xff] %v656
      %665 = vst [vmem:[%s175 + $0x20] sm:$0xff] %v657
      %666 = vst [vmem:[%s175 + $0x28] sm:$0xff] %v658
      %667 = vst [vmem:[%s175 + $0x30] sm:$0xff] %v659
      %668 = vst [vmem:[%s175 + $0x38] sm:$0xff] %v660
      %s669 = smul.u32 8, %s14
      %p670 = scmp.lt.s32.totalorder %s669, 15
      %s671 = scalar_select %p670, %s669, 15
      %s672 = smul.addr %s671, 8
      %s673 = scalar_lea.vmem %s3, %s672
      // Predicated region
      $region33: #{convnet_forward.5} parent=31 // pred_check
        %p674 = pneg %p100
      $region34: #{convnet_forward.5} parent=31 // pred_check_branch
        %676 = sbr.rel (%p674) target = $region36
      $region35: #{convnet_forward.5} parent=31 // pred_region
        %s677 = smul.u32 8, %s14
      $region36: #{convnet_forward.5} parent=31 // pred_fallthru
        _
    $region32: #{convnet_forward.5} parent=5 // pred_fallthru
      _
    %p678 = scmp.le.s32.totalorder 2, %s9
    // Predicated region
    $region37: #{convnet_forward.5} parent=5 // pred_check
      %p679 = pneg %p678
    $region38: #{convnet_forward.5} parent=5 // pred_check_branch
      %681 = sbr.rel (%p679) target = $region40
    $region39: #{convnet_forward.5} parent=5 // pred_region
      %s682 = ssub.s32 %s9, 2
      // Predicated region
      $region41: #{convnet_forward.5} parent=39 // pred_check
        %p683 = pneg %p106
      $region42: #{convnet_forward.5} parent=39 // pred_check_branch
        %685 = sbr.rel (%p683) target = $region44
      $region43: #{convnet_forward.5} parent=39 // pred_region
        %s686 = smul.u32 8, %s15
        %p687 = scmp.lt.s32.totalorder %s686, 15
        %s688 = scalar_select %p687, %s686, 15
        %s689 = smul.addr %s688, 8
        %s690 = scalar_lea.vmem %s3, %s689
      $region44: #{convnet_forward.5} parent=39 // pred_fallthru
        _
    $region40: #{convnet_forward.5} parent=5 // pred_fallthru
      _
  $region6: #{convnet_forward.5} parent=0 // loop_footer
    %s13 = sadd.s32 1, %s9
  $region7: #{convnet_forward.5} parent=0 // loop_footer_branch
    %8 = sbr.rel target = $region3
  $region8: #{convnet_forward.5} parent=0 // loop_exit
    _

// kernel: convnet_forward.6
$region0: #{convnet_forward.6}
  #allocation0 [shape = 'u32[]', space=smem, size = 0x4, offset = 0x4, fixed_abs, tag = 'smem constant byte address 0x4 - core index']
  #allocation1 [shape = 'u32[72,128]{1,0:T(1,128)}', space=vmem, size = 0x9000, scoped, tag = 'internal scratch']
  %s0 = inlined_call_operand.vmem [shape: f32[128,384], index: 0, kind: input, shape index: {}]
  %s1 = inlined_call_operand.vmem [shape: f32[384,128], index: 1, kind: input, shape index: {}]
  %s2 = inlined_call_operand.vmem [shape: f32[1,128], index: 2, kind: input, shape index: {}]
  %s3 = inlined_call_operand.vmem [shape: f32[32,128], index: 3, kind: output, shape index: {}]
  %s4 = sld [smem:[#allocation0]]
  $region45: #{convnet_forward.6} parent=0
    _
  %s6 = ssub.s32 1, %s4
  %s7 = scalar_select 0, %s6, %s4
  loop: start=0, step=1, limit=4
  $region2: #{convnet_forward.6} parent=0 // loop_pre_header
    _
  $region3: #{convnet_forward.6} parent=0 // loop_header
    %s9 = sphi 0, %s13
    %p10 = scmp.ge.s32.totalorder %s9, 4
    %s19 = sphi 0, %s21
    %s22 = sphi 0, %s19
    %s23 = sphi 0, %s22
    %s39 = sphi 0, %s23
    %s43 = sphi 0, %s43
    %s45 = sphi 0, %s43
    %s46 = sphi 0, %s45
    %s60 = sphi 0, %s46
    %s64 = sphi 0, %s64
    %s66 = sphi 0, %s64
    %s67 = sphi 0, %s66
    %s81 = sphi 0, %s67
    %s87 = sphi 0, %s89
    %s90 = sphi 0, %s87
    %s91 = sphi 0, %s90
    %s107 = sphi 0, %s91
  $region4: #{convnet_forward.6} parent=0 // loop_header_branch
    %12 = sbr.rel (%p10) target = $region8
  $region5: #{convnet_forward.6} parent=0 // loop_body
    %s14 = ssub.s32 %s9, 1
    %s15 = ssub.s32 %s9, 2
    %s16 = sadd.s32 %s9, 1
    %s17 = ssub.s32 %s9, %s16
    %p18 = scmp.eq.s32.totalorder %s17, 0
    %s20 = sadd.s32 %s19, 1
    %s21 = scalar_select %p18, %s19, %s20
    %p24 = pneg %p18
    %p25 = scmp.eq.s32.totalorder %s9, 1
    %p26 = por %p24, %p25
    %p27 = scmp.ne.s32.totalorder %s19, %s22
    %p28 = scmp.eq.s32.totalorder %s9, 0
    %p29 = por %p27, %p28
    %p30 = scmp.ne.s32.totalorder %s19, %s22
    %p31 = scmp.eq.s32.totalorder %s14, 1
    %p32 = por %p30, %p31
    %p33 = scmp.ne.s32.totalorder %s22, %s23
    %p34 = scmp.eq.s32.totalorder %s14, 0
    %p35 = por %p33, %p34
    %p36 = scmp.ne.s32.totalorder %s22, %s23
    %p37 = scmp.eq.s32.totalorder %s15, 1
    %p38 = por %p36, %p37
    %p40 = scmp.ne.s32.totalorder %s23, %s39
    %p41 = scmp.eq.s32.totalorder %s15, 0
    %p42 = por %p40, %p41
    %s44 = sadd.s32 %s43, 1
    %p47 = scmp.eq.s32.totalorder %s9, 1
    %p48 = scmp.ne.s32.totalorder %s43, %s45
    %p49 = scmp.eq.s32.totalorder %s9, 0
    %p50 = por %p48, %p49
    %p51 = scmp.ne.s32.totalorder %s43, %s45
    %p52 = scmp.eq.s32.totalorder %s14, 1
    %p53 = por %p51, %p52
    %p54 = scmp.ne.s32.totalorder %s45, %s46
    %p55 = scmp.eq.s32.totalorder %s14, 0
    %p56 = por %p54, %p55
    %p57 = scmp.ne.s32.totalorder %s45, %s46
    %p58 = scmp.eq.s32.totalorder %s15, 1
    %p59 = por %p57, %p58
    %p61 = scmp.ne.s32.totalorder %s46, %s60
    %p62 = scmp.eq.s32.totalorder %s15, 0
    %p63 = por %p61, %p62
    %s65 = sadd.s32 %s64, 1
    %p68 = scmp.eq.s32.totalorder %s9, 1
    %p69 = scmp.ne.s32.totalorder %s64, %s66
    %p70 = scmp.eq.s32.totalorder %s9, 0
    %p71 = por %p69, %p70
    %p72 = scmp.ne.s32.totalorder %s64, %s66
    %p73 = scmp.eq.s32.totalorder %s14, 1
    %p74 = por %p72, %p73
    %p75 = scmp.ne.s32.totalorder %s66, %s67
    %p76 = scmp.eq.s32.totalorder %s14, 0
    %p77 = por %p75, %p76
    %p78 = scmp.ne.s32.totalorder %s66, %s67
    %p79 = scmp.eq.s32.totalorder %s15, 1
    %p80 = por %p78, %p79
    %p82 = scmp.ne.s32.totalorder %s67, %s81
    %p83 = scmp.eq.s32.totalorder %s15, 0
    %p84 = por %p82, %p83
    %s85 = ssub.s32 %s9, %s16
    %p86 = scmp.eq.s32.totalorder %s85, 0
    %s88 = sadd.s32 %s87, 1
    %s89 = scalar_select %p86, %s87, %s88
    %p92 = pneg %p86
    %p93 = scmp.eq.s32.totalorder %s9, 1
    %p94 = por %p92, %p93
    %p95 = scmp.ne.s32.totalorder %s87, %s90
    %p96 = scmp.eq.s32.totalorder %s9, 0
    %p97 = por %p95, %p96
    %p98 = scmp.ne.s32.totalorder %s87, %s90
    %p99 = scmp.eq.s32.totalorder %s14, 1
    %p100 = por %p98, %p99
    %p101 = scmp.ne.s32.totalorder %s90, %s91
    %p102 = scmp.eq.s32.totalorder %s14, 0
    %p103 = por %p101, %p102
    %p104 = scmp.ne.s32.totalorder %s90, %s91
    %p105 = scmp.eq.s32.totalorder %s15, 1
    %p106 = por %p104, %p105
    %p108 = scmp.ne.s32.totalorder %s91, %s107
    %p109 = scmp.eq.s32.totalorder %s15, 0
    %p110 = por %p108, %p109
    %p111 = scmp.le.s32.totalorder 1, %s9
    %p112 = scmp.lt.s32.totalorder %s9, 3
    %p113 = pnand %p111, %p112
    %p114 = pneg %p113
    // Predicated region
    $region9: #{convnet_forward.6} parent=5 // pred_check
      _
    $region10: #{convnet_forward.6} parent=5 // pred_check_branch
      %116 = sbr.rel (%p113) target = $region12
    $region11: #{convnet_forward.6} parent=5 // pred_region
      %s117 = ssub.s32 %s9, 1
      // Predicated region
      $region13: #{convnet_forward.6} parent=11 // pred_check
        %p118 = pneg %p56
      $region14: #{convnet_forward.6} parent=11 // pred_check_branch
        %120 = sbr.rel (%p118) target = $region16
      $region15: #{convnet_forward.6} parent=11 // pred_region
        _
      $region16: #{convnet_forward.6} parent=11 // pred_fallthru
        _
      // Predicated region
      $region17: #{convnet_forward.6} parent=11 // pred_check
        %p121 = pneg %p77
      $region18: #{convnet_forward.6} parent=11 // pred_check_branch
        %123 = sbr.rel (%p121) target = $region20
      $region19: #{convnet_forward.6} parent=11 // pred_region
        _
      $region20: #{convnet_forward.6} parent=11 // pred_fallthru
        _
    $region12: #{convnet_forward.6} parent=5 // pred_fallthru
      _
    %p124 = scmp.lt.s32.totalorder %s9, 2
    // Predicated region
    $region21: #{convnet_forward.6} parent=5 // pred_check
      %p125 = pneg %p124
    $region22: #{convnet_forward.6} parent=5 // pred_check_branch
      %127 = sbr.rel (%p125) target = $region24
    $region23: #{convnet_forward.6} parent=5 // pred_region
      // Predicated region
      $region25: #{convnet_forward.6} parent=23 // pred_check
        %p128 = pneg %p29
      $region26: #{convnet_forward.6} parent=23 // pred_check_branch
        %130 = sbr.rel (%p128) target = $region28
      $region27: #{convnet_forward.6} parent=23 // pred_region
        %s131 = smul.u32 8, %s9
        %p132 = scmp.lt.s32.totalorder %s131, 15
        %s133 = scalar_select %p132, %s131, 15
        %s134 = smul.addr %s133, 3
        %s135 = smul.addr %s134, 8
        %s136 = scalar_lea.vmem %s0, %s135
        %s137 = smul.u32 8, %s9
      $region28: #{convnet_forward.6} parent=23 // pred_fallthru
        _
    $region24: #{convnet_forward.6} parent=5 // pred_fallthru
      _
    %p138 = scmp.le.s32.totalorder 1, %s9
    %p139 = scmp.lt.s32.totalorder %s9, 3
    %p140 = pnand %p138, %p139
    %p141 = pneg %p140
    // Predicated region
    $region29: #{convnet_forward.6} parent=5 // pred_check
      _
    $region30: #{convnet_forward.6} parent=5 // pred_check_branch
      %143 = sbr.rel (%p140) target = $region32
    $region31: #{convnet_forward.6} parent=5 // pred_region
      %s144 = ssub.s32 %s9, 1
      %s145 = smul.u32 8, %s14
      %p146 = scmp.lt.s32.totalorder %s145, 15
      %s147 = scalar_select %p146, %s145, 15
      %s148 = smul.addr %s147, 3
      %s149 = smul.addr %s148, 8
      %s150 = scalar_lea.vmem %s0, %s149
      %p151 = pneg %p35
      %p152 = pneg %p32
      %p153 = pneg %p56
      %p154 = pneg %p53
      %p155 = pneg %p77
      %p156 = pneg %p74
      %p157 = pneg %p103
      %p158 = pneg %p100
      %s159 = smul.u32 2, %s14
      %p160 = scmp.lt.s32.totalorder %s159, 3
      %s161 = scalar_select %p160, %s159, 3
      %s162 = smul.addr %s161, 8
      %s163 = scalar_lea.vmem %s3, %s162
      %s164 = smul.u32 8, %s14
      %p165 = scmp.lt.s32.totalorder %s164, 15
      %s166 = scalar_select %p165, %s164, 15
      %s167 = smul.addr %s166, 3
      %s168 = smul.addr %s167, 8
      %s169 = scalar_lea.vmem %s0, %s168
      %s170 = smul.u32 8, %s14
      %s171 = smul.u32 2, %s14
      %p172 = scmp.lt.s32.totalorder %s171, 3
      %s173 = scalar_select %p172, %s171, 3
      %s174 = smul.addr %s173, 8
      %s175 = scalar_lea.vmem %s3, %s174
      %s176 = smul.u32 2, %s14
      %v177 = vld [vmem:[%s1] sm:$0xff]
      %v178 = vld [vmem:[%s1 + $0x8] sm:$0xff]
      %v179 = vld [vmem:[%s1 + $0x10] sm:$0xff]
      %v180 = vld [vmem:[%s1 + $0x18] sm:$0xff]
      %v181 = vld [vmem:[%s1 + $0x20] sm:$0xff]
      %v182 = vld [vmem:[%s1 + $0x28] sm:$0xff]
      %v183 = vld [vmem:[%s1 + $0x30] sm:$0xff]
      %v184 = vld [vmem:[%s1 + $0x38] sm:$0xff]
      %v185 = vld [vmem:[%s1 + $0x40] sm:$0xff]
      %v186 = vld [vmem:[%s1 + $0x48] sm:$0xff]
      %v187 = vld [vmem:[%s1 + $0x50] sm:$0xff]
      %v188 = vld [vmem:[%s1 + $0x58] sm:$0xff]
      %v189 = vld [vmem:[%s1 + $0x60] sm:$0xff]
      %v190 = vld [vmem:[%s1 + $0x68] sm:$0xff]
      %v191 = vld [vmem:[%s1 + $0x70] sm:$0xff]
      %v192 = vld [vmem:[%s1 + $0x78] sm:$0xff]
      %v193 = vld [vmem:[%s1 + $0x80] sm:$0xff]
      %v194 = vld [vmem:[%s1 + $0x88] sm:$0xff]
      %v195 = vld [vmem:[%s1 + $0x90] sm:$0xff]
      %v196 = vld [vmem:[%s1 + $0x98] sm:$0xff]
      %v197 = vld [vmem:[%s1 + $0xa0] sm:$0xff]
      %v198 = vld [vmem:[%s1 + $0xa8] sm:$0xff]
      %v199 = vld [vmem:[%s1 + $0xb0] sm:$0xff]
      %v200 = vld [vmem:[%s1 + $0xb8] sm:$0xff]
      %v201 = vld [vmem:[%s1 + $0xc0] sm:$0xff]
      %v202 = vld [vmem:[%s1 + $0xc8] sm:$0xff]
      %v203 = vld [vmem:[%s1 + $0xd0] sm:$0xff]
      %v204 = vld [vmem:[%s1 + $0xd8] sm:$0xff]
      %v205 = vld [vmem:[%s1 + $0xe0] sm:$0xff]
      %v206 = vld [vmem:[%s1 + $0xe8] sm:$0xff]
      %v207 = vld [vmem:[%s1 + $0xf0] sm:$0xff]
      %v208 = vld [vmem:[%s1 + $0xf8] sm:$0xff]
      %v209 = vld [vmem:[%s1 + $0x100] sm:$0xff]
      %v210 = vld [vmem:[%s1 + $0x108] sm:$0xff]
      %v211 = vld [vmem:[%s1 + $0x110] sm:$0xff]
      %v212 = vld [vmem:[%s1 + $0x118] sm:$0xff]
      %v213 = vld [vmem:[%s1 + $0x120] sm:$0xff]
      %v214 = vld [vmem:[%s1 + $0x128] sm:$0xff]
      %v215 = vld [vmem:[%s1 + $0x130] sm:$0xff]
      %v216 = vld [vmem:[%s1 + $0x138] sm:$0xff]
      %v217 = vld [vmem:[%s1 + $0x140] sm:$0xff]
      %v218 = vld [vmem:[%s1 + $0x148] sm:$0xff]
      %v219 = vld [vmem:[%s1 + $0x150] sm:$0xff]
      %v220 = vld [vmem:[%s1 + $0x158] sm:$0xff]
      %v221 = vld [vmem:[%s1 + $0x160] sm:$0xff]
      %v222 = vld [vmem:[%s1 + $0x168] sm:$0xff]
      %v223 = vld [vmem:[%s1 + $0x170] sm:$0xff]
      %v224 = vld [vmem:[%s1 + $0x178] sm:$0xff]
      %v225 = vld [vmem:[%s2] sm:$0x1]
      %v226 = vld [vmem:[%s169] sm:$0xff]
      %v227 = vld [vmem:[%s169 + $0x8] sm:$0xff]
      %v228 = vld [vmem:[%s169 + $0x10] sm:$0xff]
      %v229 = vld [vmem:[%s169 + $0x18] sm:$0xff]
      %v230 = vld [vmem:[%s169 + $0x20] sm:$0xff]
      %v231 = vld [vmem:[%s169 + $0x28] sm:$0xff]
      %v233 = vperm.slane %v225, 0
      %235 = vmatpush.msra.mxu0 %v192
      %236 = vmatpush.msra.mxu0 %v191
      %237 = vmatpush.msra.mxu0 %v190
      %238 = vmatpush.msra.mxu0 %v189
      %239 = vmatpush.msra.mxu0 %v188
      %240 = vmatpush.msra.mxu0 %v187
      %241 = vmatpush.msra.mxu0 %v186
      %242 = vmatpush.msra.mxu0 %v185
      %243 = vmatpush.msra.mxu0 %v184
      %244 = vmatpush.msra.mxu0 %v183
      %245 = vmatpush.msra.mxu0 %v182
      %246 = vmatpush.msra.mxu0 %v181
      %247 = vmatpush.msra.mxu0 %v180
      %248 = vmatpush.msra.mxu0 %v179
      %249 = vmatpush.msra.mxu0 %v178
      %250 = vmatpush.msra.mxu0 %v177
      %251 = vmatmul.f32.gmra.mxu0 %v226
      %v252 = vpop.f32.mrf.mxu0
      %v253 = vadd.f32 %v233, %v252
      %254 = vmatmul.f32.gmra.mxu0 %v229
      %v255 = vpop.f32.mrf.mxu0
      %v256 = vadd.f32 %v233, %v255
      %257 = vdwg.mxu0
      %258 = vmatpush.msra.mxu0 %v208
      %259 = vmatpush.msra.mxu0 %v207
      %260 = vmatpush.msra.mxu0 %v206
      %261 = vmatpush.msra.mxu0 %v205
      %262 = vmatpush.msra.mxu0 %v204
      %263 = vmatpush.msra.mxu0 %v203
      %264 = vmatpush.msra.mxu0 %v202
      %265 = vmatpush.msra.mxu0 %v201
      %266 = vmatpush.msra.mxu0 %v200
      %267 = vmatpush.msra.mxu0 %v199
      %268 = vmatpush.msra.mxu0 %v198
      %269 = vmatpush.msra.mxu0 %v197
      %270 = vmatpush.msra.mxu0 %v196
      %271 = vmatpush.msra.mxu0 %v195
      %272 = vmatpush.msra.mxu0 %v194
      %273 = vmatpush.msra.mxu0 %v193
      %274 = vmatmul.f32.gmra.mxu0 %v227
      %v275 = vpop.f32.mrf.mxu0
      %v276 = vadd.f32 %v253, %v275
      %277 = vmatmul.f32.gmra.mxu0 %v230
      %v278 = vpop.f32.mrf.mxu0
      %v279 = vadd.f32 %v256, %v278
      %280 = vdwg.mxu0
      %281 = vmatpush.msra.mxu0 %v224
      %282 = vmatpush.msra.mxu0 %v223
      %283 = vmatpush.msra.mxu0 %v222
      %284 = vmatpush.msra.mxu0 %v221
      %285 = vmatpush.msra.mxu0 %v220
      %286 = vmatpush.msra.mxu0 %v219
      %287 = vmatpush.msra.mxu0 %v218
      %288 = vmatpush.msra.mxu0 %v217
      %289 = vmatpush.msra.mxu0 %v216
      %290 = vmatpush.msra.mxu0 %v215
      %291 = vmatpush.msra.mxu0 %v214
      %292 = vmatpush.msra.mxu0 %v213
      %293 = vmatpush.msra.mxu0 %v212
      %294 = vmatpush.msra.mxu0 %v211
      %295 = vmatpush.msra.mxu0 %v210
      %296 = vmatpush.msra.mxu0 %v209
      %297 = vmatmul.f32.gmra.mxu0 %v228
      %v298 = vpop.f32.mrf.mxu0
      %v299 = vadd.f32 %v276, %v298
      %300 = vmatmul.f32.gmra.mxu0 %v231
      %v301 = vpop.f32.mrf.mxu0
      %v302 = vadd.f32 %v279, %v301
      %303 = vdwg.mxu0
      %v304 = vmax.f32 %v299, 0.0
      %v305 = vmax.f32 %v302, 0.0
      %v306 = vld [vmem:[%s169 + $0x30] sm:$0xff]
      %v307 = vld [vmem:[%s169 + $0x38] sm:$0xff]
      %v308 = vld [vmem:[%s169 + $0x40] sm:$0xff]
      %v309 = vld [vmem:[%s169 + $0x48] sm:$0xff]
      %v310 = vld [vmem:[%s169 + $0x50] sm:$0xff]
      %v311 = vld [vmem:[%s169 + $0x58] sm:$0xff]
      %312 = vmatpush.msra.mxu0 %v192
      %313 = vmatpush.msra.mxu0 %v191
      %314 = vmatpush.msra.mxu0 %v190
      %315 = vmatpush.msra.mxu0 %v189
      %316 = vmatpush.msra.mxu0 %v188
      %317 = vmatpush.msra.mxu0 %v187
      %318 = vmatpush.msra.mxu0 %v186
      %319 = vmatpush.msra.mxu0 %v185
      %320 = vmatpush.msra.mxu0 %v184
      %321 = vmatpush.msra.mxu0 %v183
      %322 = vmatpush.msra.mxu0 %v182
      %323 = vmatpush.msra.mxu0 %v181
      %324 = vmatpush.msra.mxu0 %v180
      %325 = vmatpush.msra.mxu0 %v179
      %326 = vmatpush.msra.mxu0 %v178
      %327 = vmatpush.msra.mxu0 %v177
      %328 = vmatmul.f32.gmra.mxu0 %v306
      %v329 = vpop.f32.mrf.mxu0
      %v330 = vadd.f32 %v233, %v329
      %331 = vmatmul.f32.gmra.mxu0 %v309
      %v332 = vpop.f32.mrf.mxu0
      %v333 = vadd.f32 %v233, %v332
      %334 = vdwg.mxu0
      %335 = vmatpush.msra.mxu0 %v208
      %336 = vmatpush.msra.mxu0 %v207
      %337 = vmatpush.msra.mxu0 %v206
      %338 = vmatpush.msra.mxu0 %v205
      %339 = vmatpush.msra.mxu0 %v204
      %340 = vmatpush.msra.mxu0 %v203
      %341 = vmatpush.msra.mxu0 %v202
      %342 = vmatpush.msra.mxu0 %v201
      %343 = vmatpush.msra.mxu0 %v200
      %344 = vmatpush.msra.mxu0 %v199
      %345 = vmatpush.msra.mxu0 %v198
      %346 = vmatpush.msra.mxu0 %v197
      %347 = vmatpush.msra.mxu0 %v196
      %348 = vmatpush.msra.mxu0 %v195
      %349 = vmatpush.msra.mxu0 %v194
      %350 = vmatpush.msra.mxu0 %v193
      %351 = vmatmul.f32.gmra.mxu0 %v307
      %v352 = vpop.f32.mrf.mxu0
      %v353 = vadd.f32 %v330, %v352
      %354 = vmatmul.f32.gmra.mxu0 %v310
      %v355 = vpop.f32.mrf.mxu0
      %v356 = vadd.f32 %v333, %v355
      %357 = vdwg.mxu0
      %358 = vmatpush.msra.mxu0 %v224
      %359 = vmatpush.msra.mxu0 %v223
      %360 = vmatpush.msra.mxu0 %v222
      %361 = vmatpush.msra.mxu0 %v221
      %362 = vmatpush.msra.mxu0 %v220
      %363 = vmatpush.msra.mxu0 %v219
      %364 = vmatpush.msra.mxu0 %v218
      %365 = vmatpush.msra.mxu0 %v217
      %366 = vmatpush.msra.mxu0 %v216
      %367 = vmatpush.msra.mxu0 %v215
      %368 = vmatpush.msra.mxu0 %v214
      %369 = vmatpush.msra.mxu0 %v213
      %370 = vmatpush.msra.mxu0 %v212
      %371 = vmatpush.msra.mxu0 %v211
      %372 = vmatpush.msra.mxu0 %v210
      %373 = vmatpush.msra.mxu0 %v209
      %374 = vmatmul.f32.gmra.mxu0 %v308
      %v375 = vpop.f32.mrf.mxu0
      %v376 = vadd.f32 %v353, %v375
      %377 = vmatmul.f32.gmra.mxu0 %v311
      %v378 = vpop.f32.mrf.mxu0
      %v379 = vadd.f32 %v356, %v378
      %380 = vdwg.mxu0
      %v381 = vmax.f32 %v376, 0.0
      %v382 = vmax.f32 %v379, 0.0
      %v383 = vmax.f32 %v304, %v381
      %v384 = vmax.f32 %v305, %v382
      %v385 = vld [vmem:[%s169 + $0x60] sm:$0xff]
      %v386 = vld [vmem:[%s169 + $0x68] sm:$0xff]
      %v387 = vld [vmem:[%s169 + $0x70] sm:$0xff]
      %v388 = vld [vmem:[%s169 + $0x78] sm:$0xff]
      %v389 = vld [vmem:[%s169 + $0x80] sm:$0xff]
      %v390 = vld [vmem:[%s169 + $0x88] sm:$0xff]
      %391 = vmatpush.msra.mxu0 %v192
      %392 = vmatpush.msra.mxu0 %v191
      %393 = vmatpush.msra.mxu0 %v190
      %394 = vmatpush.msra.mxu0 %v189
      %395 = vmatpush.msra.mxu0 %v188
      %396 = vmatpush.msra.mxu0 %v187
      %397 = vmatpush.msra.mxu0 %v186
      %398 = vmatpush.msra.mxu0 %v185
      %399 = vmatpush.msra.mxu0 %v184
      %400 = vmatpush.msra.mxu0 %v183
      %401 = vmatpush.msra.mxu0 %v182
      %402 = vmatpush.msra.mxu0 %v181
      %403 = vmatpush.msra.mxu0 %v180
      %404 = vmatpush.msra.mxu0 %v179
      %405 = vmatpush.msra.mxu0 %v178
      %406 = vmatpush.msra.mxu0 %v177
      %407 = vmatmul.f32.gmra.mxu0 %v385
      %v408 = vpop.f32.mrf.mxu0
      %v409 = vadd.f32 %v233, %v408
      %410 = vmatmul.f32.gmra.mxu0 %v388
      %v411 = vpop.f32.mrf.mxu0
      %v412 = vadd.f32 %v233, %v411
      %413 = vdwg.mxu0
      %414 = vmatpush.msra.mxu0 %v208
      %415 = vmatpush.msra.mxu0 %v207
      %416 = vmatpush.msra.mxu0 %v206
      %417 = vmatpush.msra.mxu0 %v205
      %418 = vmatpush.msra.mxu0 %v204
      %419 = vmatpush.msra.mxu0 %v203
      %420 = vmatpush.msra.mxu0 %v202
      %421 = vmatpush.msra.mxu0 %v201
      %422 = vmatpush.msra.mxu0 %v200
      %423 = vmatpush.msra.mxu0 %v199
      %424 = vmatpush.msra.mxu0 %v198
      %425 = vmatpush.msra.mxu0 %v197
      %426 = vmatpush.msra.mxu0 %v196
      %427 = vmatpush.msra.mxu0 %v195
      %428 = vmatpush.msra.mxu0 %v194
      %429 = vmatpush.msra.mxu0 %v193
      %430 = vmatmul.f32.gmra.mxu0 %v386
      %v431 = vpop.f32.mrf.mxu0
      %v432 = vadd.f32 %v409, %v431
      %433 = vmatmul.f32.gmra.mxu0 %v389
      %v434 = vpop.f32.mrf.mxu0
      %v435 = vadd.f32 %v412, %v434
      %436 = vdwg.mxu0
      %437 = vmatpush.msra.mxu0 %v224
      %438 = vmatpush.msra.mxu0 %v223
      %439 = vmatpush.msra.mxu0 %v222
      %440 = vmatpush.msra.mxu0 %v221
      %441 = vmatpush.msra.mxu0 %v220
      %442 = vmatpush.msra.mxu0 %v219
      %443 = vmatpush.msra.mxu0 %v218
      %444 = vmatpush.msra.mxu0 %v217
      %445 = vmatpush.msra.mxu0 %v216
      %446 = vmatpush.msra.mxu0 %v215
      %447 = vmatpush.msra.mxu0 %v214
      %448 = vmatpush.msra.mxu0 %v213
      %449 = vmatpush.msra.mxu0 %v212
      %450 = vmatpush.msra.mxu0 %v211
      %451 = vmatpush.msra.mxu0 %v210
      %452 = vmatpush.msra.mxu0 %v209
      %453 = vmatmul.f32.gmra.mxu0 %v387
      %v454 = vpop.f32.mrf.mxu0
      %v455 = vadd.f32 %v432, %v454
      %456 = vmatmul.f32.gmra.mxu0 %v390
      %v457 = vpop.f32.mrf.mxu0
      %v458 = vadd.f32 %v435, %v457
      %459 = vdwg.mxu0
      %v460 = vmax.f32 %v455, 0.0
      %v461 = vmax.f32 %v458, 0.0
      %v462 = vmax.f32 %v383, %v460
      %v463 = vmax.f32 %v384, %v461
      %v464 = vld [vmem:[%s169 + $0x90] sm:$0xff]
      %v465 = vld [vmem:[%s169 + $0x98] sm:$0xff]
      %v466 = vld [vmem:[%s169 + $0xa0] sm:$0xff]
      %v467 = vld [vmem:[%s169 + $0xa8] sm:$0xff]
      %v468 = vld [vmem:[%s169 + $0xb0] sm:$0xff]
      %v469 = vld [vmem:[%s169 + $0xb8] sm:$0xff]
      %470 = vmatpush.msra.mxu0 %v192
      %471 = vmatpush.msra.mxu0 %v191
      %472 = vmatpush.msra.mxu0 %v190
      %473 = vmatpush.msra.mxu0 %v189
      %474 = vmatpush.msra.mxu0 %v188
      %475 = vmatpush.msra.mxu0 %v187
      %476 = vmatpush.msra.mxu0 %v186
      %477 = vmatpush.msra.mxu0 %v185
      %478 = vmatpush.msra.mxu0 %v184
      %479 = vmatpush.msra.mxu0 %v183
      %480 = vmatpush.msra.mxu0 %v182
      %481 = vmatpush.msra.mxu0 %v181
      %482 = vmatpush.msra.mxu0 %v180
      %483 = vmatpush.msra.mxu0 %v179
      %484 = vmatpush.msra.mxu0 %v178
      %485 = vmatpush.msra.mxu0 %v177
      %486 = vmatmul.f32.gmra.mxu0 %v464
      %v487 = vpop.f32.mrf.mxu0
      %v488 = vadd.f32 %v233, %v487
      %489 = vmatmul.f32.gmra.mxu0 %v467
      %v490 = vpop.f32.mrf.mxu0
      %v491 = vadd.f32 %v233, %v490
      %492 = vdwg.mxu0
      %493 = vmatpush.msra.mxu0 %v208
      %494 = vmatpush.msra.mxu0 %v207
      %495 = vmatpush.msra.mxu0 %v206
      %496 = vmatpush.msra.mxu0 %v205
      %497 = vmatpush.msra.mxu0 %v204
      %498 = vmatpush.msra.mxu0 %v203
      %499 = vmatpush.msra.mxu0 %v202
      %500 = vmatpush.msra.mxu0 %v201
      %501 = vmatpush.msra.mxu0 %v200
      %502 = vmatpush.msra.mxu0 %v199
      %503 = vmatpush.msra.mxu0 %v198
      %504 = vmatpush.msra.mxu0 %v197
      %505 = vmatpush.msra.mxu0 %v196
      %506 = vmatpush.msra.mxu0 %v195
      %507 = vmatpush.msra.mxu0 %v194
      %508 = vmatpush.msra.mxu0 %v193
      %509 = vmatmul.f32.gmra.mxu0 %v465
      %v510 = vpop.f32.mrf.mxu0
      %v511 = vadd.f32 %v488, %v510
      %512 = vmatmul.f32.gmra.mxu0 %v468
      %v513 = vpop.f32.mrf.mxu0
      %v514 = vadd.f32 %v491, %v513
      %515 = vdwg.mxu0
      %516 = vmatpush.msra.mxu0 %v224
      %517 = vmatpush.msra.mxu0 %v223
      %518 = vmatpush.msra.mxu0 %v222
      %519 = vmatpush.msra.mxu0 %v221
      %520 = vmatpush.msra.mxu0 %v220
      %521 = vmatpush.msra.mxu0 %v219
      %522 = vmatpush.msra.mxu0 %v218
      %523 = vmatpush.msra.mxu0 %v217
      %524 = vmatpush.msra.mxu0 %v216
      %525 = vmatpush.msra.mxu0 %v215
      %526 = vmatpush.msra.mxu0 %v214
      %527 = vmatpush.msra.mxu0 %v213
      %528 = vmatpush.msra.mxu0 %v212
      %529 = vmatpush.msra.mxu0 %v211
      %530 = vmatpush.msra.mxu0 %v210
      %531 = vmatpush.msra.mxu0 %v209
      %532 = vmatmul.f32.gmra.mxu0 %v466
      %v533 = vpop.f32.mrf.mxu0
      %v534 = vadd.f32 %v511, %v533
      %535 = vmatmul.f32.gmra.mxu0 %v469
      %v536 = vpop.f32.mrf.mxu0
      %v537 = vadd.f32 %v514, %v536
      %538 = vdwg.mxu0
      %v539 = vmax.f32 %v534, 0.0
      %v540 = vmax.f32 %v537, 0.0
      %v541 = vmax.f32 %v462, %v539
      %v542 = vmax.f32 %v463, %v540
      %543 = vst [vmem:[%s175] sm:$0xff] %v541
      %544 = vst [vmem:[%s175 + $0x8] sm:$0xff] %v542
      %s545 = smul.u32 2, %s14
      %p546 = scmp.lt.s32.totalorder %s545, 3
      %s547 = scalar_select %p546, %s545, 3
      %s548 = smul.addr %s547, 8
      %s549 = scalar_lea.vmem %s3, %s548
      // Predicated region
      $region33: #{convnet_forward.6} parent=31 // pred_check
        %p550 = pneg %p100
      $region34: #{convnet_forward.6} parent=31 // pred_check_branch
        %552 = sbr.rel (%p550) target = $region36
      $region35: #{convnet_forward.6} parent=31 // pred_region
        %s553 = smul.u32 2, %s14
      $region36: #{convnet_forward.6} parent=31 // pred_fallthru
        _
    $region32: #{convnet_forward.6} parent=5 // pred_fallthru
      _
    %p554 = scmp.le.s32.totalorder 2, %s9
    // Predicated region
    $region37: #{convnet_forward.6} parent=5 // pred_check
      %p555 = pneg %p554
    $region38: #{convnet_forward.6} parent=5 // pred_check_branch
      %557 = sbr.rel (%p555) target = $region40
    $region39: #{convnet_forward.6} parent=5 // pred_region
      %s558 = ssub.s32 %s9, 2
      // Predicated region
      $region41: #{convnet_forward.6} parent=39 // pred_check
        %p559 = pneg %p106
      $region42: #{convnet_forward.6} parent=39 // pred_check_branch
        %561 = sbr.rel (%p559) target = $region44
      $region43: #{convnet_forward.6} parent=39 // pred_region
        %s562 = smul.u32 2, %s15
        %p563 = scmp.lt.s32.totalorder %s562, 3
        %s564 = scalar_select %p563, %s562, 3
        %s565 = smul.addr %s564, 8
        %s566 = scalar_lea.vmem %s3, %s565
      $region44: #{convnet_forward.6} parent=39 // pred_fallthru
        _
    $region40: #{convnet_forward.6} parent=5 // pred_fallthru
      _
  $region6: #{convnet_forward.6} parent=0 // loop_footer
    %s13 = sadd.s32 1, %s9
  $region7: #{convnet_forward.6} parent=0 // loop_footer_branch
    %8 = sbr.rel target = $region3
  $region8: #{convnet_forward.6} parent=0 // loop_exit
    _

// kernel: convnet_forward.7
$region0: #{convnet_forward.7}
  #allocation0 [shape = 'u32[]', space=smem, size = 0x4, offset = 0x4, fixed_abs, tag = 'smem constant byte address 0x4 - core index']
  #allocation1 [shape = 'u32[72,128]{1,0:T(1,128)}', space=vmem, size = 0x9000, scoped, tag = 'internal scratch']
  %s0 = inlined_call_operand.vmem [shape: f32[2,2048], index: 0, kind: input, shape index: {}]
  %s1 = inlined_call_operand.vmem [shape: f32[2048,128], index: 1, kind: input, shape index: {}]
  %s2 = inlined_call_operand.vmem [shape: f32[1,128], index: 2, kind: input, shape index: {}]
  %s3 = inlined_call_operand.vmem [shape: f32[128,128], index: 3, kind: input, shape index: {}]
  %s4 = inlined_call_operand.vmem [shape: f32[1,128], index: 4, kind: input, shape index: {}]
  %s5 = inlined_call_operand.vmem [shape: f32[128,128], index: 5, kind: input, shape index: {}]
  %s6 = inlined_call_operand.vmem [shape: f32[1,128], index: 6, kind: input, shape index: {}]
  %s7 = inlined_call_operand.hbm [shape: f32[2,128], index: 7, kind: output, shape index: {}]
  %s8 = sld [smem:[#allocation0]]
  $region38: #{convnet_forward.7} parent=0
    _
  %s10 = ssub.s32 1, %s8
  %s11 = scalar_select 0, %s10, %s8
  $region1: #{convnet_forward.7} parent=0
    #allocation2 [shape = 'u8[1024]{0}', space=vmem, size = 0x400, scoped, tag = 'output window, operand 0, single buffered']
    #allocation3 [shape = 's32[1]{0}', space=sflag, size = 0x4, scoped, tag = 'scoped memory for convnet_forward.7']
    %12 = vsyncpa [#allocation3], 0
    // Predicated region
    $region2: #{convnet_forward.7} parent=1 // pred_check
      _
    $region3: #{convnet_forward.7} parent=1 // pred_check_branch
      %14 = sbr.rel (0) target = $region5
    $region4: #{convnet_forward.7} parent=1 // pred_region
      _
    $region5: #{convnet_forward.7} parent=1 // pred_fallthru
      _
    // Predicated region
    $region6: #{convnet_forward.7} parent=1 // pred_check
      _
    $region7: #{convnet_forward.7} parent=1 // pred_check_branch
      %16 = sbr.rel (0) target = $region9
    $region8: #{convnet_forward.7} parent=1 // pred_region
      _
    $region9: #{convnet_forward.7} parent=1 // pred_fallthru
      _
    // Predicated region
    $region10: #{convnet_forward.7} parent=1 // pred_check
      _
    $region11: #{convnet_forward.7} parent=1 // pred_check_branch
      %18 = sbr.rel (0) target = $region13
    $region12: #{convnet_forward.7} parent=1 // pred_region
      _
    $region13: #{convnet_forward.7} parent=1 // pred_fallthru
      _
    // Predicated region
    $region14: #{convnet_forward.7} parent=1 // pred_check
      _
    $region15: #{convnet_forward.7} parent=1 // pred_check_branch
      %20 = sbr.rel (0) target = $region17
    $region16: #{convnet_forward.7} parent=1 // pred_region
      _
    $region17: #{convnet_forward.7} parent=1 // pred_fallthru
      _
    // Predicated region
    $region18: #{convnet_forward.7} parent=1 // pred_check
      _
    $region19: #{convnet_forward.7} parent=1 // pred_check_branch
      %22 = sbr.rel (0) target = $region21
    $region20: #{convnet_forward.7} parent=1 // pred_region
      _
    $region21: #{convnet_forward.7} parent=1 // pred_fallthru
      _
    // Predicated region
    $region22: #{convnet_forward.7} parent=1 // pred_check
      _
    $region23: #{convnet_forward.7} parent=1 // pred_check_branch
      %24 = sbr.rel (0) target = $region25
    $region24: #{convnet_forward.7} parent=1 // pred_region
      _
    $region25: #{convnet_forward.7} parent=1 // pred_fallthru
      _
    // Predicated region
    $region26: #{convnet_forward.7} parent=1 // pred_check
      _
    $region27: #{convnet_forward.7} parent=1 // pred_check_branch
      %26 = sbr.rel (0) target = $region29
    $region28: #{convnet_forward.7} parent=1 // pred_region
      _
    $region29: #{convnet_forward.7} parent=1 // pred_fallthru
      _
    %v27 = vld [vmem:[%s0] sm:$0xff]
    %v28 = vld [vmem:[%s0 + $0x8] sm:$0xff]
    %v29 = vld [vmem:[%s0 + $0x10] sm:$0xff]
    %v30 = vld [vmem:[%s0 + $0x18] sm:$0xff]
    %v31 = vld [vmem:[%s1] sm:$0xff]
    %v32 = vld [vmem:[%s1 + $0x8] sm:$0xff]
    %v33 = vld [vmem:[%s1 + $0x10] sm:$0xff]
    %v34 = vld [vmem:[%s1 + $0x18] sm:$0xff]
    %v35 = vld [vmem:[%s1 + $0x20] sm:$0xff]
    %v36 = vld [vmem:[%s1 + $0x28] sm:$0xff]
    %v37 = vld [vmem:[%s1 + $0x30] sm:$0xff]
    %v38 = vld [vmem:[%s1 + $0x38] sm:$0xff]
    %v39 = vld [vmem:[%s1 + $0x40] sm:$0xff]
    %v40 = vld [vmem:[%s1 + $0x48] sm:$0xff]
    %v41 = vld [vmem:[%s1 + $0x50] sm:$0xff]
    %v42 = vld [vmem:[%s1 + $0x58] sm:$0xff]
    %v43 = vld [vmem:[%s1 + $0x60] sm:$0xff]
    %v44 = vld [vmem:[%s1 + $0x68] sm:$0xff]
    %v45 = vld [vmem:[%s1 + $0x70] sm:$0xff]
    %v46 = vld [vmem:[%s1 + $0x78] sm:$0xff]
    %v47 = vld [vmem:[%s1 + $0x80] sm:$0xff]
    %v48 = vld [vmem:[%s1 + $0x88] sm:$0xff]
    %v49 = vld [vmem:[%s1 + $0x90] sm:$0xff]
    %v50 = vld [vmem:[%s1 + $0x98] sm:$0xff]
    %v51 = vld [vmem:[%s1 + $0xa0] sm:$0xff]
    %v52 = vld [vmem:[%s1 + $0xa8] sm:$0xff]
    %v53 = vld [vmem:[%s1 + $0xb0] sm:$0xff]
    %v54 = vld [vmem:[%s1 + $0xb8] sm:$0xff]
    %v55 = vld [vmem:[%s1 + $0xc0] sm:$0xff]
    %v56 = vld [vmem:[%s1 + $0xc8] sm:$0xff]
    %v57 = vld [vmem:[%s1 + $0xd0] sm:$0xff]
    %v58 = vld [vmem:[%s1 + $0xd8] sm:$0xff]
    %v59 = vld [vmem:[%s1 + $0xe0] sm:$0xff]
    %v60 = vld [vmem:[%s1 + $0xe8] sm:$0xff]
    %v61 = vld [vmem:[%s1 + $0xf0] sm:$0xff]
    %v62 = vld [vmem:[%s1 + $0xf8] sm:$0xff]
    %v63 = vld [vmem:[%s1 + $0x100] sm:$0xff]
    %v64 = vld [vmem:[%s1 + $0x108] sm:$0xff]
    %v65 = vld [vmem:[%s1 + $0x110] sm:$0xff]
    %v66 = vld [vmem:[%s1 + $0x118] sm:$0xff]
    %v67 = vld [vmem:[%s1 + $0x120] sm:$0xff]
    %v68 = vld [vmem:[%s1 + $0x128] sm:$0xff]
    %v69 = vld [vmem:[%s1 + $0x130] sm:$0xff]
    %v70 = vld [vmem:[%s1 + $0x138] sm:$0xff]
    %v71 = vld [vmem:[%s1 + $0x140] sm:$0xff]
    %v72 = vld [vmem:[%s1 + $0x148] sm:$0xff]
    %v73 = vld [vmem:[%s1 + $0x150] sm:$0xff]
    %v74 = vld [vmem:[%s1 + $0x158] sm:$0xff]
    %v75 = vld [vmem:[%s1 + $0x160] sm:$0xff]
    %v76 = vld [vmem:[%s1 + $0x168] sm:$0xff]
    %v77 = vld [vmem:[%s1 + $0x170] sm:$0xff]
    %v78 = vld [vmem:[%s1 + $0x178] sm:$0xff]
    %v79 = vld [vmem:[%s1 + $0x180] sm:$0xff]
    %v80 = vld [vmem:[%s1 + $0x188] sm:$0xff]
    %v81 = vld [vmem:[%s1 + $0x190] sm:$0xff]
    %v82 = vld [vmem:[%s1 + $0x198] sm:$0xff]
    %v83 = vld [vmem:[%s1 + $0x1a0] sm:$0xff]
    %v84 = vld [vmem:[%s1 + $0x1a8] sm:$0xff]
    %v85 = vld [vmem:[%s1 + $0x1b0] sm:$0xff]
    %v86 = vld [vmem:[%s1 + $0x1b8] sm:$0xff]
    %v87 = vld [vmem:[%s1 + $0x1c0] sm:$0xff]
    %v88 = vld [vmem:[%s1 + $0x1c8] sm:$0xff]
    %v89 = vld [vmem:[%s1 + $0x1d0] sm:$0xff]
    %v90 = vld [vmem:[%s1 + $0x1d8] sm:$0xff]
    %v91 = vld [vmem:[%s1 + $0x1e0] sm:$0xff]
    %v92 = vld [vmem:[%s1 + $0x1e8] sm:$0xff]
    %v93 = vld [vmem:[%s1 + $0x1f0] sm:$0xff]
    %v94 = vld [vmem:[%s1 + $0x1f8] sm:$0xff]
    %v95 = vld [vmem:[%s1 + $0x200] sm:$0xff]
    %v96 = vld [vmem:[%s1 + $0x208] sm:$0xff]
    %v97 = vld [vmem:[%s1 + $0x210] sm:$0xff]
    %v98 = vld [vmem:[%s1 + $0x218] sm:$0xff]
    %v99 = vld [vmem:[%s1 + $0x220] sm:$0xff]
    %v100 = vld [vmem:[%s1 + $0x228] sm:$0xff]
    %v101 = vld [vmem:[%s1 + $0x230] sm:$0xff]
    %v102 = vld [vmem:[%s1 + $0x238] sm:$0xff]
    %v103 = vld [vmem:[%s1 + $0x240] sm:$0xff]
    %v104 = vld [vmem:[%s1 + $0x248] sm:$0xff]
    %v105 = vld [vmem:[%s1 + $0x250] sm:$0xff]
    %v106 = vld [vmem:[%s1 + $0x258] sm:$0xff]
    %v107 = vld [vmem:[%s1 + $0x260] sm:$0xff]
    %v108 = vld [vmem:[%s1 + $0x268] sm:$0xff]
    %v109 = vld [vmem:[%s1 + $0x270] sm:$0xff]
    %v110 = vld [vmem:[%s1 + $0x278] sm:$0xff]
    %v111 = vld [vmem:[%s1 + $0x280] sm:$0xff]
    %v112 = vld [vmem:[%s1 + $0x288] sm:$0xff]
    %v113 = vld [vmem:[%s1 + $0x290] sm:$0xff]
    %v114 = vld [vmem:[%s1 + $0x298] sm:$0xff]
    %v115 = vld [vmem:[%s1 + $0x2a0] sm:$0xff]
    %v116 = vld [vmem:[%s1 + $0x2a8] sm:$0xff]
    %v117 = vld [vmem:[%s1 + $0x2b0] sm:$0xff]
    %v118 = vld [vmem:[%s1 + $0x2b8] sm:$0xff]
    %v119 = vld [vmem:[%s1 + $0x2c0] sm:$0xff]
    %v120 = vld [vmem:[%s1 + $0x2c8] sm:$0xff]
    %v121 = vld [vmem:[%s1 + $0x2d0] sm:$0xff]
    %v122 = vld [vmem:[%s1 + $0x2d8] sm:$0xff]
    %v123 = vld [vmem:[%s1 + $0x2e0] sm:$0xff]
    %v124 = vld [vmem:[%s1 + $0x2e8] sm:$0xff]
    %v125 = vld [vmem:[%s1 + $0x2f0] sm:$0xff]
    %v126 = vld [vmem:[%s1 + $0x2f8] sm:$0xff]
    %v127 = vld [vmem:[%s1 + $0x300] sm:$0xff]
    %v128 = vld [vmem:[%s1 + $0x308] sm:$0xff]
    %v129 = vld [vmem:[%s1 + $0x310] sm:$0xff]
    %v130 = vld [vmem:[%s1 + $0x318] sm:$0xff]
    %v131 = vld [vmem:[%s1 + $0x320] sm:$0xff]
    %v132 = vld [vmem:[%s1 + $0x328] sm:$0xff]
    %v133 = vld [vmem:[%s1 + $0x330] sm:$0xff]
    %v134 = vld [vmem:[%s1 + $0x338] sm:$0xff]
    %v135 = vld [vmem:[%s1 + $0x340] sm:$0xff]
    %v136 = vld [vmem:[%s1 + $0x348] sm:$0xff]
    %v137 = vld [vmem:[%s1 + $0x350] sm:$0xff]
    %v138 = vld [vmem:[%s1 + $0x358] sm:$0xff]
    %v139 = vld [vmem:[%s1 + $0x360] sm:$0xff]
    %v140 = vld [vmem:[%s1 + $0x368] sm:$0xff]
    %v141 = vld [vmem:[%s1 + $0x370] sm:$0xff]
    %v142 = vld [vmem:[%s1 + $0x378] sm:$0xff]
    %v143 = vld [vmem:[%s1 + $0x380] sm:$0xff]
    %v144 = vld [vmem:[%s1 + $0x388] sm:$0xff]
    %v145 = vld [vmem:[%s1 + $0x390] sm:$0xff]
    %v146 = vld [vmem:[%s1 + $0x398] sm:$0xff]
    %v147 = vld [vmem:[%s1 + $0x3a0] sm:$0xff]
    %v148 = vld [vmem:[%s1 + $0x3a8] sm:$0xff]
    %v149 = vld [vmem:[%s1 + $0x3b0] sm:$0xff]
    %v150 = vld [vmem:[%s1 + $0x3b8] sm:$0xff]
    %v151 = vld [vmem:[%s1 + $0x3c0] sm:$0xff]
    %v152 = vld [vmem:[%s1 + $0x3c8] sm:$0xff]
    %v153 = vld [vmem:[%s1 + $0x3d0] sm:$0xff]
    %v154 = vld [vmem:[%s1 + $0x3d8] sm:$0xff]
    %v155 = vld [vmem:[%s1 + $0x3e0] sm:$0xff]
    %v156 = vld [vmem:[%s1 + $0x3e8] sm:$0xff]
    %v157 = vld [vmem:[%s1 + $0x3f0] sm:$0xff]
    %v158 = vld [vmem:[%s1 + $0x3f8] sm:$0xff]
    %v159 = vld [vmem:[%s1 + $0x400] sm:$0xff]
    %v160 = vld [vmem:[%s1 + $0x408] sm:$0xff]
    %v161 = vld [vmem:[%s1 + $0x410] sm:$0xff]
    %v162 = vld [vmem:[%s1 + $0x418] sm:$0xff]
    %v163 = vld [vmem:[%s1 + $0x420] sm:$0xff]
    %v164 = vld [vmem:[%s1 + $0x428] sm:$0xff]
    %v165 = vld [vmem:[%s1 + $0x430] sm:$0xff]
    %v166 = vld [vmem:[%s1 + $0x438] sm:$0xff]
    %v167 = vld [vmem:[%s1 + $0x440] sm:$0xff]
    %v168 = vld [vmem:[%s1 + $0x448] sm:$0xff]
    %v169 = vld [vmem:[%s1 + $0x450] sm:$0xff]
    %v170 = vld [vmem:[%s1 + $0x458] sm:$0xff]
    %v171 = vld [vmem:[%s1 + $0x460] sm:$0xff]
    %v172 = vld [vmem:[%s1 + $0x468] sm:$0xff]
    %v173 = vld [vmem:[%s1 + $0x470] sm:$0xff]
    %v174 = vld [vmem:[%s1 + $0x478] sm:$0xff]
    %v175 = vld [vmem:[%s1 + $0x480] sm:$0xff]
    %v176 = vld [vmem:[%s1 + $0x488] sm:$0xff]
    %v177 = vld [vmem:[%s1 + $0x490] sm:$0xff]
    %v178 = vld [vmem:[%s1 + $0x498] sm:$0xff]
    %v179 = vld [vmem:[%s1 + $0x4a0] sm:$0xff]
    %v180 = vld [vmem:[%s1 + $0x4a8] sm:$0xff]
    %v181 = vld [vmem:[%s1 + $0x4b0] sm:$0xff]
    %v182 = vld [vmem:[%s1 + $0x4b8] sm:$0xff]
    %v183 = vld [vmem:[%s1 + $0x4c0] sm:$0xff]
    %v184 = vld [vmem:[%s1 + $0x4c8] sm:$0xff]
    %v185 = vld [vmem:[%s1 + $0x4d0] sm:$0xff]
    %v186 = vld [vmem:[%s1 + $0x4d8] sm:$0xff]
    %v187 = vld [vmem:[%s1 + $0x4e0] sm:$0xff]
    %v188 = vld [vmem:[%s1 + $0x4e8] sm:$0xff]
    %v189 = vld [vmem:[%s1 + $0x4f0] sm:$0xff]
    %v190 = vld [vmem:[%s1 + $0x4f8] sm:$0xff]
    %v191 = vld [vmem:[%s1 + $0x500] sm:$0xff]
    %v192 = vld [vmem:[%s1 + $0x508] sm:$0xff]
    %v193 = vld [vmem:[%s1 + $0x510] sm:$0xff]
    %v194 = vld [vmem:[%s1 + $0x518] sm:$0xff]
    %v195 = vld [vmem:[%s1 + $0x520] sm:$0xff]
    %v196 = vld [vmem:[%s1 + $0x528] sm:$0xff]
    %v197 = vld [vmem:[%s1 + $0x530] sm:$0xff]
    %v198 = vld [vmem:[%s1 + $0x538] sm:$0xff]
    %v199 = vld [vmem:[%s1 + $0x540] sm:$0xff]
    %v200 = vld [vmem:[%s1 + $0x548] sm:$0xff]
    %v201 = vld [vmem:[%s1 + $0x550] sm:$0xff]
    %v202 = vld [vmem:[%s1 + $0x558] sm:$0xff]
    %v203 = vld [vmem:[%s1 + $0x560] sm:$0xff]
    %v204 = vld [vmem:[%s1 + $0x568] sm:$0xff]
    %v205 = vld [vmem:[%s1 + $0x570] sm:$0xff]
    %v206 = vld [vmem:[%s1 + $0x578] sm:$0xff]
    %v207 = vld [vmem:[%s1 + $0x580] sm:$0xff]
    %v208 = vld [vmem:[%s1 + $0x588] sm:$0xff]
    %v209 = vld [vmem:[%s1 + $0x590] sm:$0xff]
    %v210 = vld [vmem:[%s1 + $0x598] sm:$0xff]
    %v211 = vld [vmem:[%s1 + $0x5a0] sm:$0xff]
    %v212 = vld [vmem:[%s1 + $0x5a8] sm:$0xff]
    %v213 = vld [vmem:[%s1 + $0x5b0] sm:$0xff]
    %v214 = vld [vmem:[%s1 + $0x5b8] sm:$0xff]
    %v215 = vld [vmem:[%s1 + $0x5c0] sm:$0xff]
    %v216 = vld [vmem:[%s1 + $0x5c8] sm:$0xff]
    %v217 = vld [vmem:[%s1 + $0x5d0] sm:$0xff]
    %v218 = vld [vmem:[%s1 + $0x5d8] sm:$0xff]
    %v219 = vld [vmem:[%s1 + $0x5e0] sm:$0xff]
    %v220 = vld [vmem:[%s1 + $0x5e8] sm:$0xff]
    %v221 = vld [vmem:[%s1 + $0x5f0] sm:$0xff]
    %v222 = vld [vmem:[%s1 + $0x5f8] sm:$0xff]
    %v223 = vld [vmem:[%s1 + $0x600] sm:$0xff]
    %v224 = vld [vmem:[%s1 + $0x608] sm:$0xff]
    %v225 = vld [vmem:[%s1 + $0x610] sm:$0xff]
    %v226 = vld [vmem:[%s1 + $0x618] sm:$0xff]
    %v227 = vld [vmem:[%s1 + $0x620] sm:$0xff]
    %v228 = vld [vmem:[%s1 + $0x628] sm:$0xff]
    %v229 = vld [vmem:[%s1 + $0x630] sm:$0xff]
    %v230 = vld [vmem:[%s1 + $0x638] sm:$0xff]
    %v231 = vld [vmem:[%s1 + $0x640] sm:$0xff]
    %v232 = vld [vmem:[%s1 + $0x648] sm:$0xff]
    %v233 = vld [vmem:[%s1 + $0x650] sm:$0xff]
    %v234 = vld [vmem:[%s1 + $0x658] sm:$0xff]
    %v235 = vld [vmem:[%s1 + $0x660] sm:$0xff]
    %v236 = vld [vmem:[%s1 + $0x668] sm:$0xff]
    %v237 = vld [vmem:[%s1 + $0x670] sm:$0xff]
    %v238 = vld [vmem:[%s1 + $0x678] sm:$0xff]
    %v239 = vld [vmem:[%s1 + $0x680] sm:$0xff]
    %v240 = vld [vmem:[%s1 + $0x688] sm:$0xff]
    %v241 = vld [vmem:[%s1 + $0x690] sm:$0xff]
    %v242 = vld [vmem:[%s1 + $0x698] sm:$0xff]
    %v243 = vld [vmem:[%s1 + $0x6a0] sm:$0xff]
    %v244 = vld [vmem:[%s1 + $0x6a8] sm:$0xff]
    %v245 = vld [vmem:[%s1 + $0x6b0] sm:$0xff]
    %v246 = vld [vmem:[%s1 + $0x6b8] sm:$0xff]
    %v247 = vld [vmem:[%s1 + $0x6c0] sm:$0xff]
    %v248 = vld [vmem:[%s1 + $0x6c8] sm:$0xff]
    %v249 = vld [vmem:[%s1 + $0x6d0] sm:$0xff]
    %v250 = vld [vmem:[%s1 + $0x6d8] sm:$0xff]
    %v251 = vld [vmem:[%s1 + $0x6e0] sm:$0xff]
    %v252 = vld [vmem:[%s1 + $0x6e8] sm:$0xff]
    %v253 = vld [vmem:[%s1 + $0x6f0] sm:$0xff]
    %v254 = vld [vmem:[%s1 + $0x6f8] sm:$0xff]
    %v255 = vld [vmem:[%s1 + $0x700] sm:$0xff]
    %v256 = vld [vmem:[%s1 + $0x708] sm:$0xff]
    %v257 = vld [vmem:[%s1 + $0x710] sm:$0xff]
    %v258 = vld [vmem:[%s1 + $0x718] sm:$0xff]
    %v259 = vld [vmem:[%s1 + $0x720] sm:$0xff]
    %v260 = vld [vmem:[%s1 + $0x728] sm:$0xff]
    %v261 = vld [vmem:[%s1 + $0x730] sm:$0xff]
    %v262 = vld [vmem:[%s1 + $0x738] sm:$0xff]
    %v263 = vld [vmem:[%s1 + $0x740] sm:$0xff]
    %v264 = vld [vmem:[%s1 + $0x748] sm:$0xff]
    %v265 = vld [vmem:[%s1 + $0x750] sm:$0xff]
    %v266 = vld [vmem:[%s1 + $0x758] sm:$0xff]
    %v267 = vld [vmem:[%s1 + $0x760] sm:$0xff]
    %v268 = vld [vmem:[%s1 + $0x768] sm:$0xff]
    %v269 = vld [vmem:[%s1 + $0x770] sm:$0xff]
    %v270 = vld [vmem:[%s1 + $0x778] sm:$0xff]
    %v271 = vld [vmem:[%s1 + $0x780] sm:$0xff]
    %v272 = vld [vmem:[%s1 + $0x788] sm:$0xff]
    %v273 = vld [vmem:[%s1 + $0x790] sm:$0xff]
    %v274 = vld [vmem:[%s1 + $0x798] sm:$0xff]
    %v275 = vld [vmem:[%s1 + $0x7a0] sm:$0xff]
    %v276 = vld [vmem:[%s1 + $0x7a8] sm:$0xff]
    %v277 = vld [vmem:[%s1 + $0x7b0] sm:$0xff]
    %v278 = vld [vmem:[%s1 + $0x7b8] sm:$0xff]
    %v279 = vld [vmem:[%s1 + $0x7c0] sm:$0xff]
    %v280 = vld [vmem:[%s1 + $0x7c8] sm:$0xff]
    %v281 = vld [vmem:[%s1 + $0x7d0] sm:$0xff]
    %v282 = vld [vmem:[%s1 + $0x7d8] sm:$0xff]
    %v283 = vld [vmem:[%s1 + $0x7e0] sm:$0xff]
    %v284 = vld [vmem:[%s1 + $0x7e8] sm:$0xff]
    %v285 = vld [vmem:[%s1 + $0x7f0] sm:$0xff]
    %v286 = vld [vmem:[%s1 + $0x7f8] sm:$0xff]
    %v287 = vld [vmem:[%s2] sm:$0x1]
    %v289 = vperm.slane %v287, 0
    %295 = vst [vmem:[#allocation1] ss:$4 sm:$0xff] %v27
    %s296 = scalar_lea.vmem [#allocation1], 32
    %297 = vst [vmem:[%s296] ss:$4 sm:$0xff] %v28
    %v298 = vld.sshfl [vmem:[#allocation1] sm:$0xff pattern:$0x73625140]
    %v299 = vld.sshfl [vmem:[#allocation1 + $0x8] sm:$0xff pattern:$0x73625140]
    %v300 = vld.sshfl [vmem:[#allocation1 + $0x10] sm:$0xff pattern:$0x73625140]
    %v301 = vld.sshfl [vmem:[#allocation1 + $0x18] sm:$0xff pattern:$0x73625140]
    %v302 = vld.sshfl [vmem:[#allocation1 + $0x20] sm:$0xff pattern:$0x73625140]
    %v303 = vld.sshfl [vmem:[#allocation1 + $0x28] sm:$0xff pattern:$0x73625140]
    %v304 = vld.sshfl [vmem:[#allocation1 + $0x30] sm:$0xff pattern:$0x73625140]
    %v305 = vld.sshfl [vmem:[#allocation1 + $0x38] sm:$0xff pattern:$0x73625140]
    %306 = vst [vmem:[#allocation1] ss:$4 sm:$0xff] %v29
    %307 = vst [vmem:[%s296] ss:$4 sm:$0xff] %v30
    %v308 = vld.sshfl [vmem:[#allocation1] sm:$0xff pattern:$0x73625140]
    %v309 = vld.sshfl [vmem:[#allocation1 + $0x8] sm:$0xff pattern:$0x73625140]
    %v310 = vld.sshfl [vmem:[#allocation1 + $0x10] sm:$0xff pattern:$0x73625140]
    %v311 = vld.sshfl [vmem:[#allocation1 + $0x18] sm:$0xff pattern:$0x73625140]
    %v312 = vld.sshfl [vmem:[#allocation1 + $0x20] sm:$0xff pattern:$0x73625140]
    %v313 = vld.sshfl [vmem:[#allocation1 + $0x28] sm:$0xff pattern:$0x73625140]
    %v314 = vld.sshfl [vmem:[#allocation1 + $0x30] sm:$0xff pattern:$0x73625140]
    %v315 = vld.sshfl [vmem:[#allocation1 + $0x38] sm:$0xff pattern:$0x73625140]
    %332 = vmatpush.msra.mxu0 %v46
    %333 = vmatpush.msra.mxu0 %v45
    %334 = vmatpush.msra.mxu0 %v44
    %335 = vmatpush.msra.mxu0 %v43
    %336 = vmatpush.msra.mxu0 %v42
    %337 = vmatpush.msra.mxu0 %v41
    %338 = vmatpush.msra.mxu0 %v40
    %339 = vmatpush.msra.mxu0 %v39
    %340 = vmatpush.msra.mxu0 %v38
    %341 = vmatpush.msra.mxu0 %v37
    %342 = vmatpush.msra.mxu0 %v36
    %343 = vmatpush.msra.mxu0 %v35
    %344 = vmatpush.msra.mxu0 %v34
    %345 = vmatpush.msra.mxu0 %v33
    %346 = vmatpush.msra.mxu0 %v32
    %347 = vmatpush.msra.mxu0 %v31
    %348 = vmatmul.f32.gmra.mxu0 %v298
    %v349 = vpop.f32.mrf.mxu0
    %v350 = vadd.f32 %v289, %v349
    %351 = vdwg.mxu0
    %352 = vmatpush.msra.mxu0 %v62
    %353 = vmatpush.msra.mxu0 %v61
    %354 = vmatpush.msra.mxu0 %v60
    %355 = vmatpush.msra.mxu0 %v59
    %356 = vmatpush.msra.mxu0 %v58
    %357 = vmatpush.msra.mxu0 %v57
    %358 = vmatpush.msra.mxu0 %v56
    %359 = vmatpush.msra.mxu0 %v55
    %360 = vmatpush.msra.mxu0 %v54
    %361 = vmatpush.msra.mxu0 %v53
    %362 = vmatpush.msra.mxu0 %v52
    %363 = vmatpush.msra.mxu0 %v51
    %364 = vmatpush.msra.mxu0 %v50
    %365 = vmatpush.msra.mxu0 %v49
    %366 = vmatpush.msra.mxu0 %v48
    %367 = vmatpush.msra.mxu0 %v47
    %368 = vmatmul.f32.gmra.mxu0 %v299
    %v369 = vpop.f32.mrf.mxu0
    %v370 = vadd.f32 %v350, %v369
    %371 = vdwg.mxu0
    %372 = vmatpush.msra.mxu0 %v78
    %373 = vmatpush.msra.mxu0 %v77
    %374 = vmatpush.msra.mxu0 %v76
    %375 = vmatpush.msra.mxu0 %v75
    %376 = vmatpush.msra.mxu0 %v74
    %377 = vmatpush.msra.mxu0 %v73
    %378 = vmatpush.msra.mxu0 %v72
    %379 = vmatpush.msra.mxu0 %v71
    %380 = vmatpush.msra.mxu0 %v70
    %381 = vmatpush.msra.mxu0 %v69
    %382 = vmatpush.msra.mxu0 %v68
    %383 = vmatpush.msra.mxu0 %v67
    %384 = vmatpush.msra.mxu0 %v66
    %385 = vmatpush.msra.mxu0 %v65
    %386 = vmatpush.msra.mxu0 %v64
    %387 = vmatpush.msra.mxu0 %v63
    %388 = vmatmul.f32.gmra.mxu0 %v300
    %v389 = vpop.f32.mrf.mxu0
    %v390 = vadd.f32 %v370, %v389
    %391 = vdwg.mxu0
    %392 = vmatpush.msra.mxu0 %v94
    %393 = vmatpush.msra.mxu0 %v93
    %394 = vmatpush.msra.mxu0 %v92
    %395 = vmatpush.msra.mxu0 %v91
    %396 = vmatpush.msra.mxu0 %v90
    %397 = vmatpush.msra.mxu0 %v89
    %398 = vmatpush.msra.mxu0 %v88
    %399 = vmatpush.msra.mxu0 %v87
    %400 = vmatpush.msra.mxu0 %v86
    %401 = vmatpush.msra.mxu0 %v85
    %402 = vmatpush.msra.mxu0 %v84
    %403 = vmatpush.msra.mxu0 %v83
    %404 = vmatpush.msra.mxu0 %v82
    %405 = vmatpush.msra.mxu0 %v81
    %406 = vmatpush.msra.mxu0 %v80
    %407 = vmatpush.msra.mxu0 %v79
    %408 = vmatmul.f32.gmra.mxu0 %v301
    %v409 = vpop.f32.mrf.mxu0
    %v410 = vadd.f32 %v390, %v409
    %411 = vdwg.mxu0
    %412 = vmatpush.msra.mxu0 %v110
    %413 = vmatpush.msra.mxu0 %v109
    %414 = vmatpush.msra.mxu0 %v108
    %415 = vmatpush.msra.mxu0 %v107
    %416 = vmatpush.msra.mxu0 %v106
    %417 = vmatpush.msra.mxu0 %v105
    %418 = vmatpush.msra.mxu0 %v104
    %419 = vmatpush.msra.mxu0 %v103
    %420 = vmatpush.msra.mxu0 %v102
    %421 = vmatpush.msra.mxu0 %v101
    %422 = vmatpush.msra.mxu0 %v100
    %423 = vmatpush.msra.mxu0 %v99
    %424 = vmatpush.msra.mxu0 %v98
    %425 = vmatpush.msra.mxu0 %v97
    %426 = vmatpush.msra.mxu0 %v96
    %427 = vmatpush.msra.mxu0 %v95
    %428 = vmatmul.f32.gmra.mxu0 %v302
    %v429 = vpop.f32.mrf.mxu0
    %v430 = vadd.f32 %v410, %v429
    %431 = vdwg.mxu0
    %432 = vmatpush.msra.mxu0 %v126
    %433 = vmatpush.msra.mxu0 %v125
    %434 = vmatpush.msra.mxu0 %v124
    %435 = vmatpush.msra.mxu0 %v123
    %436 = vmatpush.msra.mxu0 %v122
    %437 = vmatpush.msra.mxu0 %v121
    %438 = vmatpush.msra.mxu0 %v120
    %439 = vmatpush.msra.mxu0 %v119
    %440 = vmatpush.msra.mxu0 %v118
    %441 = vmatpush.msra.mxu0 %v117
    %442 = vmatpush.msra.mxu0 %v116
    %443 = vmatpush.msra.mxu0 %v115
    %444 = vmatpush.msra.mxu0 %v114
    %445 = vmatpush.msra.mxu0 %v113
    %446 = vmatpush.msra.mxu0 %v112
    %447 = vmatpush.msra.mxu0 %v111
    %448 = vmatmul.f32.gmra.mxu0 %v303
    %v449 = vpop.f32.mrf.mxu0
    %v450 = vadd.f32 %v430, %v449
    %451 = vdwg.mxu0
    %452 = vmatpush.msra.mxu0 %v142
    %453 = vmatpush.msra.mxu0 %v141
    %454 = vmatpush.msra.mxu0 %v140
    %455 = vmatpush.msra.mxu0 %v139
    %456 = vmatpush.msra.mxu0 %v138
    %457 = vmatpush.msra.mxu0 %v137
    %458 = vmatpush.msra.mxu0 %v136
    %459 = vmatpush.msra.mxu0 %v135
    %460 = vmatpush.msra.mxu0 %v134
    %461 = vmatpush.msra.mxu0 %v133
    %462 = vmatpush.msra.mxu0 %v132
    %463 = vmatpush.msra.mxu0 %v131
    %464 = vmatpush.msra.mxu0 %v130
    %465 = vmatpush.msra.mxu0 %v129
    %466 = vmatpush.msra.mxu0 %v128
    %467 = vmatpush.msra.mxu0 %v127
    %468 = vmatmul.f32.gmra.mxu0 %v304
    %v469 = vpop.f32.mrf.mxu0
    %v470 = vadd.f32 %v450, %v469
    %471 = vdwg.mxu0
    %472 = vmatpush.msra.mxu0 %v158
    %473 = vmatpush.msra.mxu0 %v157
    %474 = vmatpush.msra.mxu0 %v156
    %475 = vmatpush.msra.mxu0 %v155
    %476 = vmatpush.msra.mxu0 %v154
    %477 = vmatpush.msra.mxu0 %v153
    %478 = vmatpush.msra.mxu0 %v152
    %479 = vmatpush.msra.mxu0 %v151
    %480 = vmatpush.msra.mxu0 %v150
    %481 = vmatpush.msra.mxu0 %v149
    %482 = vmatpush.msra.mxu0 %v148
    %483 = vmatpush.msra.mxu0 %v147
    %484 = vmatpush.msra.mxu0 %v146
    %485 = vmatpush.msra.mxu0 %v145
    %486 = vmatpush.msra.mxu0 %v144
    %487 = vmatpush.msra.mxu0 %v143
    %488 = vmatmul.f32.gmra.mxu0 %v305
    %v489 = vpop.f32.mrf.mxu0
    %v490 = vadd.f32 %v470, %v489
    %491 = vdwg.mxu0
    %492 = vmatpush.msra.mxu0 %v174
    %493 = vmatpush.msra.mxu0 %v173
    %494 = vmatpush.msra.mxu0 %v172
    %495 = vmatpush.msra.mxu0 %v171
    %496 = vmatpush.msra.mxu0 %v170
    %497 = vmatpush.msra.mxu0 %v169
    %498 = vmatpush.msra.mxu0 %v168
    %499 = vmatpush.msra.mxu0 %v167
    %500 = vmatpush.msra.mxu0 %v166
    %501 = vmatpush.msra.mxu0 %v165
    %502 = vmatpush.msra.mxu0 %v164
    %503 = vmatpush.msra.mxu0 %v163
    %504 = vmatpush.msra.mxu0 %v162
    %505 = vmatpush.msra.mxu0 %v161
    %506 = vmatpush.msra.mxu0 %v160
    %507 = vmatpush.msra.mxu0 %v159
    %508 = vmatmul.f32.gmra.mxu0 %v308
    %v509 = vpop.f32.mrf.mxu0
    %v510 = vadd.f32 %v490, %v509
    %511 = vdwg.mxu0
    %512 = vmatpush.msra.mxu0 %v190
    %513 = vmatpush.msra.mxu0 %v189
    %514 = vmatpush.msra.mxu0 %v188
    %515 = vmatpush.msra.mxu0 %v187
    %516 = vmatpush.msra.mxu0 %v186
    %517 = vmatpush.msra.mxu0 %v185
    %518 = vmatpush.msra.mxu0 %v184
    %519 = vmatpush.msra.mxu0 %v183
    %520 = vmatpush.msra.mxu0 %v182
    %521 = vmatpush.msra.mxu0 %v181
    %522 = vmatpush.msra.mxu0 %v180
    %523 = vmatpush.msra.mxu0 %v179
    %524 = vmatpush.msra.mxu0 %v178
    %525 = vmatpush.msra.mxu0 %v177
    %526 = vmatpush.msra.mxu0 %v176
    %527 = vmatpush.msra.mxu0 %v175
    %528 = vmatmul.f32.gmra.mxu0 %v309
    %v529 = vpop.f32.mrf.mxu0
    %v530 = vadd.f32 %v510, %v529
    %531 = vdwg.mxu0
    %532 = vmatpush.msra.mxu0 %v206
    %533 = vmatpush.msra.mxu0 %v205
    %534 = vmatpush.msra.mxu0 %v204
    %535 = vmatpush.msra.mxu0 %v203
    %536 = vmatpush.msra.mxu0 %v202
    %537 = vmatpush.msra.mxu0 %v201
    %538 = vmatpush.msra.mxu0 %v200
    %539 = vmatpush.msra.mxu0 %v199
    %540 = vmatpush.msra.mxu0 %v198
    %541 = vmatpush.msra.mxu0 %v197
    %542 = vmatpush.msra.mxu0 %v196
    %543 = vmatpush.msra.mxu0 %v195
    %544 = vmatpush.msra.mxu0 %v194
    %545 = vmatpush.msra.mxu0 %v193
    %546 = vmatpush.msra.mxu0 %v192
    %547 = vmatpush.msra.mxu0 %v191
    %548 = vmatmul.f32.gmra.mxu0 %v310
    %v549 = vpop.f32.mrf.mxu0
    %v550 = vadd.f32 %v530, %v549
    %551 = vdwg.mxu0
    %552 = vmatpush.msra.mxu0 %v222
    %553 = vmatpush.msra.mxu0 %v221
    %554 = vmatpush.msra.mxu0 %v220
    %555 = vmatpush.msra.mxu0 %v219
    %556 = vmatpush.msra.mxu0 %v218
    %557 = vmatpush.msra.mxu0 %v217
    %558 = vmatpush.msra.mxu0 %v216
    %559 = vmatpush.msra.mxu0 %v215
    %560 = vmatpush.msra.mxu0 %v214
    %561 = vmatpush.msra.mxu0 %v213
    %562 = vmatpush.msra.mxu0 %v212
    %563 = vmatpush.msra.mxu0 %v211
    %564 = vmatpush.msra.mxu0 %v210
    %565 = vmatpush.msra.mxu0 %v209
    %566 = vmatpush.msra.mxu0 %v208
    %567 = vmatpush.msra.mxu0 %v207
    %568 = vmatmul.f32.gmra.mxu0 %v311
    %v569 = vpop.f32.mrf.mxu0
    %v570 = vadd.f32 %v550, %v569
    %571 = vdwg.mxu0
    %572 = vmatpush.msra.mxu0 %v238
    %573 = vmatpush.msra.mxu0 %v237
    %574 = vmatpush.msra.mxu0 %v236
    %575 = vmatpush.msra.mxu0 %v235
    %576 = vmatpush.msra.mxu0 %v234
    %577 = vmatpush.msra.mxu0 %v233
    %578 = vmatpush.msra.mxu0 %v232
    %579 = vmatpush.msra.mxu0 %v231
    %580 = vmatpush.msra.mxu0 %v230
    %581 = vmatpush.msra.mxu0 %v229
    %582 = vmatpush.msra.mxu0 %v228
    %583 = vmatpush.msra.mxu0 %v227
    %584 = vmatpush.msra.mxu0 %v226
    %585 = vmatpush.msra.mxu0 %v225
    %586 = vmatpush.msra.mxu0 %v224
    %587 = vmatpush.msra.mxu0 %v223
    %588 = vmatmul.f32.gmra.mxu0 %v312
    %v589 = vpop.f32.mrf.mxu0
    %v590 = vadd.f32 %v570, %v589
    %591 = vdwg.mxu0
    %592 = vmatpush.msra.mxu0 %v254
    %593 = vmatpush.msra.mxu0 %v253
    %594 = vmatpush.msra.mxu0 %v252
    %595 = vmatpush.msra.mxu0 %v251
    %596 = vmatpush.msra.mxu0 %v250
    %597 = vmatpush.msra.mxu0 %v249
    %598 = vmatpush.msra.mxu0 %v248
    %599 = vmatpush.msra.mxu0 %v247
    %600 = vmatpush.msra.mxu0 %v246
    %601 = vmatpush.msra.mxu0 %v245
    %602 = vmatpush.msra.mxu0 %v244
    %603 = vmatpush.msra.mxu0 %v243
    %604 = vmatpush.msra.mxu0 %v242
    %605 = vmatpush.msra.mxu0 %v241
    %606 = vmatpush.msra.mxu0 %v240
    %607 = vmatpush.msra.mxu0 %v239
    %608 = vmatmul.f32.gmra.mxu0 %v313
    %v609 = vpop.f32.mrf.mxu0
    %v610 = vadd.f32 %v590, %v609
    %611 = vdwg.mxu0
    %612 = vmatpush.msra.mxu0 %v270
    %613 = vmatpush.msra.mxu0 %v269
    %614 = vmatpush.msra.mxu0 %v268
    %615 = vmatpush.msra.mxu0 %v267
    %616 = vmatpush.msra.mxu0 %v266
    %617 = vmatpush.msra.mxu0 %v265
    %618 = vmatpush.msra.mxu0 %v264
    %619 = vmatpush.msra.mxu0 %v263
    %620 = vmatpush.msra.mxu0 %v262
    %621 = vmatpush.msra.mxu0 %v261
    %622 = vmatpush.msra.mxu0 %v260
    %623 = vmatpush.msra.mxu0 %v259
    %624 = vmatpush.msra.mxu0 %v258
    %625 = vmatpush.msra.mxu0 %v257
    %626 = vmatpush.msra.mxu0 %v256
    %627 = vmatpush.msra.mxu0 %v255
    %628 = vmatmul.f32.gmra.mxu0 %v314
    %v629 = vpop.f32.mrf.mxu0
    %v630 = vadd.f32 %v610, %v629
    %631 = vdwg.mxu0
    %632 = vmatpush.msra.mxu0 %v286
    %633 = vmatpush.msra.mxu0 %v285
    %634 = vmatpush.msra.mxu0 %v284
    %635 = vmatpush.msra.mxu0 %v283
    %636 = vmatpush.msra.mxu0 %v282
    %637 = vmatpush.msra.mxu0 %v281
    %638 = vmatpush.msra.mxu0 %v280
    %639 = vmatpush.msra.mxu0 %v279
    %640 = vmatpush.msra.mxu0 %v278
    %641 = vmatpush.msra.mxu0 %v277
    %642 = vmatpush.msra.mxu0 %v276
    %643 = vmatpush.msra.mxu0 %v275
    %644 = vmatpush.msra.mxu0 %v274
    %645 = vmatpush.msra.mxu0 %v273
    %646 = vmatpush.msra.mxu0 %v272
    %647 = vmatpush.msra.mxu0 %v271
    %648 = vmatmul.f32.gmra.mxu0 %v315
    %v649 = vpop.f32.mrf.mxu0
    %v650 = vadd.f32 %v630, %v649
    %651 = vdwg.mxu0
    %v652 = vmax.f32 %v650, 0.0
    %v653 = vld [vmem:[%s3] sm:$0xff]
    %v654 = vld [vmem:[%s3 + $0x8] sm:$0xff]
    %v655 = vld [vmem:[%s3 + $0x10] sm:$0xff]
    %v656 = vld [vmem:[%s3 + $0x18] sm:$0xff]
    %v657 = vld [vmem:[%s3 + $0x20] sm:$0xff]
    %v658 = vld [vmem:[%s3 + $0x28] sm:$0xff]
    %v659 = vld [vmem:[%s3 + $0x30] sm:$0xff]
    %v660 = vld [vmem:[%s3 + $0x38] sm:$0xff]
    %v661 = vld [vmem:[%s3 + $0x40] sm:$0xff]
    %v662 = vld [vmem:[%s3 + $0x48] sm:$0xff]
    %v663 = vld [vmem:[%s3 + $0x50] sm:$0xff]
    %v664 = vld [vmem:[%s3 + $0x58] sm:$0xff]
    %v665 = vld [vmem:[%s3 + $0x60] sm:$0xff]
    %v666 = vld [vmem:[%s3 + $0x68] sm:$0xff]
    %v667 = vld [vmem:[%s3 + $0x70] sm:$0xff]
    %v668 = vld [vmem:[%s3 + $0x78] sm:$0xff]
    %v669 = vld [vmem:[%s4] sm:$0x1]
    %v671 = vperm.slane %v669, 0
    %673 = vmatpush.msra.mxu0 %v668
    %674 = vmatpush.msra.mxu0 %v667
    %675 = vmatpush.msra.mxu0 %v666
    %676 = vmatpush.msra.mxu0 %v665
    %677 = vmatpush.msra.mxu0 %v664
    %678 = vmatpush.msra.mxu0 %v663
    %679 = vmatpush.msra.mxu0 %v662
    %680 = vmatpush.msra.mxu0 %v661
    %681 = vmatpush.msra.mxu0 %v660
    %682 = vmatpush.msra.mxu0 %v659
    %683 = vmatpush.msra.mxu0 %v658
    %684 = vmatpush.msra.mxu0 %v657
    %685 = vmatpush.msra.mxu0 %v656
    %686 = vmatpush.msra.mxu0 %v655
    %687 = vmatpush.msra.mxu0 %v654
    %688 = vmatpush.msra.mxu0 %v653
    %689 = vmatmul.f32.gmra.mxu0 %v652
    %v690 = vpop.f32.mrf.mxu0
    %v691 = vadd.f32 %v671, %v690
    %692 = vdwg.mxu0
    %v693 = vmax.f32 %v691, 0.0
    %v694 = vld [vmem:[%s5] sm:$0xff]
    %v695 = vld [vmem:[%s5 + $0x8] sm:$0xff]
    %v696 = vld [vmem:[%s5 + $0x10] sm:$0xff]
    %v697 = vld [vmem:[%s5 + $0x18] sm:$0xff]
    %v698 = vld [vmem:[%s5 + $0x20] sm:$0xff]
    %v699 = vld [vmem:[%s5 + $0x28] sm:$0xff]
    %v700 = vld [vmem:[%s5 + $0x30] sm:$0xff]
    %v701 = vld [vmem:[%s5 + $0x38] sm:$0xff]
    %v702 = vld [vmem:[%s5 + $0x40] sm:$0xff]
    %v703 = vld [vmem:[%s5 + $0x48] sm:$0xff]
    %v704 = vld [vmem:[%s5 + $0x50] sm:$0xff]
    %v705 = vld [vmem:[%s5 + $0x58] sm:$0xff]
    %v706 = vld [vmem:[%s5 + $0x60] sm:$0xff]
    %v707 = vld [vmem:[%s5 + $0x68] sm:$0xff]
    %v708 = vld [vmem:[%s5 + $0x70] sm:$0xff]
    %v709 = vld [vmem:[%s5 + $0x78] sm:$0xff]
    %v710 = vld [vmem:[%s6] sm:$0x1]
    %v712 = vperm.slane %v710, 0
    %714 = vmatpush.msra.mxu0 %v709
    %715 = vmatpush.msra.mxu0 %v708
    %716 = vmatpush.msra.mxu0 %v707
    %717 = vmatpush.msra.mxu0 %v706
    %718 = vmatpush.msra.mxu0 %v705
    %719 = vmatpush.msra.mxu0 %v704
    %720 = vmatpush.msra.mxu0 %v703
    %721 = vmatpush.msra.mxu0 %v702
    %722 = vmatpush.msra.mxu0 %v701
    %723 = vmatpush.msra.mxu0 %v700
    %724 = vmatpush.msra.mxu0 %v699
    %725 = vmatpush.msra.mxu0 %v698
    %726 = vmatpush.msra.mxu0 %v697
    %727 = vmatpush.msra.mxu0 %v696
    %728 = vmatpush.msra.mxu0 %v695
    %729 = vmatpush.msra.mxu0 %v694
    %730 = vmatmul.f32.gmra.mxu0 %v693
    %v731 = vpop.f32.mrf.mxu0
    %v732 = vadd.f32 %v712, %v731
    %733 = vdwg.mxu0
    %734 = vst [vmem:[#allocation2] sm:$0x3] %v732
    // Predicated region
    $region30: #{convnet_forward.7} parent=1 // pred_check
      _
    $region31: #{convnet_forward.7} parent=1 // pred_check_branch
      %736 = sbr.rel (0) target = $region33
    $region32: #{convnet_forward.7} parent=1 // pred_region
      %738 = vsyncadd [#allocation3], 0
      %s740 = sshll.u32 [#allocation2], 4
      %s741 = int_to_ptr.vmem [resolvable:$true] %s740
      %s742 = sshll.u32 %s7, 4
      %s743 = int_to_ptr.hbm [resolvable:$true] %s742
      %745 = dma.vmem_to_hbm [thread:$0]  %s741, 32, %s743, [#allocation3]
    $region33: #{convnet_forward.7} parent=1 // pred_fallthru
      _
    // Predicated region
    $region34: #{convnet_forward.7} parent=1 // pred_check
      _
    $region35: #{convnet_forward.7} parent=1 // pred_check_branch
      %747 = sbr.rel (0) target = $region37
    $region36: #{convnet_forward.7} parent=1 // pred_region
      %749 = dma.done [#allocation3], 32
    $region37: #{convnet_forward.7} parent=1 // pred_fallthru
      _
    %750 = vsyncpa [#allocation3], 1

</llo_original>
